<compile_context>
chip_gen: v7x
topology: tpu7x:2x2x1
jax: 0.10.0
libtpu: 0.0.40
codegen_flags: <defaults>
</compile_context>

<pallas_src>
import functools
import math

import jax
import jax.numpy as jnp
from jax import lax
from jax.experimental import pallas as pl
from jax.experimental.pallas import tpu as pltpu


CONV1_KP = 16          # conv1 im2col K (9 taps) padded to one bf16 sublane tile


def _round_up(x, m):
    return ((x + m - 1) // m) * m


def _pick_tile_128(dim, tmax):
    """Largest tile <= tmax (multiple of 128) dividing dim (dim % 128 == 0)."""
    if dim <= tmax:
        return dim
    t = (tmax // 128) * 128
    while t > 128 and dim % t != 0:
        t -= 128
    return t


def _sub_len(l):
    return (l - 1) // 2 + 1   # conv output length for k=3, s=2, p=1


# ----------------------------------------------------------------------------
# Pallas kernel 1: tiled fused  Y = act(X @ W + b)   (bf16 MXU, f32 accumulate)
# ----------------------------------------------------------------------------
def _mm_kernel_single(x_ref, w_ref, b_ref, o_ref, *, act):
    # Single K step: no scratch, no accumulator copy.
    y = jnp.dot(x_ref[...], w_ref[...], preferred_element_type=jnp.float32)
    y = y + b_ref[...]
    if act == "relu":
        y = jnp.maximum(y, 0.0)
    o_ref[...] = y.astype(o_ref.dtype)


def _mm_kernel_f32out(x_ref, w_ref, b_ref, o_ref, *, act, n_k):
    # f32 output: accumulate directly into the resident output block.
    k = pl.program_id(2)
    part = jnp.dot(x_ref[...], w_ref[...], preferred_element_type=jnp.float32)

    @pl.when(k == 0)
    def _():
        o_ref[...] = part + b_ref[...]

    @pl.when(k != 0)
    def _():
        o_ref[...] += part

    if act == "relu":
        @pl.when(k == n_k - 1)
        def _():
            o_ref[...] = jnp.maximum(o_ref[...], 0.0)


def _mm_kernel_lowout(x_ref, w_ref, b_ref, o_ref, acc_ref, *, act, n_k):
    # bf16 output: f32 accumulator scratch, cast once at the last k step.
    k = pl.program_id(2)

    @pl.when(k == 0)
    def _():
        acc_ref[...] = jnp.zeros_like(acc_ref)

    acc_ref[...] += jnp.dot(x_ref[...], w_ref[...],
                            preferred_element_type=jnp.float32)

    @pl.when(k == n_k - 1)
    def _():
        y = acc_ref[...] + b_ref[...]
        if act == "relu":
            y = jnp.maximum(y, 0.0)
        o_ref[...] = y.astype(o_ref.dtype)


def matmul_bias_act(x, w, b, act="none", out_dtype=jnp.float32,
                    tm_max=512, tn_max=512, tk_max=512):
    """Y = act(x @ w + b).
    x: (M, K) bf16 activations; w: (K, N) bf16 pre-padded (N % 128 == 0);
    b: (1, N) f32 pre-padded.  Output is lane-dense (Mp, N) -> sliced to M rows.
    """
    M, K = x.shape
    Kw, N = w.shape
    assert K == Kw and N % 128 == 0 and b.shape == (1, N)

    tn = _pick_tile_128(N, tn_max)
    tk = _pick_tile_128(K, tk_max) if K % 128 == 0 else K   # small-K (conv1)
    tm = min(tm_max, _round_up(M, 8))
    Mp = _round_up(M, tm)
    xp = x if Mp == M else jnp.pad(x, ((0, Mp - M), (0, 0)))
    n_k = K // tk

    if n_k == 1:
        kernel = functools.partial(_mm_kernel_single, act=act)
        scratch = []
    elif out_dtype == jnp.float32:
        kernel = functools.partial(_mm_kernel_f32out, act=act, n_k=n_k)
        scratch = []
    else:
        kernel = functools.partial(_mm_kernel_lowout, act=act, n_k=n_k)
        scratch = [pltpu.VMEM((tm, tn), jnp.float32)]

    out = pl.pallas_call(
        kernel,
        out_shape=jax.ShapeDtypeStruct((Mp, N), out_dtype),
        grid_spec=pltpu.PrefetchScalarGridSpec(
            num_scalar_prefetch=0,
            grid=(Mp // tm, N // tn, n_k),
            in_specs=[
                pl.BlockSpec((tm, tk), lambda i, j, k: (i, k)),
                pl.BlockSpec((tk, tn), lambda i, j, k: (k, j)),
                pl.BlockSpec((1, tn), lambda i, j, k: (0, j)),
            ],
            out_specs=pl.BlockSpec((tm, tn), lambda i, j, k: (i, j)),
            scratch_shapes=scratch),
        compiler_params=pltpu.CompilerParams(
            dimension_semantics=("parallel", "parallel", "arbitrary")),
    )(xp, w, b)
    return out if Mp == M else out[:M]


# ----------------------------------------------------------------------------
# Pallas kernel 2: GRU recurrence, (tb batch rows) x (tc timesteps) per grid
# step; hidden state carried in a VMEM scratch across the time grid axis.
#   gx  : (Tp, Bp, 3*Hp) bf16 time-major, precomputed x_t @ W_ih^T + b_ih
#   mask: (Tp, Bp, 1)    f32, 1.0 for valid timesteps
#   whh : (Hp, 3*Hp) bf16 ; bhh : (1, 3*Hp) f32    (gate slabs Hp-wide)
# ----------------------------------------------------------------------------
def _gru_chunk_kernel(gx_ref, m_ref, whh_ref, bhh_ref, o_ref, h_scr, *, hp, tc):
    @pl.when(pl.program_id(1) == 0)      # new batch block -> reset hidden state
    def _():
        h_scr[...] = jnp.zeros_like(h_scr)

    def step(tt, h):
        gx = gx_ref[tt]                  # (tb, 3Hp) bf16
        m = m_ref[tt]                    # (tb, 1)   f32
        gh = jnp.dot(h.astype(jnp.bfloat16), whh_ref[...],
                     preferred_element_type=jnp.float32) + bhh_ref[...]
        rz = jax.nn.sigmoid(gx[:, :2 * hp] + gh[:, :2 * hp])   # fused r|z slab
        r = rz[:, :hp]
        z = rz[:, hp:]
        n = jnp.tanh(gx[:, 2 * hp:] + r * gh[:, 2 * hp:])
        h_new = n + z * (h - n)          # == (1-z)*n + z*h
        o_ref[tt] = (m * h_new).astype(o_ref.dtype)
        return h + m * (h_new - h)       # carry old state on padded steps

    h_scr[...] = lax.fori_loop(0, tc, step, h_scr[...], unroll=True)


def _pick_tc(T, Bp, hp, budget_bytes=32 * 1024 * 1024):
    """Timesteps per grid step, budgeted against scoped VMEM."""
    tc = max(1, min(16, T))
    fixed = (2 * hp * 3 * hp * 2          # whh (bf16, double-buffered)
             + Bp * hp * 4                # h_scr
             + 2 * 3 * hp * 4)            # bhh
    while tc > 1:
        per = 2 * (tc * Bp * 3 * hp * 2   # gx   (bf16, double-buffered)
                   + tc * Bp * hp * 2     # out  (bf16, double-buffered)
                   + tc * Bp * 128 * 4)   # mask (f32, lane-padded)
        if fixed + per <= budget_bytes:
            break
        tc //= 2
    return tc


def gru_layer(gx_tm, mask_tm, whh, bhh, hp, tb, tc):
    Tp, Bp, _ = gx_tm.shape
    return pl.pallas_call(
        functools.partial(_gru_chunk_kernel, hp=hp, tc=tc),
        out_shape=jax.ShapeDtypeStruct((Tp, Bp, hp), jnp.bfloat16),
        grid_spec=pltpu.PrefetchScalarGridSpec(
            num_scalar_prefetch=0,
            grid=(Bp // tb, Tp // tc),
            in_specs=[
                pl.BlockSpec((tc, tb, 3 * hp), lambda ib, it: (it, ib, 0)),
                pl.BlockSpec((tc, tb, 1), lambda ib, it: (it, ib, 0)),
                pl.BlockSpec((hp, 3 * hp), lambda ib, it: (0, 0)),
                pl.BlockSpec((1, 3 * hp), lambda ib, it: (0, 0)),
            ],
            out_specs=pl.BlockSpec((tc, tb, hp), lambda ib, it: (it, ib, 0)),
            scratch_shapes=[pltpu.VMEM((tb, hp), jnp.float32)]),
        compiler_params=pltpu.CompilerParams(
            dimension_semantics=("parallel", "arbitrary"),
            vmem_limit_bytes=48 * 1024 * 1024),
    )(gx_tm, mask_tm, whh, bhh)


# ----------------------------------------------------------------------------
# Glue: channels-last im2col for 3x3 / stride-2 / pad-1 conv (no transposes)
# ----------------------------------------------------------------------------
def im2col_nhwc_3x3_s2_p1(x):
    """x: (B, H, W, C) -> (B*Ho*Wo, 9*C), patch axis ordered (kh, kw, cin)."""
    k, s, p = 3, 2, 1
    B, H, W, C = x.shape
    xp = jnp.pad(x, ((0, 0), (p, p), (p, p), (0, 0)))
    Ho = (H + 2 * p - k) // s + 1
    Wo = (W + 2 * p - k) // s + 1
    cols = []
    for di in range(k):
        for dj in range(k):
            cols.append(xp[:, di:di + s * (Ho - 1) + 1:s,
                           dj:dj + s * (Wo - 1) + 1:s, :])
    pat = jnp.stack(cols, axis=3)            # (B, Ho, Wo, 9, C)
    return pat.reshape(B * Ho * Wo, k * k * C), Ho, Wo


# ----------------------------------------------------------------------------
# Model forward (wrappers around the Pallas kernels)
# ----------------------------------------------------------------------------
def conv_subsampling(x, lengths, params, hp):
    B, T, F = x.shape
    x_nhwc = x.astype(jnp.bfloat16).reshape(B, T, F, 1)

    # conv1: Conv2d(1->H, 3, s2, p1) + ReLU; im2col K padded only 9->16 (bf16)
    pat1, T1, F1 = im2col_nhwc_3x3_s2_p1(x_nhwc)
    pat1 = jnp.pad(pat1, ((0, 0), (0, CONV1_KP - pat1.shape[1])))
    y1 = matmul_bias_act(pat1, params["conv1_w"], params["conv1_b"],
                         act="relu", out_dtype=jnp.bfloat16)
    y1 = y1.reshape(B, T1, F1, hp)           # channels-last, lane-dense Hp

    # conv2: Conv2d(H->H, 3, s2, p1) + ReLU; K = 9*Hp (multiple of 128)
    pat2, T2, F2 = im2col_nhwc_3x3_s2_p1(y1)
    y2 = matmul_bias_act(pat2, params["conv2_w"], params["conv2_b"],
                         act="relu", out_dtype=jnp.bfloat16)
    y2 = y2.reshape(B * T2, F2 * hp)         # flatten (freq, channel)

    # Linear(F2*C -> hidden), output lane-dense at Hp (pad cols are exact 0)
    feats = matmul_bias_act(y2, params["proj_w"], params["proj_b"],
                            act="none", out_dtype=jnp.bfloat16).reshape(B, T2, hp)

    new_lengths = _sub_len(_sub_len(lengths)).astype(jnp.int32)
    return feats, new_lengths


def gru_body(feats_bt, lengths, params, num_layers, hp):
    B, T, _ = feats_bt.shape
    Bp = _round_up(B, 8)                     # fill f32 sublanes even for tiny B
    tb = Bp // 2 if Bp % 32 == 0 else Bp     # 2 batch blocks -> both v7x TCs
    tc = _pick_tc(T, Bp, hp)
    Tp = _round_up(T, tc)

    h_tm = feats_bt.transpose(1, 0, 2)       # (T, B, Hp) time-major, bf16
    h_tm = jnp.pad(h_tm, ((0, Tp - T), (0, Bp - B), (0, 0)))

    lens_p = jnp.pad(lengths.astype(jnp.int32), (0, Bp - B))   # pad rows: len 0
    t_idx = jnp.arange(Tp, dtype=jnp.int32)
    mask_tm = (t_idx[:, None] < lens_p[None, :]).astype(jnp.float32)[..., None]

    for l in range(num_layers):
        gx = matmul_bias_act(
            h_tm.reshape(Tp * Bp, hp),
            params[f"gru{l}_wih"], params[f"gru{l}_bih"],
            act="none", out_dtype=jnp.bfloat16,
        ).reshape(Tp, Bp, 3 * hp)
        h_tm = gru_layer(gx, mask_tm, params[f"gru{l}_whh"],
                         params[f"gru{l}_bhh"], hp, tb, tc)
    return h_tm, Tp, Bp


def deepspeech2_forward(x, lengths, params, num_layers, hidden_dim, vocab_size):
    hp = _round_up(hidden_dim, 128)
    vp = _round_up(vocab_size, 128)
    B = x.shape[0]
    if lengths is None:
        lengths = jnp.full((B,), x.shape[1], dtype=jnp.int32)

    feats, lengths2 = conv_subsampling(x, lengths, params, hp)
    T2 = feats.shape[1]
    h_tm, Tp, Bp = gru_body(feats, lengths2, params, num_layers, hp)

    logits = matmul_bias_act(
        h_tm.reshape(Tp * Bp, hp), params["head_w"], params["head_b"],
        act="none", out_dtype=jnp.float32,
    ).reshape(Tp, Bp, vp)
    logits = logits.transpose(1, 0, 2)[:B, :T2, :vocab_size]  # strip pad once
    return logits, lengths2


# ----------------------------------------------------------------------------
# Deterministic parameter init (PyTorch-style uniform(-1/sqrt(fan_in))).
# Weights are stored pre-padded + bf16 (MXU operands); biases are (1, N) f32
# pre-padded.  GRU gate g occupies columns [g*Hp, g*Hp + hidden).
# ----------------------------------------------------------------------------
def init_params(key, feature_dim, num_rnn_layers, hidden_dim, vocab_size):
    keys = iter(jax.random.split(key, 256))

    def u(shape, fan_in):
        bound = 1.0 / math.sqrt(fan_in)
        return jax.random.uniform(next(keys), shape, minval=-bound, maxval=bound,
                                  dtype=jnp.float32)

    C = hidden_dim
    hp = _round_up(hidden_dim, 128)
    vp = _round_up(vocab_size, 128)
    F2 = _sub_len(_sub_len(feature_dim))
    p = {}

    # conv1: rows (kh,kw,cin=1) -> 9 taps, zero-padded to CONV1_KP rows.
    w = jnp.zeros((CONV1_KP, hp), jnp.float32)
    w = w.at[:9, :C].set(u((9, C), 1 * 9))
    p["conv1_w"] = w.astype(jnp.bfloat16)
    b = jnp.zeros((1, hp), jnp.float32).at[0, :C].set(u((C,), 1 * 9))
    p["conv1_b"] = b

    # conv2: rows ordered (kh, kw, cin in [0, Hp)), real cin < C.
    w = jnp.zeros((9 * hp, hp), jnp.float32)
    for t in range(9):
        w = w.at[t * hp:t * hp + C, :C].set(u((C, C), C * 9))
    p["conv2_w"] = w.astype(jnp.bfloat16)
    b = jnp.zeros((1, hp), jnp.float32).at[0, :C].set(u((C,), C * 9))
    p["conv2_b"] = b

    # proj: rows ordered (freq f, channel c in [0, Hp)), Linear(F2*C -> hidden)
    w = jnp.zeros((F2 * hp, hp), jnp.float32)
    for f in range(F2):
        w = w.at[f * hp:f * hp + C, :hidden_dim].set(
            u((C, hidden_dim), F2 * C))
    p["proj_w"] = w.astype(jnp.bfloat16)
    b = jnp.zeros((1, hp), jnp.float32).at[0, :hidden_dim].set(
        u((hidden_dim,), F2 * C))
    p["proj_b"] = b

    def pack_gru_w(in_dim, fan_in):
        w = jnp.zeros((hp, 3 * hp), jnp.float32)
        for g in range(3):   # PyTorch gate order: r, z, n
            w = w.at[:in_dim, g * hp:g * hp + hidden_dim].set(
                u((in_dim, hidden_dim), fan_in))
        return w.astype(jnp.bfloat16)

    def pack_gru_b(fan_in):
        b = jnp.zeros((1, 3 * hp), jnp.float32)
        for g in range(3):
            b = b.at[0, g * hp:g * hp + hidden_dim].set(u((hidden_dim,), fan_in))
        return b

    for l in range(num_rnn_layers):
        p[f"gru{l}_wih"] = pack_gru_w(hidden_dim, hidden_dim)
        p[f"gru{l}_whh"] = pack_gru_w(hidden_dim, hidden_dim)
        p[f"gru{l}_bih"] = pack_gru_b(hidden_dim)
        p[f"gru{l}_bhh"] = pack_gru_b(hidden_dim)

    w = jnp.zeros((hp, vp), jnp.float32)
    w = w.at[:hidden_dim, :vocab_size].set(
        u((hidden_dim, vocab_size), hidden_dim))
    p["head_w"] = w.astype(jnp.bfloat16)
    b = jnp.zeros((1, vp), jnp.float32).at[0, :vocab_size].set(
        u((vocab_size,), hidden_dim))
    p["head_b"] = b
    return p


if __name__ == "__main__":
    batch, seq_len, feature_dim = 2, 16, 16
    num_rnn_layers, hidden_dim, vocab_size = 2, 32, 12

    key = jax.random.PRNGKey(0)
    kp, kx = jax.random.split(key)
    params = init_params(kp, feature_dim, num_rnn_layers, hidden_dim, vocab_size)

    x = jax.random.normal(kx, (batch, seq_len, feature_dim), dtype=jnp.float32)
    lengths = jnp.array([16, 12], dtype=jnp.int32)

    forward = jax.jit(functools.partial(
        deepspeech2_forward, num_layers=num_rnn_layers,
        hidden_dim=hidden_dim, vocab_size=vocab_size))

    logits, out_lengths = forward(x, lengths, params)
    jax.block_until_ready(logits)
    jax.block_until_ready(out_lengths)

    assert logits.shape == (batch, seq_len // 4, vocab_size), logits.shape
    assert out_lengths.shape == (batch,), out_lengths.shape
    assert bool(jnp.all(jnp.isfinite(logits)))
    print("KERNEL_OK")
</pallas_src>

<mosaic_0001>
module attributes {stable_mosaic.version = 11 : i64} {
  func.func @_mm_kernel_single(%arg0: i32, %arg1: i32, %arg2: i32, %arg3: memref<128x16xbf16, #tpu.memory_space<vmem>>, %arg4: memref<16x128xbf16, #tpu.memory_space<vmem>>, %arg5: memref<1x128xf32, #tpu.memory_space<vmem>>, %arg6: memref<128x128xbf16, #tpu.memory_space<vmem>>) attributes {dimension_semantics = [#tpu.dimension_semantics<parallel>, #tpu.dimension_semantics<parallel>, #tpu.dimension_semantics<arbitrary>], iteration_bounds = array<i64: 1, 1, 1>, scalar_prefetch = 0 : i64, scratch_operands = 0 : i64, tpu.core_type = #tpu.core_type<tc>, window_params = [{transform_indices = @transform_0, window_bounds = array<i64: 128, 16>}, {transform_indices = @transform_1, window_bounds = array<i64: 16, 128>}, {transform_indices = @transform_2, window_bounds = array<i64: 1, 128>}, {transform_indices = @transform_3, window_bounds = array<i64: 128, 128>}]} {
    %c0 = arith.constant 0 : index
    %c0_0 = arith.constant 0 : index
    %0 = vector.load %arg3[%c0, %c0_0] : memref<128x16xbf16, #tpu.memory_space<vmem>>, vector<128x16xbf16>
    %c0_1 = arith.constant 0 : index
    %c0_2 = arith.constant 0 : index
    %1 = vector.load %arg4[%c0_1, %c0_2] : memref<16x128xbf16, #tpu.memory_space<vmem>>, vector<16x128xbf16>
    %cst = arith.constant dense<0.000000e+00> : vector<128x128xf32>
    %2 = tpu.matmul %0, %1, %cst {dimension_numbers = #tpu.dot_dimension_numbers<[1], [0], [0], [1], [0, 0, 1, 1], [], []>} : vector<128x16xbf16>, vector<16x128xbf16>, vector<128x128xf32> -> vector<128x128xf32>
    %c0_3 = arith.constant 0 : index
    %c0_4 = arith.constant 0 : index
    %3 = vector.load %arg5[%c0_3, %c0_4] : memref<1x128xf32, #tpu.memory_space<vmem>>, vector<1x128xf32>
    %4 = vector.broadcast %3 : vector<1x128xf32> to vector<128x128xf32>
    %5 = arith.addf %2, %4 : vector<128x128xf32>
    %cst_5 = arith.constant 0.000000e+00 : f32
    %6 = vector.broadcast %cst_5 : f32 to vector<128x128xf32>
    %7 = arith.maximumf %5, %6 : vector<128x128xf32>
    %8 = arith.truncf %7 : vector<128x128xf32> to vector<128x128xbf16>
    %c0_6 = arith.constant 0 : index
    %c0_7 = arith.constant 0 : index
    %9 = vector.load %arg6[%c0_6, %c0_7] : memref<128x128xbf16, #tpu.memory_space<vmem>>, vector<128x128xbf16>
    tpu.vector_store %arg6[%c0_6, %c0_7], %8 {strides = array<i32>} : memref<128x128xbf16, #tpu.memory_space<vmem>>, vector<128x128xbf16>,
    return
  }
  func.func @transform_0(%arg0: i32, %arg1: i32, %arg2: i32) -> (i32, i32) {
    %c0_i32 = arith.constant 0 : i32
    return %arg0, %arg2 : i32, i32
  }
  func.func @transform_1(%arg0: i32, %arg1: i32, %arg2: i32) -> (i32, i32) {
    %c0_i32 = arith.constant 0 : i32
    return %arg2, %arg1 : i32, i32
  }
  func.func @transform_2(%arg0: i32, %arg1: i32, %arg2: i32) -> (i32, i32) {
    %c0_i32 = arith.constant 0 : i32
    %c0_i32_0 = arith.constant 0 : i32
    return %c0_i32, %arg1 : i32, i32
  }
  func.func @transform_3(%arg0: i32, %arg1: i32, %arg2: i32) -> (i32, i32) {
    %c0_i32 = arith.constant 0 : i32
    return %arg0, %arg1 : i32, i32
  }
}

module attributes {stable_mosaic.version = 11 : i64} {
  func.func @_mm_kernel_lowout(%arg0: i32, %arg1: i32, %arg2: i32, %arg3: memref<32x384xbf16, #tpu.memory_space<vmem>>, %arg4: memref<384x128xbf16, #tpu.memory_space<vmem>>, %arg5: memref<1x128xf32, #tpu.memory_space<vmem>>, %arg6: memref<32x128xbf16, #tpu.memory_space<vmem>>, %arg7: memref<32x128xf32, #tpu.memory_space<vmem>>) attributes {dimension_semantics = [#tpu.dimension_semantics<parallel>, #tpu.dimension_semantics<parallel>, #tpu.dimension_semantics<arbitrary>], iteration_bounds = array<i64: 1, 1, 3>, scalar_prefetch = 0 : i64, scratch_operands = 1 : i64, tpu.core_type = #tpu.core_type<tc>, window_params = [{transform_indices = @transform_0, window_bounds = array<i64: 32, 384>}, {transform_indices = @transform_1, window_bounds = array<i64: 384, 128>}, {transform_indices = @transform_2, window_bounds = array<i64: 1, 128>}, {transform_indices = @transform_3, window_bounds = array<i64: 32, 128>}]} {
    %c0_i32 = arith.constant 0 : i32
    %0 = arith.cmpi eq, %arg2, %c0_i32 : i32
    %1 = arith.extui %0 : i1 to i32
    %c0_i32_0 = arith.constant 0 : i32
    %2 = arith.cmpi ne, %1, %c0_i32_0 : i32
    scf.if %2 {
      %cst_9 = arith.constant 0.000000e+00 : f32
      %12 = vector.broadcast %cst_9 : f32 to vector<32x128xf32>
      %c0_10 = arith.constant 0 : index
      %c0_11 = arith.constant 0 : index
      %13 = vector.load %arg7[%c0_10, %c0_11] : memref<32x128xf32, #tpu.memory_space<vmem>>, vector<32x128xf32>
      tpu.vector_store %arg7[%c0_10, %c0_11], %12 {strides = array<i32>} : memref<32x128xf32, #tpu.memory_space<vmem>>, vector<32x128xf32>,
    } else {
    }
    %c0 = arith.constant 0 : index
    %c0_1 = arith.constant 0 : index
    %3 = vector.load %arg7[%c0, %c0_1] : memref<32x128xf32, #tpu.memory_space<vmem>>, vector<32x128xf32>
    %c0_2 = arith.constant 0 : index
    %c0_3 = arith.constant 0 : index
    %4 = vector.load %arg3[%c0_2, %c0_3] : memref<32x384xbf16, #tpu.memory_space<vmem>>, vector<32x384xbf16>
    %c0_4 = arith.constant 0 : index
    %c0_5 = arith.constant 0 : index
    %5 = vector.load %arg4[%c0_4, %c0_5] : memref<384x128xbf16, #tpu.memory_space<vmem>>, vector<384x128xbf16>
    %cst = arith.constant dense<0.000000e+00> : vector<32x128xf32>
    %6 = tpu.matmul %4, %5, %cst {dimension_numbers = #tpu.dot_dimension_numbers<[1], [0], [0], [1], [0, 0, 1, 1], [], []>} : vector<32x384xbf16>, vector<384x128xbf16>, vector<32x128xf32> -> vector<32x128xf32>
    %7 = arith.addf %3, %6 : vector<32x128xf32>
    %c0_6 = arith.constant 0 : index
    %c0_7 = arith.constant 0 : index
    %8 = vector.load %arg7[%c0_6, %c0_7] : memref<32x128xf32, #tpu.memory_space<vmem>>, vector<32x128xf32>
    tpu.vector_store %arg7[%c0_6, %c0_7], %7 {strides = array<i32>} : memref<32x128xf32, #tpu.memory_space<vmem>>, vector<32x128xf32>,
    %c2_i32 = arith.constant 2 : i32
    %9 = arith.cmpi eq, %arg2, %c2_i32 : i32
    %10 = arith.extui %9 : i1 to i32
    %c0_i32_8 = arith.constant 0 : i32
    %11 = arith.cmpi ne, %10, %c0_i32_8 : i32
    scf.if %11 {
      %c0_9 = arith.constant 0 : index
      %c0_10 = arith.constant 0 : index
      %12 = vector.load %arg7[%c0_9, %c0_10] : memref<32x128xf32, #tpu.memory_space<vmem>>, vector<32x128xf32>
      %c0_11 = arith.constant 0 : index
      %c0_12 = arith.constant 0 : index
      %13 = vector.load %arg5[%c0_11, %c0_12] : memref<1x128xf32, #tpu.memory_space<vmem>>, vector<1x128xf32>
      %14 = vector.broadcast %13 : vector<1x128xf32> to vector<32x128xf32>
      %15 = arith.addf %12, %14 : vector<32x128xf32>
      %cst_13 = arith.constant 0.000000e+00 : f32
      %16 = vector.broadcast %cst_13 : f32 to vector<32x128xf32>
      %17 = arith.maximumf %15, %16 : vector<32x128xf32>
      %18 = arith.truncf %17 : vector<32x128xf32> to vector<32x128xbf16>
      %c0_14 = arith.constant 0 : index
      %c0_15 = arith.constant 0 : index
      %19 = vector.load %arg6[%c0_14, %c0_15] : memref<32x128xbf16, #tpu.memory_space<vmem>>, vector<32x128xbf16>
      tpu.vector_store %arg6[%c0_14, %c0_15], %18 {strides = array<i32>} : memref<32x128xbf16, #tpu.memory_space<vmem>>, vector<32x128xbf16>,
    } else {
    }
    return
  }
  func.func @transform_0(%arg0: i32, %arg1: i32, %arg2: i32) -> (i32, i32) {
    %c0_i32 = arith.constant 0 : i32
    return %arg0, %arg2 : i32, i32
  }
  func.func @transform_1(%arg0: i32, %arg1: i32, %arg2: i32) -> (i32, i32) {
    %c0_i32 = arith.constant 0 : i32
    return %arg2, %arg1 : i32, i32
  }
  func.func @transform_2(%arg0: i32, %arg1: i32, %arg2: i32) -> (i32, i32) {
    %c0_i32 = arith.constant 0 : i32
    %c0_i32_0 = arith.constant 0 : i32
    return %c0_i32, %arg1 : i32, i32
  }
  func.func @transform_3(%arg0: i32, %arg1: i32, %arg2: i32) -> (i32, i32) {
    %c0_i32 = arith.constant 0 : i32
    return %arg0, %arg1 : i32, i32
  }
}

module attributes {stable_mosaic.version = 11 : i64} {
  func.func @_mm_kernel_single(%arg0: i32, %arg1: i32, %arg2: i32, %arg3: memref<8x512xbf16, #tpu.memory_space<vmem>>, %arg4: memref<512x128xbf16, #tpu.memory_space<vmem>>, %arg5: memref<1x128xf32, #tpu.memory_space<vmem>>, %arg6: memref<8x128xbf16, #tpu.memory_space<vmem>>) attributes {dimension_semantics = [#tpu.dimension_semantics<parallel>, #tpu.dimension_semantics<parallel>, #tpu.dimension_semantics<arbitrary>], iteration_bounds = array<i64: 1, 1, 1>, scalar_prefetch = 0 : i64, scratch_operands = 0 : i64, tpu.core_type = #tpu.core_type<tc>, window_params = [{transform_indices = @transform_0, window_bounds = array<i64: 8, 512>}, {transform_indices = @transform_1, window_bounds = array<i64: 512, 128>}, {transform_indices = @transform_2, window_bounds = array<i64: 1, 128>}, {transform_indices = @transform_3, window_bounds = array<i64: 8, 128>}]} {
    %c0 = arith.constant 0 : index
    %c0_0 = arith.constant 0 : index
    %0 = vector.load %arg3[%c0, %c0_0] : memref<8x512xbf16, #tpu.memory_space<vmem>>, vector<8x512xbf16>
    %c0_1 = arith.constant 0 : index
    %c0_2 = arith.constant 0 : index
    %1 = vector.load %arg4[%c0_1, %c0_2] : memref<512x128xbf16, #tpu.memory_space<vmem>>, vector<512x128xbf16>
    %cst = arith.constant dense<0.000000e+00> : vector<8x128xf32>
    %2 = tpu.matmul %0, %1, %cst {dimension_numbers = #tpu.dot_dimension_numbers<[1], [0], [0], [1], [0, 0, 1, 1], [], []>} : vector<8x512xbf16>, vector<512x128xbf16>, vector<8x128xf32> -> vector<8x128xf32>
    %c0_3 = arith.constant 0 : index
    %c0_4 = arith.constant 0 : index
    %3 = vector.load %arg5[%c0_3, %c0_4] : memref<1x128xf32, #tpu.memory_space<vmem>>, vector<1x128xf32>
    %4 = vector.broadcast %3 : vector<1x128xf32> to vector<8x128xf32>
    %5 = arith.addf %2, %4 : vector<8x128xf32>
    %6 = arith.truncf %5 : vector<8x128xf32> to vector<8x128xbf16>
    %c0_5 = arith.constant 0 : index
    %c0_6 = arith.constant 0 : index
    %7 = vector.load %arg6[%c0_5, %c0_6] : memref<8x128xbf16, #tpu.memory_space<vmem>>, vector<8x128xbf16>
    tpu.vector_store %arg6[%c0_5, %c0_6], %6 {strides = array<i32>} : memref<8x128xbf16, #tpu.memory_space<vmem>>, vector<8x128xbf16>,
    return
  }
  func.func @transform_0(%arg0: i32, %arg1: i32, %arg2: i32) -> (i32, i32) {
    %c0_i32 = arith.constant 0 : i32
    return %arg0, %arg2 : i32, i32
  }
  func.func @transform_1(%arg0: i32, %arg1: i32, %arg2: i32) -> (i32, i32) {
    %c0_i32 = arith.constant 0 : i32
    return %arg2, %arg1 : i32, i32
  }
  func.func @transform_2(%arg0: i32, %arg1: i32, %arg2: i32) -> (i32, i32) {
    %c0_i32 = arith.constant 0 : i32
    %c0_i32_0 = arith.constant 0 : i32
    return %c0_i32, %arg1 : i32, i32
  }
  func.func @transform_3(%arg0: i32, %arg1: i32, %arg2: i32) -> (i32, i32) {
    %c0_i32 = arith.constant 0 : i32
    return %arg0, %arg1 : i32, i32
  }
}

module attributes {stable_mosaic.version = 11 : i64} {
  func.func @_mm_kernel_single(%arg0: i32, %arg1: i32, %arg2: i32, %arg3: memref<32x128xbf16, #tpu.memory_space<vmem>>, %arg4: memref<128x384xbf16, #tpu.memory_space<vmem>>, %arg5: memref<1x384xf32, #tpu.memory_space<vmem>>, %arg6: memref<32x384xbf16, #tpu.memory_space<vmem>>) attributes {dimension_semantics = [#tpu.dimension_semantics<parallel>, #tpu.dimension_semantics<parallel>, #tpu.dimension_semantics<arbitrary>], iteration_bounds = array<i64: 1, 1, 1>, scalar_prefetch = 0 : i64, scratch_operands = 0 : i64, tpu.core_type = #tpu.core_type<tc>, window_params = [{transform_indices = @transform_0, window_bounds = array<i64: 32, 128>}, {transform_indices = @transform_1, window_bounds = array<i64: 128, 384>}, {transform_indices = @transform_2, window_bounds = array<i64: 1, 384>}, {transform_indices = @transform_3, window_bounds = array<i64: 32, 384>}]} {
    %c0 = arith.constant 0 : index
    %c0_0 = arith.constant 0 : index
    %0 = vector.load %arg3[%c0, %c0_0] : memref<32x128xbf16, #tpu.memory_space<vmem>>, vector<32x128xbf16>
    %c0_1 = arith.constant 0 : index
    %c0_2 = arith.constant 0 : index
    %1 = vector.load %arg4[%c0_1, %c0_2] : memref<128x384xbf16, #tpu.memory_space<vmem>>, vector<128x384xbf16>
    %cst = arith.constant dense<0.000000e+00> : vector<32x384xf32>
    %2 = tpu.matmul %0, %1, %cst {dimension_numbers = #tpu.dot_dimension_numbers<[1], [0], [0], [1], [0, 0, 1, 1], [], []>} : vector<32x128xbf16>, vector<128x384xbf16>, vector<32x384xf32> -> vector<32x384xf32>
    %c0_3 = arith.constant 0 : index
    %c0_4 = arith.constant 0 : index
    %3 = vector.load %arg5[%c0_3, %c0_4] : memref<1x384xf32, #tpu.memory_space<vmem>>, vector<1x384xf32>
    %4 = vector.broadcast %3 : vector<1x384xf32> to vector<32x384xf32>
    %5 = arith.addf %2, %4 : vector<32x384xf32>
    %6 = arith.truncf %5 : vector<32x384xf32> to vector<32x384xbf16>
    %c0_5 = arith.constant 0 : index
    %c0_6 = arith.constant 0 : index
    %7 = vector.load %arg6[%c0_5, %c0_6] : memref<32x384xbf16, #tpu.memory_space<vmem>>, vector<32x384xbf16>
    tpu.vector_store %arg6[%c0_5, %c0_6], %6 {strides = array<i32>} : memref<32x384xbf16, #tpu.memory_space<vmem>>, vector<32x384xbf16>,
    return
  }
  func.func @transform_0(%arg0: i32, %arg1: i32, %arg2: i32) -> (i32, i32) {
    %c0_i32 = arith.constant 0 : i32
    return %arg0, %arg2 : i32, i32
  }
  func.func @transform_1(%arg0: i32, %arg1: i32, %arg2: i32) -> (i32, i32) {
    %c0_i32 = arith.constant 0 : i32
    return %arg2, %arg1 : i32, i32
  }
  func.func @transform_2(%arg0: i32, %arg1: i32, %arg2: i32) -> (i32, i32) {
    %c0_i32 = arith.constant 0 : i32
    %c0_i32_0 = arith.constant 0 : i32
    return %c0_i32, %arg1 : i32, i32
  }
  func.func @transform_3(%arg0: i32, %arg1: i32, %arg2: i32) -> (i32, i32) {
    %c0_i32 = arith.constant 0 : i32
    return %arg0, %arg1 : i32, i32
  }
}

module attributes {stable_mosaic.version = 11 : i64} {
  func.func @_gru_chunk_kernel(%arg0: i32, %arg1: i32, %arg2: memref<4x8x384xbf16, #tpu.memory_space<vmem>>, %arg3: memref<4x8x1xf32, #tpu.memory_space<vmem>>, %arg4: memref<128x384xbf16, #tpu.memory_space<vmem>>, %arg5: memref<1x384xf32, #tpu.memory_space<vmem>>, %arg6: memref<4x8x128xbf16, #tpu.memory_space<vmem>>, %arg7: memref<8x128xf32, #tpu.memory_space<vmem>>) attributes {dimension_semantics = [#tpu.dimension_semantics<parallel>, #tpu.dimension_semantics<arbitrary>], iteration_bounds = array<i64: 1, 1>, scalar_prefetch = 0 : i64, scratch_operands = 1 : i64, tpu.core_type = #tpu.core_type<tc>, window_params = [{transform_indices = @transform_0, window_bounds = array<i64: 4, 8, 384>}, {transform_indices = @transform_1, window_bounds = array<i64: 4, 8, 1>}, {pipeline_mode = #tpu.pipeline_mode<synchronous>, transform_indices = @transform_2, window_bounds = array<i64: 128, 384>}, {pipeline_mode = #tpu.pipeline_mode<synchronous>, transform_indices = @transform_3, window_bounds = array<i64: 1, 384>}, {transform_indices = @transform_4, window_bounds = array<i64: 4, 8, 128>}]} {
    %c0_i32 = arith.constant 0 : i32
    %0 = arith.cmpi eq, %arg1, %c0_i32 : i32
    %1 = arith.extui %0 : i1 to i32
    %c0_i32_0 = arith.constant 0 : i32
    %2 = arith.cmpi ne, %1, %c0_i32_0 : i32
    scf.if %2 {
      %cst_52 = arith.constant 0.000000e+00 : f32
      %177 = vector.broadcast %cst_52 : f32 to vector<8x128xf32>
      %c0_53 = arith.constant 0 : index
      %c0_54 = arith.constant 0 : index
      %178 = vector.load %arg7[%c0_53, %c0_54] : memref<8x128xf32, #tpu.memory_space<vmem>>, vector<8x128xf32>
      tpu.vector_store %arg7[%c0_53, %c0_54], %177 {strides = array<i32>} : memref<8x128xf32, #tpu.memory_space<vmem>>, vector<8x128xf32>,
    } else {
    }
    %c0 = arith.constant 0 : index
    %c0_1 = arith.constant 0 : index
    %3 = vector.load %arg7[%c0, %c0_1] : memref<8x128xf32, #tpu.memory_space<vmem>>, vector<8x128xf32>
    %c0_i32_2 = arith.constant 0 : i32
    %4 = arith.index_cast %c0_i32_2 : i32 to index
    %c0_3 = arith.constant 0 : index
    %c0_4 = arith.constant 0 : index
    %5 = vector.load %arg2[%4, %c0_3, %c0_4] : memref<4x8x384xbf16, #tpu.memory_space<vmem>>, vector<1x8x384xbf16>
    %6 = vector.shape_cast %5 : vector<1x8x384xbf16> to vector<8x384xbf16>
    %7 = arith.index_cast %c0_i32_2 : i32 to index
    %c0_5 = arith.constant 0 : index
    %c0_6 = arith.constant 0 : index
    %8 = vector.load %arg3[%7, %c0_5, %c0_6] : memref<4x8x1xf32, #tpu.memory_space<vmem>>, vector<1x8x1xf32>
    %9 = vector.shape_cast %8 : vector<1x8x1xf32> to vector<8x1xf32>
    %10 = arith.truncf %3 : vector<8x128xf32> to vector<8x128xbf16>
    %c0_7 = arith.constant 0 : index
    %c0_8 = arith.constant 0 : index
    %11 = vector.load %arg4[%c0_7, %c0_8] : memref<128x384xbf16, #tpu.memory_space<vmem>>, vector<128x384xbf16>
    %cst = arith.constant dense<0.000000e+00> : vector<8x384xf32>
    %12 = tpu.matmul %10, %11, %cst {dimension_numbers = #tpu.dot_dimension_numbers<[1], [0], [0], [1], [0, 0, 1, 1], [], []>} : vector<8x128xbf16>, vector<128x384xbf16>, vector<8x384xf32> -> vector<8x384xf32>
    %c0_9 = arith.constant 0 : index
    %c0_10 = arith.constant 0 : index
    %13 = vector.load %arg5[%c0_9, %c0_10] : memref<1x384xf32, #tpu.memory_space<vmem>>, vector<1x384xf32>
    %14 = vector.broadcast %13 : vector<1x384xf32> to vector<8x384xf32>
    %15 = arith.addf %12, %14 : vector<8x384xf32>
    %16 = vector.extract_strided_slice %6 {offsets = [0, 0], sizes = [8, 256], strides = [1, 1]} : vector<8x384xbf16> to vector<8x256xbf16>
    %17 = vector.extract_strided_slice %15 {offsets = [0, 0], sizes = [8, 256], strides = [1, 1]} : vector<8x384xf32> to vector<8x256xf32>
    %18 = arith.extf %16 : vector<8x256xbf16> to vector<8x256xf32>
    %19 = arith.addf %18, %17 : vector<8x256xf32>
    %20 = arith.negf %19 : vector<8x256xf32>
    %21 = math.exp %20 : vector<8x256xf32>
    %cst_11 = arith.constant 1.000000e+00 : f32
    %22 = vector.broadcast %cst_11 : f32 to vector<8x256xf32>
    %23 = arith.addf %22, %21 : vector<8x256xf32>
    %24 = arith.divf %22, %23 : vector<8x256xf32>
    %25 = vector.extract_strided_slice %24 {offsets = [0, 0], sizes = [8, 128], strides = [1, 1]} : vector<8x256xf32> to vector<8x128xf32>
    %26 = vector.extract_strided_slice %24 {offsets = [0, 128], sizes = [8, 128], strides = [1, 1]} : vector<8x256xf32> to vector<8x128xf32>
    %27 = vector.extract_strided_slice %6 {offsets = [0, 256], sizes = [8, 128], strides = [1, 1]} : vector<8x384xbf16> to vector<8x128xbf16>
    %28 = vector.extract_strided_slice %15 {offsets = [0, 256], sizes = [8, 128], strides = [1, 1]} : vector<8x384xf32> to vector<8x128xf32>
    %29 = arith.mulf %25, %28 : vector<8x128xf32>
    %30 = arith.extf %27 : vector<8x128xbf16> to vector<8x128xf32>
    %31 = arith.addf %30, %29 : vector<8x128xf32>
    %32 = math.tanh %31 : vector<8x128xf32>
    %33 = arith.subf %3, %32 : vector<8x128xf32>
    %34 = arith.mulf %26, %33 : vector<8x128xf32>
    %35 = arith.addf %32, %34 : vector<8x128xf32>
    %36 = vector.broadcast %9 : vector<8x1xf32> to vector<8x128xf32>
    %37 = arith.mulf %36, %35 : vector<8x128xf32>
    %38 = arith.truncf %37 : vector<8x128xf32> to vector<8x128xbf16>
    %39 = arith.index_cast %c0_i32_2 : i32 to index
    %c0_12 = arith.constant 0 : index
    %c0_13 = arith.constant 0 : index
    %40 = vector.load %arg6[%39, %c0_12, %c0_13] : memref<4x8x128xbf16, #tpu.memory_space<vmem>>, vector<1x8x128xbf16>
    %41 = vector.shape_cast %40 : vector<1x8x128xbf16> to vector<8x128xbf16>
    %42 = vector.shape_cast %38 : vector<8x128xbf16> to vector<1x8x128xbf16>
    tpu.vector_store %arg6[%39, %c0_12, %c0_13], %42 {strides = array<i32>} : memref<4x8x128xbf16, #tpu.memory_space<vmem>>, vector<1x8x128xbf16>,
    %43 = arith.subf %35, %3 : vector<8x128xf32>
    %44 = vector.broadcast %9 : vector<8x1xf32> to vector<8x128xf32>
    %45 = arith.mulf %44, %43 : vector<8x128xf32>
    %46 = arith.addf %3, %45 : vector<8x128xf32>
    %c1_i32 = arith.constant 1 : i32
    %47 = arith.index_cast %c1_i32 : i32 to index
    %c0_14 = arith.constant 0 : index
    %c0_15 = arith.constant 0 : index
    %48 = vector.load %arg2[%47, %c0_14, %c0_15] : memref<4x8x384xbf16, #tpu.memory_space<vmem>>, vector<1x8x384xbf16>
    %49 = vector.shape_cast %48 : vector<1x8x384xbf16> to vector<8x384xbf16>
    %50 = arith.index_cast %c1_i32 : i32 to index
    %c0_16 = arith.constant 0 : index
    %c0_17 = arith.constant 0 : index
    %51 = vector.load %arg3[%50, %c0_16, %c0_17] : memref<4x8x1xf32, #tpu.memory_space<vmem>>, vector<1x8x1xf32>
    %52 = vector.shape_cast %51 : vector<1x8x1xf32> to vector<8x1xf32>
    %53 = arith.truncf %46 : vector<8x128xf32> to vector<8x128xbf16>
    %c0_18 = arith.constant 0 : index
    %c0_19 = arith.constant 0 : index
    %54 = vector.load %arg4[%c0_18, %c0_19] : memref<128x384xbf16, #tpu.memory_space<vmem>>, vector<128x384xbf16>
    %cst_20 = arith.constant dense<0.000000e+00> : vector<8x384xf32>
    %55 = tpu.matmul %53, %54, %cst_20 {dimension_numbers = #tpu.dot_dimension_numbers<[1], [0], [0], [1], [0, 0, 1, 1], [], []>} : vector<8x128xbf16>, vector<128x384xbf16>, vector<8x384xf32> -> vector<8x384xf32>
    %c0_21 = arith.constant 0 : index
    %c0_22 = arith.constant 0 : index
    %56 = vector.load %arg5[%c0_21, %c0_22] : memref<1x384xf32, #tpu.memory_space<vmem>>, vector<1x384xf32>
    %57 = vector.broadcast %56 : vector<1x384xf32> to vector<8x384xf32>
    %58 = arith.addf %55, %57 : vector<8x384xf32>
    %59 = vector.extract_strided_slice %49 {offsets = [0, 0], sizes = [8, 256], strides = [1, 1]} : vector<8x384xbf16> to vector<8x256xbf16>
    %60 = vector.extract_strided_slice %58 {offsets = [0, 0], sizes = [8, 256], strides = [1, 1]} : vector<8x384xf32> to vector<8x256xf32>
    %61 = arith.extf %59 : vector<8x256xbf16> to vector<8x256xf32>
    %62 = arith.addf %61, %60 : vector<8x256xf32>
    %63 = arith.negf %62 : vector<8x256xf32>
    %64 = math.exp %63 : vector<8x256xf32>
    %cst_23 = arith.constant 1.000000e+00 : f32
    %65 = vector.broadcast %cst_23 : f32 to vector<8x256xf32>
    %66 = arith.addf %65, %64 : vector<8x256xf32>
    %67 = arith.divf %65, %66 : vector<8x256xf32>
    %68 = vector.extract_strided_slice %67 {offsets = [0, 0], sizes = [8, 128], strides = [1, 1]} : vector<8x256xf32> to vector<8x128xf32>
    %69 = vector.extract_strided_slice %67 {offsets = [0, 128], sizes = [8, 128], strides = [1, 1]} : vector<8x256xf32> to vector<8x128xf32>
    %70 = vector.extract_strided_slice %49 {offsets = [0, 256], sizes = [8, 128], strides = [1, 1]} : vector<8x384xbf16> to vector<8x128xbf16>
    %71 = vector.extract_strided_slice %58 {offsets = [0, 256], sizes = [8, 128], strides = [1, 1]} : vector<8x384xf32> to vector<8x128xf32>
    %72 = arith.mulf %68, %71 : vector<8x128xf32>
    %73 = arith.extf %70 : vector<8x128xbf16> to vector<8x128xf32>
    %74 = arith.addf %73, %72 : vector<8x128xf32>
    %75 = math.tanh %74 : vector<8x128xf32>
    %76 = arith.subf %46, %75 : vector<8x128xf32>
    %77 = arith.mulf %69, %76 : vector<8x128xf32>
    %78 = arith.addf %75, %77 : vector<8x128xf32>
    %79 = vector.broadcast %52 : vector<8x1xf32> to vector<8x128xf32>
    %80 = arith.mulf %79, %78 : vector<8x128xf32>
    %81 = arith.truncf %80 : vector<8x128xf32> to vector<8x128xbf16>
    %82 = arith.index_cast %c1_i32 : i32 to index
    %c0_24 = arith.constant 0 : index
    %c0_25 = arith.constant 0 : index
    %83 = vector.load %arg6[%82, %c0_24, %c0_25] : memref<4x8x128xbf16, #tpu.memory_space<vmem>>, vector<1x8x128xbf16>
    %84 = vector.shape_cast %83 : vector<1x8x128xbf16> to vector<8x128xbf16>
    %85 = vector.shape_cast %81 : vector<8x128xbf16> to vector<1x8x128xbf16>
    tpu.vector_store %arg6[%82, %c0_24, %c0_25], %85 {strides = array<i32>} : memref<4x8x128xbf16, #tpu.memory_space<vmem>>, vector<1x8x128xbf16>,
    %86 = arith.subf %78, %46 : vector<8x128xf32>
    %87 = vector.broadcast %52 : vector<8x1xf32> to vector<8x128xf32>
    %88 = arith.mulf %87, %86 : vector<8x128xf32>
    %89 = arith.addf %46, %88 : vector<8x128xf32>
    %c2_i32 = arith.constant 2 : i32
    %90 = arith.index_cast %c2_i32 : i32 to index
    %c0_26 = arith.constant 0 : index
    %c0_27 = arith.constant 0 : index
    %91 = vector.load %arg2[%90, %c0_26, %c0_27] : memref<4x8x384xbf16, #tpu.memory_space<vmem>>, vector<1x8x384xbf16>
    %92 = vector.shape_cast %91 : vector<1x8x384xbf16> to vector<8x384xbf16>
    %93 = arith.index_cast %c2_i32 : i32 to index
    %c0_28 = arith.constant 0 : index
    %c0_29 = arith.constant 0 : index
    %94 = vector.load %arg3[%93, %c0_28, %c0_29] : memref<4x8x1xf32, #tpu.memory_space<vmem>>, vector<1x8x1xf32>
    %95 = vector.shape_cast %94 : vector<1x8x1xf32> to vector<8x1xf32>
    %96 = arith.truncf %89 : vector<8x128xf32> to vector<8x128xbf16>
    %c0_30 = arith.constant 0 : index
    %c0_31 = arith.constant 0 : index
    %97 = vector.load %arg4[%c0_30, %c0_31] : memref<128x384xbf16, #tpu.memory_space<vmem>>, vector<128x384xbf16>
    %cst_32 = arith.constant dense<0.000000e+00> : vector<8x384xf32>
    %98 = tpu.matmul %96, %97, %cst_32 {dimension_numbers = #tpu.dot_dimension_numbers<[1], [0], [0], [1], [0, 0, 1, 1], [], []>} : vector<8x128xbf16>, vector<128x384xbf16>, vector<8x384xf32> -> vector<8x384xf32>
    %c0_33 = arith.constant 0 : index
    %c0_34 = arith.constant 0 : index
    %99 = vector.load %arg5[%c0_33, %c0_34] : memref<1x384xf32, #tpu.memory_space<vmem>>, vector<1x384xf32>
    %100 = vector.broadcast %99 : vector<1x384xf32> to vector<8x384xf32>
    %101 = arith.addf %98, %100 : vector<8x384xf32>
    %102 = vector.extract_strided_slice %92 {offsets = [0, 0], sizes = [8, 256], strides = [1, 1]} : vector<8x384xbf16> to vector<8x256xbf16>
    %103 = vector.extract_strided_slice %101 {offsets = [0, 0], sizes = [8, 256], strides = [1, 1]} : vector<8x384xf32> to vector<8x256xf32>
    %104 = arith.extf %102 : vector<8x256xbf16> to vector<8x256xf32>
    %105 = arith.addf %104, %103 : vector<8x256xf32>
    %106 = arith.negf %105 : vector<8x256xf32>
    %107 = math.exp %106 : vector<8x256xf32>
    %cst_35 = arith.constant 1.000000e+00 : f32
    %108 = vector.broadcast %cst_35 : f32 to vector<8x256xf32>
    %109 = arith.addf %108, %107 : vector<8x256xf32>
    %110 = arith.divf %108, %109 : vector<8x256xf32>
    %111 = vector.extract_strided_slice %110 {offsets = [0, 0], sizes = [8, 128], strides = [1, 1]} : vector<8x256xf32> to vector<8x128xf32>
    %112 = vector.extract_strided_slice %110 {offsets = [0, 128], sizes = [8, 128], strides = [1, 1]} : vector<8x256xf32> to vector<8x128xf32>
    %113 = vector.extract_strided_slice %92 {offsets = [0, 256], sizes = [8, 128], strides = [1, 1]} : vector<8x384xbf16> to vector<8x128xbf16>
    %114 = vector.extract_strided_slice %101 {offsets = [0, 256], sizes = [8, 128], strides = [1, 1]} : vector<8x384xf32> to vector<8x128xf32>
    %115 = arith.mulf %111, %114 : vector<8x128xf32>
    %116 = arith.extf %113 : vector<8x128xbf16> to vector<8x128xf32>
    %117 = arith.addf %116, %115 : vector<8x128xf32>
    %118 = math.tanh %117 : vector<8x128xf32>
    %119 = arith.subf %89, %118 : vector<8x128xf32>
    %120 = arith.mulf %112, %119 : vector<8x128xf32>
    %121 = arith.addf %118, %120 : vector<8x128xf32>
    %122 = vector.broadcast %95 : vector<8x1xf32> to vector<8x128xf32>
    %123 = arith.mulf %122, %121 : vector<8x128xf32>
    %124 = arith.truncf %123 : vector<8x128xf32> to vector<8x128xbf16>
    %125 = arith.index_cast %c2_i32 : i32 to index
    %c0_36 = arith.constant 0 : index
    %c0_37 = arith.constant 0 : index
    %126 = vector.load %arg6[%125, %c0_36, %c0_37] : memref<4x8x128xbf16, #tpu.memory_space<vmem>>, vector<1x8x128xbf16>
    %127 = vector.shape_cast %126 : vector<1x8x128xbf16> to vector<8x128xbf16>
    %128 = vector.shape_cast %124 : vector<8x128xbf16> to vector<1x8x128xbf16>
    tpu.vector_store %arg6[%125, %c0_36, %c0_37], %128 {strides = array<i32>} : memref<4x8x128xbf16, #tpu.memory_space<vmem>>, vector<1x8x128xbf16>,
    %129 = arith.subf %121, %89 : vector<8x128xf32>
    %130 = vector.broadcast %95 : vector<8x1xf32> to vector<8x128xf32>
    %131 = arith.mulf %130, %129 : vector<8x128xf32>
    %132 = arith.addf %89, %131 : vector<8x128xf32>
    %c3_i32 = arith.constant 3 : i32
    %133 = arith.index_cast %c3_i32 : i32 to index
    %c0_38 = arith.constant 0 : index
    %c0_39 = arith.constant 0 : index
    %134 = vector.load %arg2[%133, %c0_38, %c0_39] : memref<4x8x384xbf16, #tpu.memory_space<vmem>>, vector<1x8x384xbf16>
    %135 = vector.shape_cast %134 : vector<1x8x384xbf16> to vector<8x384xbf16>
    %136 = arith.index_cast %c3_i32 : i32 to index
    %c0_40 = arith.constant 0 : index
    %c0_41 = arith.constant 0 : index
    %137 = vector.load %arg3[%136, %c0_40, %c0_41] : memref<4x8x1xf32, #tpu.memory_space<vmem>>, vector<1x8x1xf32>
    %138 = vector.shape_cast %137 : vector<1x8x1xf32> to vector<8x1xf32>
    %139 = arith.truncf %132 : vector<8x128xf32> to vector<8x128xbf16>
    %c0_42 = arith.constant 0 : index
    %c0_43 = arith.constant 0 : index
    %140 = vector.load %arg4[%c0_42, %c0_43] : memref<128x384xbf16, #tpu.memory_space<vmem>>, vector<128x384xbf16>
    %cst_44 = arith.constant dense<0.000000e+00> : vector<8x384xf32>
    %141 = tpu.matmul %139, %140, %cst_44 {dimension_numbers = #tpu.dot_dimension_numbers<[1], [0], [0], [1], [0, 0, 1, 1], [], []>} : vector<8x128xbf16>, vector<128x384xbf16>, vector<8x384xf32> -> vector<8x384xf32>
    %c0_45 = arith.constant 0 : index
    %c0_46 = arith.constant 0 : index
    %142 = vector.load %arg5[%c0_45, %c0_46] : memref<1x384xf32, #tpu.memory_space<vmem>>, vector<1x384xf32>
    %143 = vector.broadcast %142 : vector<1x384xf32> to vector<8x384xf32>
    %144 = arith.addf %141, %143 : vector<8x384xf32>
    %145 = vector.extract_strided_slice %135 {offsets = [0, 0], sizes = [8, 256], strides = [1, 1]} : vector<8x384xbf16> to vector<8x256xbf16>
    %146 = vector.extract_strided_slice %144 {offsets = [0, 0], sizes = [8, 256], strides = [1, 1]} : vector<8x384xf32> to vector<8x256xf32>
    %147 = arith.extf %145 : vector<8x256xbf16> to vector<8x256xf32>
    %148 = arith.addf %147, %146 : vector<8x256xf32>
    %149 = arith.negf %148 : vector<8x256xf32>
    %150 = math.exp %149 : vector<8x256xf32>
    %cst_47 = arith.constant 1.000000e+00 : f32
    %151 = vector.broadcast %cst_47 : f32 to vector<8x256xf32>
    %152 = arith.addf %151, %150 : vector<8x256xf32>
    %153 = arith.divf %151, %152 : vector<8x256xf32>
    %154 = vector.extract_strided_slice %153 {offsets = [0, 0], sizes = [8, 128], strides = [1, 1]} : vector<8x256xf32> to vector<8x128xf32>
    %155 = vector.extract_strided_slice %153 {offsets = [0, 128], sizes = [8, 128], strides = [1, 1]} : vector<8x256xf32> to vector<8x128xf32>
    %156 = vector.extract_strided_slice %135 {offsets = [0, 256], sizes = [8, 128], strides = [1, 1]} : vector<8x384xbf16> to vector<8x128xbf16>
    %157 = vector.extract_strided_slice %144 {offsets = [0, 256], sizes = [8, 128], strides = [1, 1]} : vector<8x384xf32> to vector<8x128xf32>
    %158 = arith.mulf %154, %157 : vector<8x128xf32>
    %159 = arith.extf %156 : vector<8x128xbf16> to vector<8x128xf32>
    %160 = arith.addf %159, %158 : vector<8x128xf32>
    %161 = math.tanh %160 : vector<8x128xf32>
    %162 = arith.subf %132, %161 : vector<8x128xf32>
    %163 = arith.mulf %155, %162 : vector<8x128xf32>
    %164 = arith.addf %161, %163 : vector<8x128xf32>
    %165 = vector.broadcast %138 : vector<8x1xf32> to vector<8x128xf32>
    %166 = arith.mulf %165, %164 : vector<8x128xf32>
    %167 = arith.truncf %166 : vector<8x128xf32> to vector<8x128xbf16>
    %168 = arith.index_cast %c3_i32 : i32 to index
    %c0_48 = arith.constant 0 : index
    %c0_49 = arith.constant 0 : index
    %169 = vector.load %arg6[%168, %c0_48, %c0_49] : memref<4x8x128xbf16, #tpu.memory_space<vmem>>, vector<1x8x128xbf16>
    %170 = vector.shape_cast %169 : vector<1x8x128xbf16> to vector<8x128xbf16>
    %171 = vector.shape_cast %167 : vector<8x128xbf16> to vector<1x8x128xbf16>
    tpu.vector_store %arg6[%168, %c0_48, %c0_49], %171 {strides = array<i32>} : memref<4x8x128xbf16, #tpu.memory_space<vmem>>, vector<1x8x128xbf16>,
    %172 = arith.subf %164, %132 : vector<8x128xf32>
    %173 = vector.broadcast %138 : vector<8x1xf32> to vector<8x128xf32>
    %174 = arith.mulf %173, %172 : vector<8x128xf32>
    %175 = arith.addf %132, %174 : vector<8x128xf32>
    %c4_i32 = arith.constant 4 : i32
    %c0_50 = arith.constant 0 : index
    %c0_51 = arith.constant 0 : index
    %176 = vector.load %arg7[%c0_50, %c0_51] : memref<8x128xf32, #tpu.memory_space<vmem>>, vector<8x128xf32>
    tpu.vector_store %arg7[%c0_50, %c0_51], %175 {strides = array<i32>} : memref<8x128xf32, #tpu.memory_space<vmem>>, vector<8x128xf32>,
    return
  }
  func.func @transform_0(%arg0: i32, %arg1: i32) -> (i32, i32, i32) {
    %c0_i32 = arith.constant 0 : i32
    %c0_i32_0 = arith.constant 0 : i32
    return %arg1, %arg0, %c0_i32 : i32, i32, i32
  }
  func.func @transform_1(%arg0: i32, %arg1: i32) -> (i32, i32, i32) {
    %c0_i32 = arith.constant 0 : i32
    %c0_i32_0 = arith.constant 0 : i32
    return %arg1, %arg0, %c0_i32 : i32, i32, i32
  }
  func.func @transform_2(%arg0: i32, %arg1: i32) -> (i32, i32) {
    %c0_i32 = arith.constant 0 : i32
    %c0_i32_0 = arith.constant 0 : i32
    %c0_i32_1 = arith.constant 0 : i32
    return %c0_i32, %c0_i32_0 : i32, i32
  }
  func.func @transform_3(%arg0: i32, %arg1: i32) -> (i32, i32) {
    %c0_i32 = arith.constant 0 : i32
    %c0_i32_0 = arith.constant 0 : i32
    %c0_i32_1 = arith.constant 0 : i32
    return %c0_i32, %c0_i32_0 : i32, i32
  }
  func.func @transform_4(%arg0: i32, %arg1: i32) -> (i32, i32, i32) {
    %c0_i32 = arith.constant 0 : i32
    %c0_i32_0 = arith.constant 0 : i32
    return %arg1, %arg0, %c0_i32 : i32, i32, i32
  }
}

module attributes {stable_mosaic.version = 11 : i64} {
  func.func @_mm_kernel_single(%arg0: i32, %arg1: i32, %arg2: i32, %arg3: memref<32x128xbf16, #tpu.memory_space<vmem>>, %arg4: memref<128x128xbf16, #tpu.memory_space<vmem>>, %arg5: memref<1x128xf32, #tpu.memory_space<vmem>>, %arg6: memref<32x128xf32, #tpu.memory_space<vmem>>) attributes {dimension_semantics = [#tpu.dimension_semantics<parallel>, #tpu.dimension_semantics<parallel>, #tpu.dimension_semantics<arbitrary>], iteration_bounds = array<i64: 1, 1, 1>, scalar_prefetch = 0 : i64, scratch_operands = 0 : i64, tpu.core_type = #tpu.core_type<tc>, window_params = [{transform_indices = @transform_0, window_bounds = array<i64: 32, 128>}, {transform_indices = @transform_1, window_bounds = array<i64: 128, 128>}, {transform_indices = @transform_2, window_bounds = array<i64: 1, 128>}, {transform_indices = @transform_3, window_bounds = array<i64: 32, 128>}]} {
    %c0 = arith.constant 0 : index
    %c0_0 = arith.constant 0 : index
    %0 = vector.load %arg3[%c0, %c0_0] : memref<32x128xbf16, #tpu.memory_space<vmem>>, vector<32x128xbf16>
    %c0_1 = arith.constant 0 : index
    %c0_2 = arith.constant 0 : index
    %1 = vector.load %arg4[%c0_1, %c0_2] : memref<128x128xbf16, #tpu.memory_space<vmem>>, vector<128x128xbf16>
    %cst = arith.constant dense<0.000000e+00> : vector<32x128xf32>
    %2 = tpu.matmul %0, %1, %cst {dimension_numbers = #tpu.dot_dimension_numbers<[1], [0], [0], [1], [0, 0, 1, 1], [], []>} : vector<32x128xbf16>, vector<128x128xbf16>, vector<32x128xf32> -> vector<32x128xf32>
    %c0_3 = arith.constant 0 : index
    %c0_4 = arith.constant 0 : index
    %3 = vector.load %arg5[%c0_3, %c0_4] : memref<1x128xf32, #tpu.memory_space<vmem>>, vector<1x128xf32>
    %4 = vector.broadcast %3 : vector<1x128xf32> to vector<32x128xf32>
    %5 = arith.addf %2, %4 : vector<32x128xf32>
    %c0_5 = arith.constant 0 : index
    %c0_6 = arith.constant 0 : index
    %6 = vector.load %arg6[%c0_5, %c0_6] : memref<32x128xf32, #tpu.memory_space<vmem>>, vector<32x128xf32>
    tpu.vector_store %arg6[%c0_5, %c0_6], %5 {strides = array<i32>} : memref<32x128xf32, #tpu.memory_space<vmem>>, vector<32x128xf32>,
    return
  }
  func.func @transform_0(%arg0: i32, %arg1: i32, %arg2: i32) -> (i32, i32) {
    %c0_i32 = arith.constant 0 : i32
    return %arg0, %arg2 : i32, i32
  }
  func.func @transform_1(%arg0: i32, %arg1: i32, %arg2: i32) -> (i32, i32) {
    %c0_i32 = arith.constant 0 : i32
    return %arg2, %arg1 : i32, i32
  }
  func.func @transform_2(%arg0: i32, %arg1: i32, %arg2: i32) -> (i32, i32) {
    %c0_i32 = arith.constant 0 : i32
    %c0_i32_0 = arith.constant 0 : i32
    return %c0_i32, %arg1 : i32, i32
  }
  func.func @transform_3(%arg0: i32, %arg1: i32, %arg2: i32) -> (i32, i32) {
    %c0_i32 = arith.constant 0 : i32
    return %arg0, %arg1 : i32, i32
  }
}

</mosaic_0001>

<llo_original>
// kernel: deepspeech2_forward.9
$region0: #{deepspeech2_forward.9}
  #allocation0 [shape = 'u32[]', space=smem, size = 0x4, offset = 0x4, fixed_abs, tag = 'smem constant byte address 0x4 - core index']
  #allocation1 [shape = 'u32[144,128]{1,0:T(1,128)}', space=vmem, size = 0x12000, scoped, tag = 'internal scratch']
  #allocation2 [shape = 'f32[32,128]{1,0:T(8,128)}', space=vmem, size = 0x4000, scoped, tag = 'scratch operand']
  %s0 = inlined_call_operand.vmem [shape: bf16[32,1152], index: 0, kind: input, shape index: {}]
  %s1 = inlined_call_operand.vmem [shape: bf16[1152,128], index: 1, kind: input, shape index: {}]
  %s2 = inlined_call_operand.vmem [shape: f32[1,128], index: 2, kind: input, shape index: {}]
  %s3 = inlined_call_operand.vmem [shape: bf16[32,128], index: 3, kind: output, shape index: {}]
  %s4 = sld [smem:[#allocation0]]
  $region79: #{deepspeech2_forward.9} parent=0
    _
  %s6 = ssub.s32 1, %s4
  %s7 = scalar_select 0, %s6, %s4
  $region1: #{deepspeech2_forward.9} parent=0
    #allocation3 [shape = 'u8[49152]{0}', space=vmem, size = 0xc000, scoped, tag = 'input window, operand 0']
    loop: start=0, step=1, limit=5
    $region2: #{deepspeech2_forward.9} parent=1 // loop_pre_header
      _
    $region3: #{deepspeech2_forward.9} parent=1 // loop_header
      %s9 = sphi 0, %s13
      %p10 = scmp.ge.s32.totalorder %s9, 5
      %s16 = sphi 0, %s35
      %s17 = sphi 0, %s31
      %s18 = sphi 0, %s27
      %s19 = sphi 0, %s16
      %s20 = sphi 0, %s17
      %s21 = sphi 0, %s18
      %s22 = sphi 0, %s19
      %s23 = sphi 0, %s20
      %s24 = sphi 0, %s21
      %s40 = sphi 0, %s42
      %s43 = sphi 0, %s40
      %s44 = sphi 0, %s43
      %s60 = sphi 0, %s44
      %s68 = sphi 0, %s70
      %s71 = sphi 0, %s68
      %s72 = sphi 0, %s71
      %s88 = sphi 0, %s72
      %s94 = sphi 0, %s96
      %s97 = sphi 0, %s94
      %s98 = sphi 0, %s97
      %s114 = sphi 0, %s98
      %s122 = sphi 0, %s124
      %s125 = sphi 0, %s122
      %s126 = sphi 0, %s125
      %s142 = sphi 0, %s126
    $region4: #{deepspeech2_forward.9} parent=1 // loop_header_branch
      %12 = sbr.rel (%p10) target = $region8
    $region5: #{deepspeech2_forward.9} parent=1 // loop_body
      %s14 = ssub.s32 %s9, 1
      %s15 = ssub.s32 %s9, 2
      %s25 = sadd.s32 1, %s18
      %p26 = scmp.ge.s32.totalorder %s25, 3
      %s27 = scalar_select %p26, 0, %s25
      %s28 = sadd.s32 1, %s17
      %s29 = scalar_select %p26, %s28, %s17
      %p30 = scmp.ge.s32.totalorder %s29, 1
      %s31 = scalar_select %p30, 0, %s29
      %s32 = sadd.s32 1, %s16
      %s33 = scalar_select %p30, %s32, %s16
      %p34 = scmp.ge.s32.totalorder %s33, 1
      %s35 = scalar_select %p34, 0, %s33
      %s36 = ssub.s32 %s16, %s35
      %s37 = ssub.s32 %s18, %s27
      %s38 = sor.u32 %s36, %s37
      %p39 = scmp.eq.s32.totalorder %s38, 0
      %s41 = sadd.s32 %s40, 1
      %s42 = scalar_select %p39, %s40, %s41
      %p45 = pneg %p39
      %p46 = scmp.eq.s32.totalorder %s9, 2
      %p47 = por %p45, %p46
      %p48 = scmp.ne.s32.totalorder %s40, %s43
      %p49 = scmp.eq.s32.totalorder %s9, 0
      %p50 = por %p48, %p49
      %p51 = scmp.ne.s32.totalorder %s40, %s43
      %p52 = scmp.eq.s32.totalorder %s14, 2
      %p53 = por %p51, %p52
      %p54 = scmp.ne.s32.totalorder %s43, %s44
      %p55 = scmp.eq.s32.totalorder %s14, 0
      %p56 = por %p54, %p55
      %p57 = scmp.ne.s32.totalorder %s43, %s44
      %p58 = scmp.eq.s32.totalorder %s15, 2
      %p59 = por %p57, %p58
      %p61 = scmp.ne.s32.totalorder %s44, %s60
      %p62 = scmp.eq.s32.totalorder %s15, 0
      %p63 = por %p61, %p62
      %s64 = ssub.s32 %s18, %s27
      %s65 = ssub.s32 %s17, %s31
      %s66 = sor.u32 %s64, %s65
      %p67 = scmp.eq.s32.totalorder %s66, 0
      %s69 = sadd.s32 %s68, 1
      %s70 = scalar_select %p67, %s68, %s69
      %p73 = pneg %p67
      %p74 = scmp.eq.s32.totalorder %s9, 2
      %p75 = por %p73, %p74
      %p76 = scmp.ne.s32.totalorder %s68, %s71
      %p77 = scmp.eq.s32.totalorder %s9, 0
      %p78 = por %p76, %p77
      %p79 = scmp.ne.s32.totalorder %s68, %s71
      %p80 = scmp.eq.s32.totalorder %s14, 2
      %p81 = por %p79, %p80
      %p82 = scmp.ne.s32.totalorder %s71, %s72
      %p83 = scmp.eq.s32.totalorder %s14, 0
      %p84 = por %p82, %p83
      %p85 = scmp.ne.s32.totalorder %s71, %s72
      %p86 = scmp.eq.s32.totalorder %s15, 2
      %p87 = por %p85, %p86
      %p89 = scmp.ne.s32.totalorder %s72, %s88
      %p90 = scmp.eq.s32.totalorder %s15, 0
      %p91 = por %p89, %p90
      %s92 = ssub.s32 %s17, %s31
      %p93 = scmp.eq.s32.totalorder %s92, 0
      %s95 = sadd.s32 %s94, 1
      %s96 = scalar_select %p93, %s94, %s95
      %p99 = pneg %p93
      %p100 = scmp.eq.s32.totalorder %s9, 2
      %p101 = por %p99, %p100
      %p102 = scmp.ne.s32.totalorder %s94, %s97
      %p103 = scmp.eq.s32.totalorder %s9, 0
      %p104 = por %p102, %p103
      %p105 = scmp.ne.s32.totalorder %s94, %s97
      %p106 = scmp.eq.s32.totalorder %s14, 2
      %p107 = por %p105, %p106
      %p108 = scmp.ne.s32.totalorder %s97, %s98
      %p109 = scmp.eq.s32.totalorder %s14, 0
      %p110 = por %p108, %p109
      %p111 = scmp.ne.s32.totalorder %s97, %s98
      %p112 = scmp.eq.s32.totalorder %s15, 2
      %p113 = por %p111, %p112
      %p115 = scmp.ne.s32.totalorder %s98, %s114
      %p116 = scmp.eq.s32.totalorder %s15, 0
      %p117 = por %p115, %p116
      %s118 = ssub.s32 %s16, %s35
      %s119 = ssub.s32 %s17, %s31
      %s120 = sor.u32 %s118, %s119
      %p121 = scmp.eq.s32.totalorder %s120, 0
      %s123 = sadd.s32 %s122, 1
      %s124 = scalar_select %p121, %s122, %s123
      %p127 = pneg %p121
      %p128 = scmp.eq.s32.totalorder %s9, 2
      %p129 = por %p127, %p128
      %p130 = scmp.ne.s32.totalorder %s122, %s125
      %p131 = scmp.eq.s32.totalorder %s9, 0
      %p132 = por %p130, %p131
      %p133 = scmp.ne.s32.totalorder %s122, %s125
      %p134 = scmp.eq.s32.totalorder %s14, 2
      %p135 = por %p133, %p134
      %p136 = scmp.ne.s32.totalorder %s125, %s126
      %p137 = scmp.eq.s32.totalorder %s14, 0
      %p138 = por %p136, %p137
      %p139 = scmp.ne.s32.totalorder %s125, %s126
      %p140 = scmp.eq.s32.totalorder %s15, 2
      %p141 = por %p139, %p140
      %p143 = scmp.ne.s32.totalorder %s126, %s142
      %p144 = scmp.eq.s32.totalorder %s15, 0
      %p145 = por %p143, %p144
      %p146 = scmp.le.s32.totalorder 1, %s9
      %p147 = scmp.lt.s32.totalorder %s9, 4
      %p148 = pnand %p146, %p147
      %p149 = pneg %p148
      // Predicated region
      $region9: #{deepspeech2_forward.9} parent=5 // pred_check
        _
      $region10: #{deepspeech2_forward.9} parent=5 // pred_check_branch
        %151 = sbr.rel (%p148) target = $region12
      $region11: #{deepspeech2_forward.9} parent=5 // pred_region
        %s152 = ssub.s32 %s9, 1
        // Predicated region
        $region13: #{deepspeech2_forward.9} parent=11 // pred_check
          %p153 = pneg %p110
        $region14: #{deepspeech2_forward.9} parent=11 // pred_check_branch
          %155 = sbr.rel (%p153) target = $region16
        $region15: #{deepspeech2_forward.9} parent=11 // pred_region
          %p156 = scmp.lt.s32.totalorder %s20, 0
          %s157 = scalar_select %p156, %s20, 0
          %s158 = scalar_lea.vmem %s2, %s157
        $region16: #{deepspeech2_forward.9} parent=11 // pred_fallthru
          _
      $region12: #{deepspeech2_forward.9} parent=5 // pred_fallthru
        _
      %p159 = scmp.lt.s32.totalorder %s9, 3
      // Predicated region
      $region17: #{deepspeech2_forward.9} parent=5 // pred_check
        %p160 = pneg %p159
      $region18: #{deepspeech2_forward.9} parent=5 // pred_check_branch
        %162 = sbr.rel (%p160) target = $region20
      $region19: #{deepspeech2_forward.9} parent=5 // pred_region
        // Predicated region
        $region21: #{deepspeech2_forward.9} parent=19 // pred_check
          %p163 = pneg %p50
        $region22: #{deepspeech2_forward.9} parent=19 // pred_check_branch
          %165 = sbr.rel (%p163) target = $region24
        $region23: #{deepspeech2_forward.9} parent=19 // pred_region
          %s166 = sand.u32 %s40, 1
          %s167 = sand.u32 %s40, 1
          %s168 = smul.addr %s167, 48
          %s169 = scalar_lea.vmem [#allocation3], %s168
          %s170 = smul.u32 4, %s16
          %s171 = smul.u32 3, %s18
          %s172 = smul.addr %s170, 9
          %s173 = sadd.s32 %s171, %s172
          %s174 = smul.addr %s173, 4
          %s175 = scalar_lea.vmem %s0, %s174
          // Predicated region
          $region25: #{deepspeech2_forward.9} parent=23 // pred_check
            _
          $region26: #{deepspeech2_forward.9} parent=23 // pred_check_branch
            %177 = sbr.rel (0) target = $region28
          $region27: #{deepspeech2_forward.9} parent=23 // pred_region
            // Predicated region
            $region29: #{deepspeech2_forward.9} parent=27 // pred_check
              _
            $region30: #{deepspeech2_forward.9} parent=27 // pred_check_branch
              %179 = sbr.rel (0) target = $region32
            $region31: #{deepspeech2_forward.9} parent=27 // pred_region
              %s180 = scalar_lea.vmem %s175, 8
              %s181 = scalar_lea.vmem %s169, 8 [#allocation3]
              loop: start=0, step=1, limit=1
              $region33: #{deepspeech2_forward.9} parent=31 // loop_pre_header
                _
              $region34: #{deepspeech2_forward.9} parent=31 // loop_header
                %s183 = sphi 0, %s187
                %p184 = scmp.ge.s32.totalorder %s183, 1
                %s188 = sphi %s175, %s175
                %s189 = sphi %s169, %s169
              $region35: #{deepspeech2_forward.9} parent=31 // loop_header_branch
                %186 = sbr.rel (%p184) target = $region39
              $region36: #{deepspeech2_forward.9} parent=31 // loop_body
                %v190 = vld [vmem:[%s188] sm:$0xff]
                %191 = vst [vmem:[%s189] sm:$0xff] %v190
                %v192 = vld [vmem:[%s188 + $0x24] sm:$0xff]
                %193 = vst [vmem:[%s189 + $0xc] sm:$0xff] %v192
                %v194 = vld [vmem:[%s188 + $0x48] sm:$0xff]
                %195 = vst [vmem:[%s189 + $0x18] sm:$0xff] %v194
                %v196 = vld [vmem:[%s188 + $0x6c] sm:$0xff]
                %197 = vst [vmem:[%s189 + $0x24] sm:$0xff] %v196
              $region37: #{deepspeech2_forward.9} parent=31 // loop_footer
                %s187 = sadd.s32 1, %s183
              $region38: #{deepspeech2_forward.9} parent=31 // loop_footer_branch
                %182 = sbr.rel target = $region34
              $region39: #{deepspeech2_forward.9} parent=31 // loop_exit
                _
              loop: start=0, step=1, limit=1
              $region40: #{deepspeech2_forward.9} parent=31 // loop_pre_header
                _
              $region41: #{deepspeech2_forward.9} parent=31 // loop_header
                %s200 = sphi 0, %s204
                %p201 = scmp.ge.s32.totalorder %s200, 1
                %s205 = sphi %s180, %s180
                %s206 = sphi %s181, %s181
              $region42: #{deepspeech2_forward.9} parent=31 // loop_header_branch
                %203 = sbr.rel (%p201) target = $region46
              $region43: #{deepspeech2_forward.9} parent=31 // loop_body
                %v207 = vld [vmem:[%s205] sm:$0xf]
                %208 = vst [vmem:[%s206] sm:$0xf] %v207
                %v209 = vld [vmem:[%s205 + $0x24] sm:$0xf]
                %210 = vst [vmem:[%s206 + $0xc] sm:$0xf] %v209
                %v211 = vld [vmem:[%s205 + $0x48] sm:$0xf]
                %212 = vst [vmem:[%s206 + $0x18] sm:$0xf] %v211
                %v213 = vld [vmem:[%s205 + $0x6c] sm:$0xf]
                %214 = vst [vmem:[%s206 + $0x24] sm:$0xf] %v213
              $region44: #{deepspeech2_forward.9} parent=31 // loop_footer
                %s204 = sadd.s32 1, %s200
              $region45: #{deepspeech2_forward.9} parent=31 // loop_footer_branch
                %199 = sbr.rel target = $region41
              $region46: #{deepspeech2_forward.9} parent=31 // loop_exit
                _
            $region32: #{deepspeech2_forward.9} parent=27 // pred_fallthru
              _
          $region28: #{deepspeech2_forward.9} parent=23 // pred_fallthru
            _
          %215 = vnop
        $region24: #{deepspeech2_forward.9} parent=19 // pred_fallthru
          _
        // Predicated region
        $region47: #{deepspeech2_forward.9} parent=19 // pred_check
          %p216 = pneg %p78
        $region48: #{deepspeech2_forward.9} parent=19 // pred_check_branch
          %218 = sbr.rel (%p216) target = $region50
        $region49: #{deepspeech2_forward.9} parent=19 // pred_region
          %s219 = smul.u32 48, %s18
          %p220 = scmp.lt.s32.totalorder %s219, 143
          %s221 = scalar_select %p220, %s219, 143
          %p222 = scmp.lt.s32.totalorder %s17, 0
          %s223 = scalar_select %p222, %s17, 0
          %s224 = sadd.s32 %s223, %s221
          %s225 = smul.addr %s224, 4
          %s226 = scalar_lea.vmem %s1, %s225
          %s227 = smul.u32 48, %s18
        $region50: #{deepspeech2_forward.9} parent=19 // pred_fallthru
          _
      $region20: #{deepspeech2_forward.9} parent=5 // pred_fallthru
        _
      %p228 = scmp.le.s32.totalorder 1, %s9
      %p229 = scmp.lt.s32.totalorder %s9, 4
      %p230 = pnand %p228, %p229
      %p231 = pneg %p230
      // Predicated region
      $region51: #{deepspeech2_forward.9} parent=5 // pred_check
        _
      $region52: #{deepspeech2_forward.9} parent=5 // pred_check_branch
        %233 = sbr.rel (%p230) target = $region54
      $region53: #{deepspeech2_forward.9} parent=5 // pred_region
        %s234 = ssub.s32 %s9, 1
        %s235 = sand.u32 %s43, 1
        %s236 = sand.u32 %s43, 1
        %s237 = smul.addr %s236, 48
        %s238 = scalar_lea.vmem [#allocation3], %s237
        // Predicated region
        $region55: #{deepspeech2_forward.9} parent=53 // pred_check
          %p239 = pneg %p56
        $region56: #{deepspeech2_forward.9} parent=53 // pred_check_branch
          %241 = sbr.rel (%p239) target = $region58
        $region57: #{deepspeech2_forward.9} parent=53 // pred_region
          _
        $region58: #{deepspeech2_forward.9} parent=53 // pred_fallthru
          _
        %s242 = sand.u32 %s43, 1
        %s243 = sand.u32 %s43, 1
        %s244 = smul.addr %s243, 48
        %s245 = scalar_lea.vmem [#allocation3], %s244
        %p246 = pneg %p56
        %p247 = pneg %p53
        %s248 = smul.u32 48, %s21
        %p249 = scmp.lt.s32.totalorder %s248, 143
        %s250 = scalar_select %p249, %s248, 143
        %p251 = scmp.lt.s32.totalorder %s20, 0
        %s252 = scalar_select %p251, %s20, 0
        %s253 = sadd.s32 %s252, %s250
        %s254 = smul.addr %s253, 4
        %s255 = scalar_lea.vmem %s1, %s254
        %p256 = pneg %p84
        %p257 = pneg %p81
        %p258 = scmp.lt.s32.totalorder %s20, 0
        %s259 = scalar_select %p258, %s20, 0
        %s260 = scalar_lea.vmem %s2, %s259
        %p261 = pneg %p110
        %p262 = pneg %p107
        %p263 = pneg %p138
        %p264 = pneg %p135
        %s265 = smul.u32 4, %s19
        %p266 = scmp.lt.s32.totalorder %s265, 3
        %s267 = scalar_select %p266, %s265, 3
        %p268 = scmp.lt.s32.totalorder %s20, 0
        %s269 = scalar_select %p268, %s20, 0
        %s270 = sadd.s32 %s269, %s267
        %s271 = smul.addr %s270, 4
        %s272 = scalar_lea.vmem %s3, %s271
        %s273 = smul.u32 4, %s19
        %s274 = smul.u32 3, %s21
        %s275 = smul.u32 48, %s21
        %p276 = scmp.lt.s32.totalorder %s275, 143
        %s277 = scalar_select %p276, %s275, 143
        %p278 = scmp.lt.s32.totalorder %s20, 0
        %s279 = scalar_select %p278, %s20, 0
        %s280 = sadd.s32 %s279, %s277
        %s281 = smul.addr %s280, 4
        %s282 = scalar_lea.vmem %s1, %s281
        %s283 = smul.u32 48, %s21
        %p284 = scmp.lt.s32.totalorder %s20, 0
        %s285 = scalar_select %p284, %s20, 0
        %s286 = scalar_lea.vmem %s2, %s285
        %s287 = smul.u32 4, %s19
        %p288 = scmp.lt.s32.totalorder %s287, 3
        %s289 = scalar_select %p288, %s287, 3
        %p290 = scmp.lt.s32.totalorder %s20, 0
        %s291 = scalar_select %p290, %s20, 0
        %s292 = sadd.s32 %s291, %s289
        %s293 = smul.addr %s292, 4
        %s294 = scalar_lea.vmem %s3, %s293
        %s295 = smul.u32 4, %s19
        %p297 = scmp.eq.s32.totalorder %s21, 0
        // Predicated region
        $region59: #{deepspeech2_forward.9} parent=53 // pred_check
          %p298 = pneg %p297
        $region60: #{deepspeech2_forward.9} parent=53 // pred_check_branch
          %300 = sbr.rel (%p298) target = $region62
        $region61: #{deepspeech2_forward.9} parent=53 // pred_region
          %301 = vst [vmem:[#allocation2] sm:$0xff] 0.0
          %302 = vst [vmem:[#allocation2 + $0x8] sm:$0xff] 0.0
          %303 = vst [vmem:[#allocation2 + $0x10] sm:$0xff] 0.0
          %304 = vst [vmem:[#allocation2 + $0x18] sm:$0xff] 0.0
        $region62: #{deepspeech2_forward.9} parent=53 // pred_fallthru
          _
        %v305 = vld [vmem:[#allocation2] sm:$0xff]
        %v306 = vld [vmem:[#allocation2 + $0x8] sm:$0xff]
        %v307 = vld [vmem:[#allocation2 + $0x10] sm:$0xff]
        %v308 = vld [vmem:[#allocation2 + $0x18] sm:$0xff]
        %v309 = vld [vmem:[%s238] sm:$0xff]
        %v310 = vld [vmem:[%s238 + $0x8] sm:$0xf]
        %v311 = vld [vmem:[%s238 + $0xc] sm:$0xff]
        %v312 = vld [vmem:[%s238 + $0x14] sm:$0xf]
        %v313 = vld [vmem:[%s238 + $0x18] sm:$0xff]
        %v314 = vld [vmem:[%s238 + $0x20] sm:$0xf]
        %v315 = vld [vmem:[%s238 + $0x24] sm:$0xff]
        %v316 = vld [vmem:[%s238 + $0x2c] sm:$0xf]
        %v317 = vld [vmem:[%s282] sm:$0xf]
        %v318 = vld [vmem:[%s282 + $0x4] sm:$0xf]
        %v319 = vld [vmem:[%s282 + $0x8] sm:$0xf]
        %v320 = vld [vmem:[%s282 + $0xc] sm:$0xf]
        %v321 = vld [vmem:[%s282 + $0x10] sm:$0xf]
        %v322 = vld [vmem:[%s282 + $0x14] sm:$0xf]
        %v323 = vld [vmem:[%s282 + $0x18] sm:$0xf]
        %v324 = vld [vmem:[%s282 + $0x1c] sm:$0xf]
        %v325 = vld [vmem:[%s282 + $0x20] sm:$0xf]
        %v326 = vld [vmem:[%s282 + $0x24] sm:$0xf]
        %v327 = vld [vmem:[%s282 + $0x28] sm:$0xf]
        %v328 = vld [vmem:[%s282 + $0x2c] sm:$0xf]
        %v329 = vld [vmem:[%s282 + $0x30] sm:$0xf]
        %v330 = vld [vmem:[%s282 + $0x34] sm:$0xf]
        %v331 = vld [vmem:[%s282 + $0x38] sm:$0xf]
        %v332 = vld [vmem:[%s282 + $0x3c] sm:$0xf]
        %v333 = vld [vmem:[%s282 + $0x40] sm:$0xf]
        %v334 = vld [vmem:[%s282 + $0x44] sm:$0xf]
        %v335 = vld [vmem:[%s282 + $0x48] sm:$0xf]
        %v336 = vld [vmem:[%s282 + $0x4c] sm:$0xf]
        %v337 = vld [vmem:[%s282 + $0x50] sm:$0xf]
        %v338 = vld [vmem:[%s282 + $0x54] sm:$0xf]
        %v339 = vld [vmem:[%s282 + $0x58] sm:$0xf]
        %v340 = vld [vmem:[%s282 + $0x5c] sm:$0xf]
        %v341 = vld [vmem:[%s282 + $0x60] sm:$0xf]
        %v342 = vld [vmem:[%s282 + $0x64] sm:$0xf]
        %v343 = vld [vmem:[%s282 + $0x68] sm:$0xf]
        %v344 = vld [vmem:[%s282 + $0x6c] sm:$0xf]
        %v345 = vld [vmem:[%s282 + $0x70] sm:$0xf]
        %v346 = vld [vmem:[%s282 + $0x74] sm:$0xf]
        %v347 = vld [vmem:[%s282 + $0x78] sm:$0xf]
        %v348 = vld [vmem:[%s282 + $0x7c] sm:$0xf]
        %v349 = vld [vmem:[%s282 + $0x80] sm:$0xf]
        %v350 = vld [vmem:[%s282 + $0x84] sm:$0xf]
        %v351 = vld [vmem:[%s282 + $0x88] sm:$0xf]
        %v352 = vld [vmem:[%s282 + $0x8c] sm:$0xf]
        %v353 = vld [vmem:[%s282 + $0x90] sm:$0xf]
        %v354 = vld [vmem:[%s282 + $0x94] sm:$0xf]
        %v355 = vld [vmem:[%s282 + $0x98] sm:$0xf]
        %v356 = vld [vmem:[%s282 + $0x9c] sm:$0xf]
        %v357 = vld [vmem:[%s282 + $0xa0] sm:$0xf]
        %v358 = vld [vmem:[%s282 + $0xa4] sm:$0xf]
        %v359 = vld [vmem:[%s282 + $0xa8] sm:$0xf]
        %v360 = vld [vmem:[%s282 + $0xac] sm:$0xf]
        %v361 = vld [vmem:[%s282 + $0xb0] sm:$0xf]
        %v362 = vld [vmem:[%s282 + $0xb4] sm:$0xf]
        %v363 = vld [vmem:[%s282 + $0xb8] sm:$0xf]
        %v364 = vld [vmem:[%s282 + $0xbc] sm:$0xf]
        %v373 = vunpack.c.l.b16 %v309
        %v374 = vunpack.c.h.b16 %v309
        %v375 = vunpack.c.l.b16 %v310
        %v376 = vunpack.c.l.b16 %v311
        %v377 = vunpack.c.h.b16 %v311
        %v378 = vunpack.c.l.b16 %v312
        %v379 = vunpack.c.l.b16 %v313
        %v380 = vunpack.c.h.b16 %v313
        %v381 = vunpack.c.l.b16 %v314
        %v382 = vunpack.c.l.b16 %v315
        %v383 = vunpack.c.h.b16 %v315
        %v384 = vunpack.c.l.b16 %v316
        %v385 = vpack.c.b16 %v376, %v373
        %v386 = vpack.c.b16 %v377, %v374
        %v387 = vpack.c.b16 %v378, %v375
        %v388 = vpack.c.b16 %v382, %v379
        %v389 = vpack.c.b16 %v383, %v380
        %v390 = vpack.c.b16 %v384, %v381
        %v445 = vunpack.c.l.b16 %v317
        %v446 = vunpack.c.l.b16 %v318
        %v447 = vunpack.c.l.b16 %v319
        %v448 = vunpack.c.l.b16 %v320
        %v449 = vunpack.c.l.b16 %v321
        %v450 = vunpack.c.l.b16 %v322
        %v451 = vunpack.c.l.b16 %v323
        %v452 = vunpack.c.l.b16 %v324
        %v453 = vunpack.c.l.b16 %v325
        %v454 = vunpack.c.l.b16 %v326
        %v455 = vunpack.c.l.b16 %v327
        %v456 = vunpack.c.l.b16 %v328
        %v457 = vunpack.c.l.b16 %v329
        %v458 = vunpack.c.l.b16 %v330
        %v459 = vunpack.c.l.b16 %v331
        %v460 = vunpack.c.l.b16 %v332
        %v461 = vunpack.c.l.b16 %v333
        %v462 = vunpack.c.l.b16 %v334
        %v463 = vunpack.c.l.b16 %v335
        %v464 = vunpack.c.l.b16 %v336
        %v465 = vunpack.c.l.b16 %v337
        %v466 = vunpack.c.l.b16 %v338
        %v467 = vunpack.c.l.b16 %v339
        %v468 = vunpack.c.l.b16 %v340
        %v469 = vunpack.c.l.b16 %v341
        %v470 = vunpack.c.l.b16 %v342
        %v471 = vunpack.c.l.b16 %v343
        %v472 = vunpack.c.l.b16 %v344
        %v473 = vunpack.c.l.b16 %v345
        %v474 = vunpack.c.l.b16 %v346
        %v475 = vunpack.c.l.b16 %v347
        %v476 = vunpack.c.l.b16 %v348
        %v477 = vunpack.c.l.b16 %v349
        %v478 = vunpack.c.l.b16 %v350
        %v479 = vunpack.c.l.b16 %v351
        %v480 = vunpack.c.l.b16 %v352
        %v481 = vunpack.c.l.b16 %v353
        %v482 = vunpack.c.l.b16 %v354
        %v483 = vunpack.c.l.b16 %v355
        %v484 = vunpack.c.l.b16 %v356
        %v485 = vunpack.c.l.b16 %v357
        %v486 = vunpack.c.l.b16 %v358
        %v487 = vunpack.c.l.b16 %v359
        %v488 = vunpack.c.l.b16 %v360
        %v489 = vunpack.c.l.b16 %v361
        %v490 = vunpack.c.l.b16 %v362
        %v491 = vunpack.c.l.b16 %v363
        %v492 = vunpack.c.l.b16 %v364
        %v493 = vpack.c.b16 %v446, %v445
        %v494 = vpack.c.b16 %v448, %v447
        %v495 = vpack.c.b16 %v450, %v449
        %v496 = vpack.c.b16 %v452, %v451
        %v497 = vpack.c.b16 %v454, %v453
        %v498 = vpack.c.b16 %v456, %v455
        %v499 = vpack.c.b16 %v458, %v457
        %v500 = vpack.c.b16 %v460, %v459
        %v501 = vpack.c.b16 %v462, %v461
        %v502 = vpack.c.b16 %v464, %v463
        %v503 = vpack.c.b16 %v466, %v465
        %v504 = vpack.c.b16 %v468, %v467
        %v505 = vpack.c.b16 %v470, %v469
        %v506 = vpack.c.b16 %v472, %v471
        %v507 = vpack.c.b16 %v474, %v473
        %v508 = vpack.c.b16 %v476, %v475
        %v509 = vpack.c.b16 %v478, %v477
        %v510 = vpack.c.b16 %v480, %v479
        %v511 = vpack.c.b16 %v482, %v481
        %v512 = vpack.c.b16 %v484, %v483
        %v513 = vpack.c.b16 %v486, %v485
        %v514 = vpack.c.b16 %v488, %v487
        %v515 = vpack.c.b16 %v490, %v489
        %v516 = vpack.c.b16 %v492, %v491
        %541 = vmatprep.subr.bf16.mxu0 0
        %542 = vmatpush1.bf16.msra.mxu0 %v493
        %543 = vmatprep.subr.bf16.mxu0 0
        %544 = vmatpush1.bf16.msra.mxu0 %v494
        %545 = vmatprep.subr.bf16.mxu0 0
        %546 = vmatpush1.bf16.msra.mxu0 %v495
        %547 = vmatprep.subr.bf16.mxu0 0
        %548 = vmatpush1.bf16.msra.mxu0 %v496
        %549 = vmatprep.subr.bf16.mxu0 0
        %550 = vmatpush1.bf16.msra.mxu0 %v497
        %551 = vmatprep.subr.bf16.mxu0 0
        %552 = vmatpush1.bf16.msra.mxu0 %v498
        %553 = vmatprep.subr.bf16.mxu0 0
        %554 = vmatpush1.bf16.msra.mxu0 %v499
        %555 = vmatprep.subr.bf16.mxu0 0
        %556 = vmatpush1.bf16.msra.mxu0 %v500
        %557 = vmatprep.subr.bf16.mxu0 0
        %558 = vmatpush1.bf16.msra.mxu0 %v501
        %559 = vmatprep.subr.bf16.mxu0 0
        %560 = vmatpush1.bf16.msra.mxu0 %v502
        %561 = vmatprep.subr.bf16.mxu0 0
        %562 = vmatpush1.bf16.msra.mxu0 %v503
        %563 = vmatprep.subr.bf16.mxu0 0
        %564 = vmatpush1.bf16.msra.mxu0 %v504
        %565 = vmatprep.subr.bf16.mxu0 0
        %566 = vmatpush1.bf16.msra.mxu0 %v505
        %567 = vmatprep.subr.bf16.mxu0 0
        %568 = vmatpush1.bf16.msra.mxu0 %v506
        %569 = vmatprep.subr.bf16.mxu0 0
        %570 = vmatpush1.bf16.msra.mxu0 %v507
        %571 = vmatprep.subr.bf16.mxu0 0
        %572 = vmatpush1.bf16.msra.mxu0 %v508
        %573 = vmatprep.mubr.bf16.mxu0 %v386
        %574 = vmatmul.mubr.bf16.gmra.mrb[0].mxu0 %v385
        %v575 = vpop.f32.mrb[0].mxu0
        %v576 = vadd.f32 0.0, %v575
        %v577 = vpop.f32.mrb[0].mxu0
        %v578 = vpop.f32.mrb[0].mxu0
        %v579 = vadd.f32 0.0, %v578
        %v580 = vpop.f32.mrb[0].mxu0
        %581 = vmatprep.mubr.bf16.mxu0 %v389
        %582 = vmatmul.mubr.bf16.gmra.mrb[0].mxu0 %v388
        %v583 = vpop.f32.mrb[0].mxu0
        %v584 = vadd.f32 0.0, %v583
        %v585 = vpop.f32.mrb[0].mxu0
        %v586 = vpop.f32.mrb[0].mxu0
        %v587 = vadd.f32 0.0, %v586
        %v588 = vpop.f32.mrb[0].mxu0
        %589 = vdwg.mxu0
        %590 = vmatprep.subr.bf16.mxu0 0
        %591 = vmatpush1.bf16.msra.mxu0 %v509
        %592 = vmatprep.subr.bf16.mxu0 0
        %593 = vmatpush1.bf16.msra.mxu0 %v510
        %594 = vmatprep.subr.bf16.mxu0 0
        %595 = vmatpush1.bf16.msra.mxu0 %v511
        %596 = vmatprep.subr.bf16.mxu0 0
        %597 = vmatpush1.bf16.msra.mxu0 %v512
        %598 = vmatprep.subr.bf16.mxu0 0
        %599 = vmatpush1.bf16.msra.mxu0 %v513
        %600 = vmatprep.subr.bf16.mxu0 0
        %601 = vmatpush1.bf16.msra.mxu0 %v514
        %602 = vmatprep.subr.bf16.mxu0 0
        %603 = vmatpush1.bf16.msra.mxu0 %v515
        %604 = vmatprep.subr.bf16.mxu0 0
        %605 = vmatpush1.bf16.msra.mxu0 %v516
        %606 = vmatprep.subr.bf16.mxu0 0
        %607 = vmatpush1.bf16.msra.mxu0 0
        %608 = vmatprep.subr.bf16.mxu0 0
        %609 = vmatpush1.bf16.msra.mxu0 0
        %610 = vmatprep.subr.bf16.mxu0 0
        %611 = vmatpush1.bf16.msra.mxu0 0
        %612 = vmatprep.subr.bf16.mxu0 0
        %613 = vmatpush1.bf16.msra.mxu0 0
        %614 = vmatprep.subr.bf16.mxu0 0
        %615 = vmatpush1.bf16.msra.mxu0 0
        %616 = vmatprep.subr.bf16.mxu0 0
        %617 = vmatpush1.bf16.msra.mxu0 0
        %618 = vmatprep.subr.bf16.mxu0 0
        %619 = vmatpush1.bf16.msra.mxu0 0
        %620 = vmatprep.subr.bf16.mxu0 0
        %621 = vmatpush1.bf16.msra.mxu0 0
        %622 = vmatprep.mubr.bf16.mxu0 0
        %623 = vmatmul.mubr.bf16.gmra.mrb[0].mxu0 %v387
        %v624 = vpop.f32.mrb[0].mxu0
        %v625 = vadd.f32 %v576, %v624
        %v626 = vpop.f32.mrb[0].mxu0
        %v627 = vpop.f32.mrb[0].mxu0
        %v628 = vadd.f32 %v579, %v627
        %v629 = vpop.f32.mrb[0].mxu0
        %630 = vmatprep.mubr.bf16.mxu0 0
        %631 = vmatmul.mubr.bf16.gmra.mrb[0].mxu0 %v390
        %v632 = vpop.f32.mrb[0].mxu0
        %v633 = vadd.f32 %v584, %v632
        %v634 = vpop.f32.mrb[0].mxu0
        %v635 = vpop.f32.mrb[0].mxu0
        %v636 = vadd.f32 %v587, %v635
        %v637 = vpop.f32.mrb[0].mxu0
        %638 = vdwg.mxu0
        %v639 = vadd.f32 %v305, %v625
        %v640 = vadd.f32 %v306, %v628
        %v641 = vadd.f32 %v307, %v633
        %v642 = vadd.f32 %v308, %v636
        %643 = vst [vmem:[#allocation2] sm:$0xff] %v639
        %644 = vst [vmem:[#allocation2 + $0x8] sm:$0xff] %v640
        %645 = vst [vmem:[#allocation2 + $0x10] sm:$0xff] %v641
        %646 = vst [vmem:[#allocation2 + $0x18] sm:$0xff] %v642
        %p647 = scmp.eq.s32.totalorder %s21, 2
        // Predicated region
        $region63: #{deepspeech2_forward.9} parent=53 // pred_check
          %p648 = pneg %p647
        $region64: #{deepspeech2_forward.9} parent=53 // pred_check_branch
          %650 = sbr.rel (%p648) target = $region66
        $region65: #{deepspeech2_forward.9} parent=53 // pred_region
          %v651 = vld [vmem:[#allocation2] sm:$0xff]
          %v652 = vld [vmem:[#allocation2 + $0x8] sm:$0xff]
          %v653 = vld [vmem:[#allocation2 + $0x10] sm:$0xff]
          %v654 = vld [vmem:[#allocation2 + $0x18] sm:$0xff]
          %v655 = vld [vmem:[%s286] sm:$0x1]
          %v657 = vlaneseq
          %v658 = vshrl.u32 %v657, 7
          %v659 = vsub.s32 0, %v658
          %v660 = vrot.slane %v655, %v659
          %v662 = vadd.f32 %v651, %v660
          %v663 = vadd.f32 %v652, %v660
          %v664 = vadd.f32 %v653, %v660
          %v665 = vadd.f32 %v654, %v660
          %v666 = vmax.f32 %v662, 0.0
          %v667 = vmax.f32 %v663, 0.0
          %v668 = vmax.f32 %v664, 0.0
          %v669 = vmax.f32 %v665, 0.0
          %v670 = vpack.c.bf16 %v667, %v666
          %v671 = vpack.c.bf16 %v669, %v668
          %v674 = vunpack.c.l.b16 %v670
          %v675 = vunpack.c.h.b16 %v670
          %v676 = vunpack.c.l.b16 %v671
          %v677 = vunpack.c.h.b16 %v671
          %v678 = vpack.c.b16 %v674, %v674
          %v679 = vpack.c.b16 %v675, %v675
          %v680 = vpack.c.b16 %v676, %v676
          %v681 = vpack.c.b16 %v677, %v677
          %686 = vst [vmem:[%s294] sm:$0xf] %v678
          %687 = vst [vmem:[%s294 + $0x4] sm:$0xf] %v679
          %688 = vst [vmem:[%s294 + $0x8] sm:$0xf] %v680
          %689 = vst [vmem:[%s294 + $0xc] sm:$0xf] %v681
        $region66: #{deepspeech2_forward.9} parent=53 // pred_fallthru
          _
        %s690 = smul.u32 4, %s19
        %p691 = scmp.lt.s32.totalorder %s690, 3
        %s692 = scalar_select %p691, %s690, 3
        %p693 = scmp.lt.s32.totalorder %s20, 0
        %s694 = scalar_select %p693, %s20, 0
        %s695 = sadd.s32 %s694, %s692
        %s696 = smul.addr %s695, 4
        %s697 = scalar_lea.vmem %s3, %s696
        // Predicated region
        $region67: #{deepspeech2_forward.9} parent=53 // pred_check
          %p698 = pneg %p135
        $region68: #{deepspeech2_forward.9} parent=53 // pred_check_branch
          %700 = sbr.rel (%p698) target = $region70
        $region69: #{deepspeech2_forward.9} parent=53 // pred_region
          %s701 = smul.u32 4, %s19
        $region70: #{deepspeech2_forward.9} parent=53 // pred_fallthru
          _
        // Predicated region
        $region71: #{deepspeech2_forward.9} parent=53 // pred_check
          %p702 = pneg %p135
        $region72: #{deepspeech2_forward.9} parent=53 // pred_check_branch
          %704 = sbr.rel (%p702) target = $region74
        $region73: #{deepspeech2_forward.9} parent=53 // pred_region
          %s705 = smul.u32 4, %s19
          %p706 = scmp.lt.s32.totalorder %s705, 3
          %s707 = scalar_select %p706, %s705, 3
          %p708 = scmp.lt.s32.totalorder %s20, 0
          %s709 = scalar_select %p708, %s20, 0
          %s710 = sadd.s32 %s709, %s707
          %s711 = smul.addr %s710, 4
          %s712 = scalar_lea.vmem %s3, %s711
        $region74: #{deepspeech2_forward.9} parent=53 // pred_fallthru
          _
      $region54: #{deepspeech2_forward.9} parent=5 // pred_fallthru
        _
      %p713 = scmp.le.s32.totalorder 2, %s9
      // Predicated region
      $region75: #{deepspeech2_forward.9} parent=5 // pred_check
        %p714 = pneg %p713
      $region76: #{deepspeech2_forward.9} parent=5 // pred_check_branch
        %716 = sbr.rel (%p714) target = $region78
      $region77: #{deepspeech2_forward.9} parent=5 // pred_region
        %s717 = ssub.s32 %s9, 2
      $region78: #{deepspeech2_forward.9} parent=5 // pred_fallthru
        _
    $region6: #{deepspeech2_forward.9} parent=1 // loop_footer
      %s13 = sadd.s32 1, %s9
    $region7: #{deepspeech2_forward.9} parent=1 // loop_footer_branch
      %8 = sbr.rel target = $region3
    $region8: #{deepspeech2_forward.9} parent=1 // loop_exit
      _

// kernel: deepspeech2_forward.8
$region0: #{deepspeech2_forward.8}
  #allocation0 [shape = 'u32[]', space=smem, size = 0x4, offset = 0x4, fixed_abs, tag = 'smem constant byte address 0x4 - core index']
  #allocation1 [shape = 'u32[144,128]{1,0:T(1,128)}', space=vmem, size = 0x12000, scoped, tag = 'internal scratch']
  %s0 = inlined_call_operand.vmem [shape: bf16[128,16], index: 0, kind: input, shape index: {}]
  %s1 = inlined_call_operand.vmem [shape: bf16[16,128], index: 1, kind: input, shape index: {}]
  %s2 = inlined_call_operand.vmem [shape: f32[1,128], index: 2, kind: input, shape index: {}]
  %s3 = inlined_call_operand.vmem [shape: bf16[128,128], index: 3, kind: output, shape index: {}]
  %s4 = sld [smem:[#allocation0]]
  $region22: #{deepspeech2_forward.8} parent=0
    _
  %s6 = ssub.s32 1, %s4
  %s7 = scalar_select 0, %s6, %s4
  // Predicated region
  $region2: #{deepspeech2_forward.8} parent=0 // pred_check
    _
  $region3: #{deepspeech2_forward.8} parent=0 // pred_check_branch
    %9 = sbr.rel (0) target = $region5
  $region4: #{deepspeech2_forward.8} parent=0 // pred_region
    _
  $region5: #{deepspeech2_forward.8} parent=0 // pred_fallthru
    _
  // Predicated region
  $region6: #{deepspeech2_forward.8} parent=0 // pred_check
    _
  $region7: #{deepspeech2_forward.8} parent=0 // pred_check_branch
    %11 = sbr.rel (0) target = $region9
  $region8: #{deepspeech2_forward.8} parent=0 // pred_region
    _
  $region9: #{deepspeech2_forward.8} parent=0 // pred_fallthru
    _
  // Predicated region
  $region10: #{deepspeech2_forward.8} parent=0 // pred_check
    _
  $region11: #{deepspeech2_forward.8} parent=0 // pred_check_branch
    %13 = sbr.rel (0) target = $region13
  $region12: #{deepspeech2_forward.8} parent=0 // pred_region
    _
  $region13: #{deepspeech2_forward.8} parent=0 // pred_fallthru
    _
  %v15 = vld [vmem:[%s0] sm:$0xf]
  %v16 = vld [vmem:[%s0 + $0x4] sm:$0xf]
  %v17 = vld [vmem:[%s0 + $0x8] sm:$0xf]
  %v18 = vld [vmem:[%s0 + $0xc] sm:$0xf]
  %v19 = vld [vmem:[%s0 + $0x10] sm:$0xf]
  %v20 = vld [vmem:[%s0 + $0x14] sm:$0xf]
  %v21 = vld [vmem:[%s0 + $0x18] sm:$0xf]
  %v22 = vld [vmem:[%s0 + $0x1c] sm:$0xf]
  %v23 = vld [vmem:[%s0 + $0x20] sm:$0xf]
  %v24 = vld [vmem:[%s0 + $0x24] sm:$0xf]
  %v25 = vld [vmem:[%s0 + $0x28] sm:$0xf]
  %v26 = vld [vmem:[%s0 + $0x2c] sm:$0xf]
  %v27 = vld [vmem:[%s0 + $0x30] sm:$0xf]
  %v28 = vld [vmem:[%s0 + $0x34] sm:$0xf]
  %v29 = vld [vmem:[%s0 + $0x38] sm:$0xf]
  %v30 = vld [vmem:[%s0 + $0x3c] sm:$0xf]
  %v31 = vld [vmem:[%s1] sm:$0xf]
  %v32 = vld [vmem:[%s1 + $0x4] sm:$0xf]
  %v33 = vld [vmem:[%s2] sm:$0x1]
  %v35 = vlaneseq
  %v36 = vshrl.u32 %v35, 7
  %v37 = vsub.s32 0, %v36
  %v38 = vrot.slane %v33, %v37
  %v56 = vunpack.c.l.b16 %v15
  %v57 = vunpack.c.l.b16 %v16
  %v58 = vunpack.c.l.b16 %v17
  %v59 = vunpack.c.l.b16 %v18
  %v60 = vunpack.c.l.b16 %v19
  %v61 = vunpack.c.l.b16 %v20
  %v62 = vunpack.c.l.b16 %v21
  %v63 = vunpack.c.l.b16 %v22
  %v64 = vunpack.c.l.b16 %v23
  %v65 = vunpack.c.l.b16 %v24
  %v66 = vunpack.c.l.b16 %v25
  %v67 = vunpack.c.l.b16 %v26
  %v68 = vunpack.c.l.b16 %v27
  %v69 = vunpack.c.l.b16 %v28
  %v70 = vunpack.c.l.b16 %v29
  %v71 = vunpack.c.l.b16 %v30
  %v72 = vpack.c.b16 %v57, %v56
  %v73 = vpack.c.b16 %v59, %v58
  %v74 = vpack.c.b16 %v61, %v60
  %v75 = vpack.c.b16 %v63, %v62
  %v76 = vpack.c.b16 %v65, %v64
  %v77 = vpack.c.b16 %v67, %v66
  %v78 = vpack.c.b16 %v69, %v68
  %v79 = vpack.c.b16 %v71, %v70
  %v82 = vunpack.c.l.b16 %v31
  %v83 = vunpack.c.l.b16 %v32
  %v84 = vpack.c.b16 %v83, %v82
  %vm86 = vcmask 130048
  %v88 = vsel %vm86, %v72, 0
  %v91 = vsel %vm86, %v73, 0
  %v94 = vsel %vm86, %v74, 0
  %v97 = vsel %vm86, %v75, 0
  %v100 = vsel %vm86, %v76, 0
  %v103 = vsel %vm86, %v77, 0
  %v106 = vsel %vm86, %v78, 0
  %v109 = vsel %vm86, %v79, 0
  %111 = vmatprep.subr.bf16.mxu0 0
  %112 = vmatpush1.bf16.msra.mxu0 %v84
  %113 = vmatprep.subr.bf16.mxu0 0
  %114 = vmatpush1.bf16.msra.mxu0 0
  %115 = vmatprep.subr.bf16.mxu0 0
  %116 = vmatpush1.bf16.msra.mxu0 0
  %117 = vmatprep.subr.bf16.mxu0 0
  %118 = vmatpush1.bf16.msra.mxu0 0
  %119 = vmatprep.subr.bf16.mxu0 0
  %120 = vmatpush1.bf16.msra.mxu0 0
  %121 = vmatprep.subr.bf16.mxu0 0
  %122 = vmatpush1.bf16.msra.mxu0 0
  %123 = vmatprep.subr.bf16.mxu0 0
  %124 = vmatpush1.bf16.msra.mxu0 0
  %125 = vmatprep.subr.bf16.mxu0 0
  %126 = vmatpush1.bf16.msra.mxu0 0
  %127 = vmatprep.subr.bf16.mxu0 0
  %128 = vmatpush1.bf16.msra.mxu0 0
  %129 = vmatprep.subr.bf16.mxu0 0
  %130 = vmatpush1.bf16.msra.mxu0 0
  %131 = vmatprep.subr.bf16.mxu0 0
  %132 = vmatpush1.bf16.msra.mxu0 0
  %133 = vmatprep.subr.bf16.mxu0 0
  %134 = vmatpush1.bf16.msra.mxu0 0
  %135 = vmatprep.subr.bf16.mxu0 0
  %136 = vmatpush1.bf16.msra.mxu0 0
  %137 = vmatprep.subr.bf16.mxu0 0
  %138 = vmatpush1.bf16.msra.mxu0 0
  %139 = vmatprep.subr.bf16.mxu0 0
  %140 = vmatpush1.bf16.msra.mxu0 0
  %141 = vmatprep.subr.bf16.mxu0 0
  %142 = vmatpush1.bf16.msra.mxu0 0
  %143 = vmatprep.mubr.bf16.mxu0 0
  %144 = vmatmul.mubr.bf16.gmra.mrb[0].mxu0 %v88
  %v145 = vpop.f32.mrb[0].mxu0
  %v146 = vadd.f32 %v38, %v145
  %v147 = vpop.f32.mrb[0].mxu0
  %v148 = vpop.f32.mrb[0].mxu0
  %v149 = vadd.f32 %v38, %v148
  %v150 = vpop.f32.mrb[0].mxu0
  %151 = vmatprep.mubr.bf16.mxu0 0
  %152 = vmatmul.mubr.bf16.gmra.mrb[0].mxu0 %v91
  %v153 = vpop.f32.mrb[0].mxu0
  %v154 = vadd.f32 %v38, %v153
  %v155 = vpop.f32.mrb[0].mxu0
  %v156 = vpop.f32.mrb[0].mxu0
  %v157 = vadd.f32 %v38, %v156
  %v158 = vpop.f32.mrb[0].mxu0
  %159 = vmatprep.mubr.bf16.mxu0 0
  %160 = vmatmul.mubr.bf16.gmra.mrb[0].mxu0 %v94
  %v161 = vpop.f32.mrb[0].mxu0
  %v162 = vadd.f32 %v38, %v161
  %v163 = vpop.f32.mrb[0].mxu0
  %v164 = vpop.f32.mrb[0].mxu0
  %v165 = vadd.f32 %v38, %v164
  %v166 = vpop.f32.mrb[0].mxu0
  %167 = vmatprep.mubr.bf16.mxu0 0
  %168 = vmatmul.mubr.bf16.gmra.mrb[0].mxu0 %v97
  %v169 = vpop.f32.mrb[0].mxu0
  %v170 = vadd.f32 %v38, %v169
  %v171 = vpop.f32.mrb[0].mxu0
  %v172 = vpop.f32.mrb[0].mxu0
  %v173 = vadd.f32 %v38, %v172
  %v174 = vpop.f32.mrb[0].mxu0
  %175 = vmatprep.mubr.bf16.mxu0 0
  %176 = vmatmul.mubr.bf16.gmra.mrb[0].mxu0 %v100
  %v177 = vpop.f32.mrb[0].mxu0
  %v178 = vadd.f32 %v38, %v177
  %v179 = vpop.f32.mrb[0].mxu0
  %v180 = vpop.f32.mrb[0].mxu0
  %v181 = vadd.f32 %v38, %v180
  %v182 = vpop.f32.mrb[0].mxu0
  %183 = vmatprep.mubr.bf16.mxu0 0
  %184 = vmatmul.mubr.bf16.gmra.mrb[0].mxu0 %v103
  %v185 = vpop.f32.mrb[0].mxu0
  %v186 = vadd.f32 %v38, %v185
  %v187 = vpop.f32.mrb[0].mxu0
  %v188 = vpop.f32.mrb[0].mxu0
  %v189 = vadd.f32 %v38, %v188
  %v190 = vpop.f32.mrb[0].mxu0
  %191 = vmatprep.mubr.bf16.mxu0 0
  %192 = vmatmul.mubr.bf16.gmra.mrb[0].mxu0 %v106
  %v193 = vpop.f32.mrb[0].mxu0
  %v194 = vadd.f32 %v38, %v193
  %v195 = vpop.f32.mrb[0].mxu0
  %v196 = vpop.f32.mrb[0].mxu0
  %v197 = vadd.f32 %v38, %v196
  %v198 = vpop.f32.mrb[0].mxu0
  %199 = vmatprep.mubr.bf16.mxu0 0
  %200 = vmatmul.mubr.bf16.gmra.mrb[0].mxu0 %v109
  %v201 = vpop.f32.mrb[0].mxu0
  %v202 = vadd.f32 %v38, %v201
  %v203 = vpop.f32.mrb[0].mxu0
  %v204 = vpop.f32.mrb[0].mxu0
  %v205 = vadd.f32 %v38, %v204
  %v206 = vpop.f32.mrb[0].mxu0
  %207 = vdwg.mxu0
  %v208 = vmax.f32 %v146, 0.0
  %v209 = vmax.f32 %v149, 0.0
  %v210 = vmax.f32 %v154, 0.0
  %v211 = vmax.f32 %v157, 0.0
  %v212 = vmax.f32 %v162, 0.0
  %v213 = vmax.f32 %v165, 0.0
  %v214 = vmax.f32 %v170, 0.0
  %v215 = vmax.f32 %v173, 0.0
  %v216 = vmax.f32 %v178, 0.0
  %v217 = vmax.f32 %v181, 0.0
  %v218 = vmax.f32 %v186, 0.0
  %v219 = vmax.f32 %v189, 0.0
  %v220 = vmax.f32 %v194, 0.0
  %v221 = vmax.f32 %v197, 0.0
  %v222 = vmax.f32 %v202, 0.0
  %v223 = vmax.f32 %v205, 0.0
  %v224 = vpack.c.bf16 %v209, %v208
  %v225 = vpack.c.bf16 %v211, %v210
  %v226 = vpack.c.bf16 %v213, %v212
  %v227 = vpack.c.bf16 %v215, %v214
  %v228 = vpack.c.bf16 %v217, %v216
  %v229 = vpack.c.bf16 %v219, %v218
  %v230 = vpack.c.bf16 %v221, %v220
  %v231 = vpack.c.bf16 %v223, %v222
  %v240 = vunpack.c.l.b16 %v224
  %v241 = vunpack.c.h.b16 %v224
  %v242 = vunpack.c.l.b16 %v225
  %v243 = vunpack.c.h.b16 %v225
  %v244 = vunpack.c.l.b16 %v226
  %v245 = vunpack.c.h.b16 %v226
  %v246 = vunpack.c.l.b16 %v227
  %v247 = vunpack.c.h.b16 %v227
  %v248 = vunpack.c.l.b16 %v228
  %v249 = vunpack.c.h.b16 %v228
  %v250 = vunpack.c.l.b16 %v229
  %v251 = vunpack.c.h.b16 %v229
  %v252 = vunpack.c.l.b16 %v230
  %v253 = vunpack.c.h.b16 %v230
  %v254 = vunpack.c.l.b16 %v231
  %v255 = vunpack.c.h.b16 %v231
  %v256 = vpack.c.b16 %v240, %v240
  %v257 = vpack.c.b16 %v241, %v241
  %v258 = vpack.c.b16 %v242, %v242
  %v259 = vpack.c.b16 %v243, %v243
  %v260 = vpack.c.b16 %v244, %v244
  %v261 = vpack.c.b16 %v245, %v245
  %v262 = vpack.c.b16 %v246, %v246
  %v263 = vpack.c.b16 %v247, %v247
  %v264 = vpack.c.b16 %v248, %v248
  %v265 = vpack.c.b16 %v249, %v249
  %v266 = vpack.c.b16 %v250, %v250
  %v267 = vpack.c.b16 %v251, %v251
  %v268 = vpack.c.b16 %v252, %v252
  %v269 = vpack.c.b16 %v253, %v253
  %v270 = vpack.c.b16 %v254, %v254
  %v271 = vpack.c.b16 %v255, %v255
  %288 = vst [vmem:[%s3] sm:$0xf] %v256
  %289 = vst [vmem:[%s3 + $0x4] sm:$0xf] %v257
  %290 = vst [vmem:[%s3 + $0x8] sm:$0xf] %v258
  %291 = vst [vmem:[%s3 + $0xc] sm:$0xf] %v259
  %292 = vst [vmem:[%s3 + $0x10] sm:$0xf] %v260
  %293 = vst [vmem:[%s3 + $0x14] sm:$0xf] %v261
  %294 = vst [vmem:[%s3 + $0x18] sm:$0xf] %v262
  %295 = vst [vmem:[%s3 + $0x1c] sm:$0xf] %v263
  %296 = vst [vmem:[%s3 + $0x20] sm:$0xf] %v264
  %297 = vst [vmem:[%s3 + $0x24] sm:$0xf] %v265
  %298 = vst [vmem:[%s3 + $0x28] sm:$0xf] %v266
  %299 = vst [vmem:[%s3 + $0x2c] sm:$0xf] %v267
  %300 = vst [vmem:[%s3 + $0x30] sm:$0xf] %v268
  %301 = vst [vmem:[%s3 + $0x34] sm:$0xf] %v269
  %302 = vst [vmem:[%s3 + $0x38] sm:$0xf] %v270
  %303 = vst [vmem:[%s3 + $0x3c] sm:$0xf] %v271
  // Predicated region
  $region14: #{deepspeech2_forward.8} parent=0 // pred_check
    _
  $region15: #{deepspeech2_forward.8} parent=0 // pred_check_branch
    %305 = sbr.rel (0) target = $region17
  $region16: #{deepspeech2_forward.8} parent=0 // pred_region
    _
  $region17: #{deepspeech2_forward.8} parent=0 // pred_fallthru
    _
  // Predicated region
  $region18: #{deepspeech2_forward.8} parent=0 // pred_check
    _
  $region19: #{deepspeech2_forward.8} parent=0 // pred_check_branch
    %307 = sbr.rel (0) target = $region21
  $region20: #{deepspeech2_forward.8} parent=0 // pred_region
    _
  $region21: #{deepspeech2_forward.8} parent=0 // pred_fallthru
    _

// kernel: deepspeech2_forward.11
$region0: #{deepspeech2_forward.11}
  #allocation0 [shape = 'u32[]', space=smem, size = 0x4, offset = 0x4, fixed_abs, tag = 'smem constant byte address 0x4 - core index']
  #allocation1 [shape = 'u32[144,128]{1,0:T(1,128)}', space=vmem, size = 0x12000, scoped, tag = 'internal scratch']
  %s0 = inlined_call_operand.vmem [shape: bf16[32,128], index: 0, kind: input, shape index: {}]
  %s1 = inlined_call_operand.vmem [shape: bf16[128,384], index: 1, kind: input, shape index: {}]
  %s2 = inlined_call_operand.vmem [shape: f32[1,384], index: 2, kind: input, shape index: {}]
  %s3 = inlined_call_operand.vmem [shape: bf16[32,384], index: 3, kind: output, shape index: {}]
  %s4 = sld [smem:[#allocation0]]
  $region22: #{deepspeech2_forward.11} parent=0
    _
  %s6 = ssub.s32 1, %s4
  %s7 = scalar_select 0, %s6, %s4
  // Predicated region
  $region2: #{deepspeech2_forward.11} parent=0 // pred_check
    _
  $region3: #{deepspeech2_forward.11} parent=0 // pred_check_branch
    %9 = sbr.rel (0) target = $region5
  $region4: #{deepspeech2_forward.11} parent=0 // pred_region
    _
  $region5: #{deepspeech2_forward.11} parent=0 // pred_fallthru
    _
  // Predicated region
  $region6: #{deepspeech2_forward.11} parent=0 // pred_check
    _
  $region7: #{deepspeech2_forward.11} parent=0 // pred_check_branch
    %11 = sbr.rel (0) target = $region9
  $region8: #{deepspeech2_forward.11} parent=0 // pred_region
    _
  $region9: #{deepspeech2_forward.11} parent=0 // pred_fallthru
    _
  // Predicated region
  $region10: #{deepspeech2_forward.11} parent=0 // pred_check
    _
  $region11: #{deepspeech2_forward.11} parent=0 // pred_check_branch
    %13 = sbr.rel (0) target = $region13
  $region12: #{deepspeech2_forward.11} parent=0 // pred_region
    _
  $region13: #{deepspeech2_forward.11} parent=0 // pred_fallthru
    _
  %v15 = vld [vmem:[%s0] sm:$0xf]
  %v16 = vld [vmem:[%s0 + $0x4] sm:$0xf]
  %v17 = vld [vmem:[%s0 + $0x8] sm:$0xf]
  %v18 = vld [vmem:[%s0 + $0xc] sm:$0xf]
  %v19 = vld [vmem:[%s1] sm:$0xff]
  %v20 = vld [vmem:[%s1 + $0x8] sm:$0xf]
  %v21 = vld [vmem:[%s1 + $0xc] sm:$0xff]
  %v22 = vld [vmem:[%s1 + $0x14] sm:$0xf]
  %v23 = vld [vmem:[%s1 + $0x18] sm:$0xff]
  %v24 = vld [vmem:[%s1 + $0x20] sm:$0xf]
  %v25 = vld [vmem:[%s1 + $0x24] sm:$0xff]
  %v26 = vld [vmem:[%s1 + $0x2c] sm:$0xf]
  %v27 = vld [vmem:[%s1 + $0x30] sm:$0xff]
  %v28 = vld [vmem:[%s1 + $0x38] sm:$0xf]
  %v29 = vld [vmem:[%s1 + $0x3c] sm:$0xff]
  %v30 = vld [vmem:[%s1 + $0x44] sm:$0xf]
  %v31 = vld [vmem:[%s1 + $0x48] sm:$0xff]
  %v32 = vld [vmem:[%s1 + $0x50] sm:$0xf]
  %v33 = vld [vmem:[%s1 + $0x54] sm:$0xff]
  %v34 = vld [vmem:[%s1 + $0x5c] sm:$0xf]
  %v35 = vld [vmem:[%s1 + $0x60] sm:$0xff]
  %v36 = vld [vmem:[%s1 + $0x68] sm:$0xf]
  %v37 = vld [vmem:[%s1 + $0x6c] sm:$0xff]
  %v38 = vld [vmem:[%s1 + $0x74] sm:$0xf]
  %v39 = vld [vmem:[%s1 + $0x78] sm:$0xff]
  %v40 = vld [vmem:[%s1 + $0x80] sm:$0xf]
  %v41 = vld [vmem:[%s1 + $0x84] sm:$0xff]
  %v42 = vld [vmem:[%s1 + $0x8c] sm:$0xf]
  %v43 = vld [vmem:[%s1 + $0x90] sm:$0xff]
  %v44 = vld [vmem:[%s1 + $0x98] sm:$0xf]
  %v45 = vld [vmem:[%s1 + $0x9c] sm:$0xff]
  %v46 = vld [vmem:[%s1 + $0xa4] sm:$0xf]
  %v47 = vld [vmem:[%s1 + $0xa8] sm:$0xff]
  %v48 = vld [vmem:[%s1 + $0xb0] sm:$0xf]
  %v49 = vld [vmem:[%s1 + $0xb4] sm:$0xff]
  %v50 = vld [vmem:[%s1 + $0xbc] sm:$0xf]
  %v51 = vld [vmem:[%s2] sm:$0x7]
  %v53 = vlaneseq
  %v54 = vshrl.u32 %v53, 7
  %v55 = vsub.s32 0, %v54
  %v56 = vrot.slane %v51, %v55
  %v57 = vlaneseq
  %v58 = vshrl.u32 %v57, 7
  %v59 = vsub.s32 1, %v58
  %v60 = vrot.slane %v51, %v59
  %v61 = vlaneseq
  %v62 = vshrl.u32 %v61, 7
  %v63 = vsub.s32 2, %v62
  %v64 = vrot.slane %v51, %v63
  %v72 = vunpack.c.l.b16 %v15
  %v73 = vunpack.c.l.b16 %v16
  %v74 = vunpack.c.l.b16 %v17
  %v75 = vunpack.c.l.b16 %v18
  %v76 = vpack.c.b16 %v73, %v72
  %v77 = vpack.c.b16 %v75, %v74
  %v112 = vunpack.c.l.b16 %v19
  %v113 = vunpack.c.h.b16 %v19
  %v114 = vunpack.c.l.b16 %v20
  %v115 = vunpack.c.l.b16 %v21
  %v116 = vunpack.c.h.b16 %v21
  %v117 = vunpack.c.l.b16 %v22
  %v118 = vunpack.c.l.b16 %v23
  %v119 = vunpack.c.h.b16 %v23
  %v120 = vunpack.c.l.b16 %v24
  %v121 = vunpack.c.l.b16 %v25
  %v122 = vunpack.c.h.b16 %v25
  %v123 = vunpack.c.l.b16 %v26
  %v124 = vunpack.c.l.b16 %v27
  %v125 = vunpack.c.h.b16 %v27
  %v126 = vunpack.c.l.b16 %v28
  %v127 = vunpack.c.l.b16 %v29
  %v128 = vunpack.c.h.b16 %v29
  %v129 = vunpack.c.l.b16 %v30
  %v130 = vunpack.c.l.b16 %v31
  %v131 = vunpack.c.h.b16 %v31
  %v132 = vunpack.c.l.b16 %v32
  %v133 = vunpack.c.l.b16 %v33
  %v134 = vunpack.c.h.b16 %v33
  %v135 = vunpack.c.l.b16 %v34
  %v136 = vunpack.c.l.b16 %v35
  %v137 = vunpack.c.h.b16 %v35
  %v138 = vunpack.c.l.b16 %v36
  %v139 = vunpack.c.l.b16 %v37
  %v140 = vunpack.c.h.b16 %v37
  %v141 = vunpack.c.l.b16 %v38
  %v142 = vunpack.c.l.b16 %v39
  %v143 = vunpack.c.h.b16 %v39
  %v144 = vunpack.c.l.b16 %v40
  %v145 = vunpack.c.l.b16 %v41
  %v146 = vunpack.c.h.b16 %v41
  %v147 = vunpack.c.l.b16 %v42
  %v148 = vunpack.c.l.b16 %v43
  %v149 = vunpack.c.h.b16 %v43
  %v150 = vunpack.c.l.b16 %v44
  %v151 = vunpack.c.l.b16 %v45
  %v152 = vunpack.c.h.b16 %v45
  %v153 = vunpack.c.l.b16 %v46
  %v154 = vunpack.c.l.b16 %v47
  %v155 = vunpack.c.h.b16 %v47
  %v156 = vunpack.c.l.b16 %v48
  %v157 = vunpack.c.l.b16 %v49
  %v158 = vunpack.c.h.b16 %v49
  %v159 = vunpack.c.l.b16 %v50
  %v160 = vpack.c.b16 %v115, %v112
  %v161 = vpack.c.b16 %v116, %v113
  %v162 = vpack.c.b16 %v117, %v114
  %v163 = vpack.c.b16 %v121, %v118
  %v164 = vpack.c.b16 %v122, %v119
  %v165 = vpack.c.b16 %v123, %v120
  %v166 = vpack.c.b16 %v127, %v124
  %v167 = vpack.c.b16 %v128, %v125
  %v168 = vpack.c.b16 %v129, %v126
  %v169 = vpack.c.b16 %v133, %v130
  %v170 = vpack.c.b16 %v134, %v131
  %v171 = vpack.c.b16 %v135, %v132
  %v172 = vpack.c.b16 %v139, %v136
  %v173 = vpack.c.b16 %v140, %v137
  %v174 = vpack.c.b16 %v141, %v138
  %v175 = vpack.c.b16 %v145, %v142
  %v176 = vpack.c.b16 %v146, %v143
  %v177 = vpack.c.b16 %v147, %v144
  %v178 = vpack.c.b16 %v151, %v148
  %v179 = vpack.c.b16 %v152, %v149
  %v180 = vpack.c.b16 %v153, %v150
  %v181 = vpack.c.b16 %v157, %v154
  %v182 = vpack.c.b16 %v158, %v155
  %v183 = vpack.c.b16 %v159, %v156
  %208 = vmatprep.subr.bf16.mxu0 %v161
  %209 = vmatpush1.bf16.msra.mxu0 %v160
  %210 = vmatprep.subr.bf16.mxu0 %v164
  %211 = vmatpush1.bf16.msra.mxu0 %v163
  %212 = vmatprep.subr.bf16.mxu0 %v167
  %213 = vmatpush1.bf16.msra.mxu0 %v166
  %214 = vmatprep.subr.bf16.mxu0 %v170
  %215 = vmatpush1.bf16.msra.mxu0 %v169
  %216 = vmatprep.subr.bf16.mxu0 %v173
  %217 = vmatpush1.bf16.msra.mxu0 %v172
  %218 = vmatprep.subr.bf16.mxu0 %v176
  %219 = vmatpush1.bf16.msra.mxu0 %v175
  %220 = vmatprep.subr.bf16.mxu0 %v179
  %221 = vmatpush1.bf16.msra.mxu0 %v178
  %222 = vmatprep.subr.bf16.mxu0 %v182
  %223 = vmatpush1.bf16.msra.mxu0 %v181
  %224 = vmatprep.subr.bf16.mxu0 0
  %225 = vmatpush1.bf16.msra.mxu0 0
  %226 = vmatprep.subr.bf16.mxu0 0
  %227 = vmatpush1.bf16.msra.mxu0 0
  %228 = vmatprep.subr.bf16.mxu0 0
  %229 = vmatpush1.bf16.msra.mxu0 0
  %230 = vmatprep.subr.bf16.mxu0 0
  %231 = vmatpush1.bf16.msra.mxu0 0
  %232 = vmatprep.subr.bf16.mxu0 0
  %233 = vmatpush1.bf16.msra.mxu0 0
  %234 = vmatprep.subr.bf16.mxu0 0
  %235 = vmatpush1.bf16.msra.mxu0 0
  %236 = vmatprep.subr.bf16.mxu0 0
  %237 = vmatpush1.bf16.msra.mxu0 0
  %238 = vmatprep.subr.bf16.mxu0 0
  %239 = vmatpush1.bf16.msra.mxu0 0
  %240 = vmatprep.mubr.bf16.mxu0 0
  %241 = vmatmul.mubr.bf16.gmra.mrb[0].mxu0 %v76
  %v242 = vpop.f32.mrb[0].mxu0
  %v243 = vadd.f32 %v56, %v242
  %v244 = vpop.f32.mrb[0].mxu0
  %v245 = vadd.f32 %v60, %v244
  %v246 = vpop.f32.mrb[0].mxu0
  %v247 = vadd.f32 %v56, %v246
  %v248 = vpop.f32.mrb[0].mxu0
  %v249 = vadd.f32 %v60, %v248
  %250 = vmatprep.mubr.bf16.mxu0 0
  %251 = vmatmul.mubr.bf16.gmra.mrb[0].mxu0 %v77
  %v252 = vpop.f32.mrb[0].mxu0
  %v253 = vadd.f32 %v56, %v252
  %v254 = vpop.f32.mrb[0].mxu0
  %v255 = vadd.f32 %v60, %v254
  %v256 = vpop.f32.mrb[0].mxu0
  %v257 = vadd.f32 %v56, %v256
  %v258 = vpop.f32.mrb[0].mxu0
  %v259 = vadd.f32 %v60, %v258
  %260 = vdwg.mxu0
  %261 = vmatprep.subr.bf16.mxu0 0
  %262 = vmatpush1.bf16.msra.mxu0 %v162
  %263 = vmatprep.subr.bf16.mxu0 0
  %264 = vmatpush1.bf16.msra.mxu0 %v165
  %265 = vmatprep.subr.bf16.mxu0 0
  %266 = vmatpush1.bf16.msra.mxu0 %v168
  %267 = vmatprep.subr.bf16.mxu0 0
  %268 = vmatpush1.bf16.msra.mxu0 %v171
  %269 = vmatprep.subr.bf16.mxu0 0
  %270 = vmatpush1.bf16.msra.mxu0 %v174
  %271 = vmatprep.subr.bf16.mxu0 0
  %272 = vmatpush1.bf16.msra.mxu0 %v177
  %273 = vmatprep.subr.bf16.mxu0 0
  %274 = vmatpush1.bf16.msra.mxu0 %v180
  %275 = vmatprep.subr.bf16.mxu0 0
  %276 = vmatpush1.bf16.msra.mxu0 %v183
  %277 = vmatprep.subr.bf16.mxu0 0
  %278 = vmatpush1.bf16.msra.mxu0 0
  %279 = vmatprep.subr.bf16.mxu0 0
  %280 = vmatpush1.bf16.msra.mxu0 0
  %281 = vmatprep.subr.bf16.mxu0 0
  %282 = vmatpush1.bf16.msra.mxu0 0
  %283 = vmatprep.subr.bf16.mxu0 0
  %284 = vmatpush1.bf16.msra.mxu0 0
  %285 = vmatprep.subr.bf16.mxu0 0
  %286 = vmatpush1.bf16.msra.mxu0 0
  %287 = vmatprep.subr.bf16.mxu0 0
  %288 = vmatpush1.bf16.msra.mxu0 0
  %289 = vmatprep.subr.bf16.mxu0 0
  %290 = vmatpush1.bf16.msra.mxu0 0
  %291 = vmatprep.subr.bf16.mxu0 0
  %292 = vmatpush1.bf16.msra.mxu0 0
  %293 = vmatprep.mubr.bf16.mxu0 0
  %294 = vmatmul.mubr.bf16.gmra.mrb[0].mxu0 %v76
  %v295 = vpop.f32.mrb[0].mxu0
  %v296 = vadd.f32 %v64, %v295
  %v297 = vpop.f32.mrb[0].mxu0
  %v298 = vpop.f32.mrb[0].mxu0
  %v299 = vadd.f32 %v64, %v298
  %v300 = vpop.f32.mrb[0].mxu0
  %301 = vmatprep.mubr.bf16.mxu0 0
  %302 = vmatmul.mubr.bf16.gmra.mrb[0].mxu0 %v77
  %v303 = vpop.f32.mrb[0].mxu0
  %v304 = vadd.f32 %v64, %v303
  %v305 = vpop.f32.mrb[0].mxu0
  %v306 = vpop.f32.mrb[0].mxu0
  %v307 = vadd.f32 %v64, %v306
  %v308 = vpop.f32.mrb[0].mxu0
  %309 = vdwg.mxu0
  %v310 = vpack.c.bf16 %v247, %v243
  %v311 = vpack.c.bf16 %v249, %v245
  %v312 = vpack.c.bf16 %v299, %v296
  %v313 = vpack.c.bf16 %v257, %v253
  %v314 = vpack.c.bf16 %v259, %v255
  %v315 = vpack.c.bf16 %v307, %v304
  %v322 = vunpack.c.l.b16 %v310
  %v323 = vunpack.c.l.b16 %v311
  %v324 = vunpack.c.l.b16 %v312
  %v325 = vunpack.c.h.b16 %v310
  %v326 = vunpack.c.h.b16 %v311
  %v327 = vunpack.c.h.b16 %v312
  %v328 = vunpack.c.l.b16 %v313
  %v329 = vunpack.c.l.b16 %v314
  %v330 = vunpack.c.l.b16 %v315
  %v331 = vunpack.c.h.b16 %v313
  %v332 = vunpack.c.h.b16 %v314
  %v333 = vunpack.c.h.b16 %v315
  %v334 = vpack.c.b16 %v323, %v322
  %v335 = vpack.c.b16 %v324, %v324
  %v336 = vpack.c.b16 %v326, %v325
  %v337 = vpack.c.b16 %v327, %v327
  %v338 = vpack.c.b16 %v329, %v328
  %v339 = vpack.c.b16 %v330, %v330
  %v340 = vpack.c.b16 %v332, %v331
  %v341 = vpack.c.b16 %v333, %v333
  %350 = vst [vmem:[%s3] sm:$0xff] %v334
  %351 = vst [vmem:[%s3 + $0x8] sm:$0xf] %v335
  %352 = vst [vmem:[%s3 + $0xc] sm:$0xff] %v336
  %353 = vst [vmem:[%s3 + $0x14] sm:$0xf] %v337
  %354 = vst [vmem:[%s3 + $0x18] sm:$0xff] %v338
  %355 = vst [vmem:[%s3 + $0x20] sm:$0xf] %v339
  %356 = vst [vmem:[%s3 + $0x24] sm:$0xff] %v340
  %357 = vst [vmem:[%s3 + $0x2c] sm:$0xf] %v341
  // Predicated region
  $region14: #{deepspeech2_forward.11} parent=0 // pred_check
    _
  $region15: #{deepspeech2_forward.11} parent=0 // pred_check_branch
    %359 = sbr.rel (0) target = $region17
  $region16: #{deepspeech2_forward.11} parent=0 // pred_region
    _
  $region17: #{deepspeech2_forward.11} parent=0 // pred_fallthru
    _
  // Predicated region
  $region18: #{deepspeech2_forward.11} parent=0 // pred_check
    _
  $region19: #{deepspeech2_forward.11} parent=0 // pred_check_branch
    %361 = sbr.rel (0) target = $region21
  $region20: #{deepspeech2_forward.11} parent=0 // pred_region
    _
  $region21: #{deepspeech2_forward.11} parent=0 // pred_fallthru
    _

// kernel: deepspeech2_forward.10
$region0: #{deepspeech2_forward.10}
  #allocation0 [shape = 'u32[]', space=smem, size = 0x4, offset = 0x4, fixed_abs, tag = 'smem constant byte address 0x4 - core index']
  #allocation1 [shape = 'u32[144,128]{1,0:T(1,128)}', space=vmem, size = 0x12000, scoped, tag = 'internal scratch']
  %s0 = inlined_call_operand.vmem [shape: bf16[8,512], index: 0, kind: input, shape index: {}]
  %s1 = inlined_call_operand.vmem [shape: bf16[512,128], index: 1, kind: input, shape index: {}]
  %s2 = inlined_call_operand.vmem [shape: f32[1,128], index: 2, kind: input, shape index: {}]
  %s3 = inlined_call_operand.vmem [shape: bf16[8,128], index: 3, kind: output, shape index: {}]
  %s4 = sld [smem:[#allocation0]]
  $region22: #{deepspeech2_forward.10} parent=0
    _
  %s6 = ssub.s32 1, %s4
  %s7 = scalar_select 0, %s6, %s4
  // Predicated region
  $region2: #{deepspeech2_forward.10} parent=0 // pred_check
    _
  $region3: #{deepspeech2_forward.10} parent=0 // pred_check_branch
    %9 = sbr.rel (0) target = $region5
  $region4: #{deepspeech2_forward.10} parent=0 // pred_region
    _
  $region5: #{deepspeech2_forward.10} parent=0 // pred_fallthru
    _
  // Predicated region
  $region6: #{deepspeech2_forward.10} parent=0 // pred_check
    _
  $region7: #{deepspeech2_forward.10} parent=0 // pred_check_branch
    %11 = sbr.rel (0) target = $region9
  $region8: #{deepspeech2_forward.10} parent=0 // pred_region
    _
  $region9: #{deepspeech2_forward.10} parent=0 // pred_fallthru
    _
  // Predicated region
  $region10: #{deepspeech2_forward.10} parent=0 // pred_check
    _
  $region11: #{deepspeech2_forward.10} parent=0 // pred_check_branch
    %13 = sbr.rel (0) target = $region13
  $region12: #{deepspeech2_forward.10} parent=0 // pred_region
    _
  $region13: #{deepspeech2_forward.10} parent=0 // pred_fallthru
    _
  %v15 = vld [vmem:[%s0] sm:$0xff]
  %v16 = vld [vmem:[%s0 + $0x8] sm:$0xff]
  %v17 = vld [vmem:[%s1] sm:$0xf]
  %v18 = vld [vmem:[%s1 + $0x4] sm:$0xf]
  %v19 = vld [vmem:[%s1 + $0x8] sm:$0xf]
  %v20 = vld [vmem:[%s1 + $0xc] sm:$0xf]
  %v21 = vld [vmem:[%s1 + $0x10] sm:$0xf]
  %v22 = vld [vmem:[%s1 + $0x14] sm:$0xf]
  %v23 = vld [vmem:[%s1 + $0x18] sm:$0xf]
  %v24 = vld [vmem:[%s1 + $0x1c] sm:$0xf]
  %v25 = vld [vmem:[%s1 + $0x20] sm:$0xf]
  %v26 = vld [vmem:[%s1 + $0x24] sm:$0xf]
  %v27 = vld [vmem:[%s1 + $0x28] sm:$0xf]
  %v28 = vld [vmem:[%s1 + $0x2c] sm:$0xf]
  %v29 = vld [vmem:[%s1 + $0x30] sm:$0xf]
  %v30 = vld [vmem:[%s1 + $0x34] sm:$0xf]
  %v31 = vld [vmem:[%s1 + $0x38] sm:$0xf]
  %v32 = vld [vmem:[%s1 + $0x3c] sm:$0xf]
  %v33 = vld [vmem:[%s1 + $0x40] sm:$0xf]
  %v34 = vld [vmem:[%s1 + $0x44] sm:$0xf]
  %v35 = vld [vmem:[%s1 + $0x48] sm:$0xf]
  %v36 = vld [vmem:[%s1 + $0x4c] sm:$0xf]
  %v37 = vld [vmem:[%s1 + $0x50] sm:$0xf]
  %v38 = vld [vmem:[%s1 + $0x54] sm:$0xf]
  %v39 = vld [vmem:[%s1 + $0x58] sm:$0xf]
  %v40 = vld [vmem:[%s1 + $0x5c] sm:$0xf]
  %v41 = vld [vmem:[%s1 + $0x60] sm:$0xf]
  %v42 = vld [vmem:[%s1 + $0x64] sm:$0xf]
  %v43 = vld [vmem:[%s1 + $0x68] sm:$0xf]
  %v44 = vld [vmem:[%s1 + $0x6c] sm:$0xf]
  %v45 = vld [vmem:[%s1 + $0x70] sm:$0xf]
  %v46 = vld [vmem:[%s1 + $0x74] sm:$0xf]
  %v47 = vld [vmem:[%s1 + $0x78] sm:$0xf]
  %v48 = vld [vmem:[%s1 + $0x7c] sm:$0xf]
  %v49 = vld [vmem:[%s1 + $0x80] sm:$0xf]
  %v50 = vld [vmem:[%s1 + $0x84] sm:$0xf]
  %v51 = vld [vmem:[%s1 + $0x88] sm:$0xf]
  %v52 = vld [vmem:[%s1 + $0x8c] sm:$0xf]
  %v53 = vld [vmem:[%s1 + $0x90] sm:$0xf]
  %v54 = vld [vmem:[%s1 + $0x94] sm:$0xf]
  %v55 = vld [vmem:[%s1 + $0x98] sm:$0xf]
  %v56 = vld [vmem:[%s1 + $0x9c] sm:$0xf]
  %v57 = vld [vmem:[%s1 + $0xa0] sm:$0xf]
  %v58 = vld [vmem:[%s1 + $0xa4] sm:$0xf]
  %v59 = vld [vmem:[%s1 + $0xa8] sm:$0xf]
  %v60 = vld [vmem:[%s1 + $0xac] sm:$0xf]
  %v61 = vld [vmem:[%s1 + $0xb0] sm:$0xf]
  %v62 = vld [vmem:[%s1 + $0xb4] sm:$0xf]
  %v63 = vld [vmem:[%s1 + $0xb8] sm:$0xf]
  %v64 = vld [vmem:[%s1 + $0xbc] sm:$0xf]
  %v65 = vld [vmem:[%s1 + $0xc0] sm:$0xf]
  %v66 = vld [vmem:[%s1 + $0xc4] sm:$0xf]
  %v67 = vld [vmem:[%s1 + $0xc8] sm:$0xf]
  %v68 = vld [vmem:[%s1 + $0xcc] sm:$0xf]
  %v69 = vld [vmem:[%s1 + $0xd0] sm:$0xf]
  %v70 = vld [vmem:[%s1 + $0xd4] sm:$0xf]
  %v71 = vld [vmem:[%s1 + $0xd8] sm:$0xf]
  %v72 = vld [vmem:[%s1 + $0xdc] sm:$0xf]
  %v73 = vld [vmem:[%s1 + $0xe0] sm:$0xf]
  %v74 = vld [vmem:[%s1 + $0xe4] sm:$0xf]
  %v75 = vld [vmem:[%s1 + $0xe8] sm:$0xf]
  %v76 = vld [vmem:[%s1 + $0xec] sm:$0xf]
  %v77 = vld [vmem:[%s1 + $0xf0] sm:$0xf]
  %v78 = vld [vmem:[%s1 + $0xf4] sm:$0xf]
  %v79 = vld [vmem:[%s1 + $0xf8] sm:$0xf]
  %v80 = vld [vmem:[%s1 + $0xfc] sm:$0xf]
  %v81 = vld [vmem:[%s2] sm:$0x1]
  %v83 = vlaneseq
  %v84 = vshrl.u32 %v83, 7
  %v85 = vsub.s32 0, %v84
  %v86 = vrot.slane %v81, %v85
  %v90 = vunpack.c.l.b16 %v15
  %v91 = vunpack.c.h.b16 %v15
  %v92 = vunpack.c.l.b16 %v16
  %v93 = vunpack.c.h.b16 %v16
  %v94 = vpack.c.b16 %v90, %v90
  %v95 = vpack.c.b16 %v91, %v91
  %v96 = vpack.c.b16 %v92, %v92
  %v97 = vpack.c.b16 %v93, %v93
  %v166 = vunpack.c.l.b16 %v17
  %v167 = vunpack.c.l.b16 %v18
  %v168 = vunpack.c.l.b16 %v19
  %v169 = vunpack.c.l.b16 %v20
  %v170 = vunpack.c.l.b16 %v21
  %v171 = vunpack.c.l.b16 %v22
  %v172 = vunpack.c.l.b16 %v23
  %v173 = vunpack.c.l.b16 %v24
  %v174 = vunpack.c.l.b16 %v25
  %v175 = vunpack.c.l.b16 %v26
  %v176 = vunpack.c.l.b16 %v27
  %v177 = vunpack.c.l.b16 %v28
  %v178 = vunpack.c.l.b16 %v29
  %v179 = vunpack.c.l.b16 %v30
  %v180 = vunpack.c.l.b16 %v31
  %v181 = vunpack.c.l.b16 %v32
  %v182 = vunpack.c.l.b16 %v33
  %v183 = vunpack.c.l.b16 %v34
  %v184 = vunpack.c.l.b16 %v35
  %v185 = vunpack.c.l.b16 %v36
  %v186 = vunpack.c.l.b16 %v37
  %v187 = vunpack.c.l.b16 %v38
  %v188 = vunpack.c.l.b16 %v39
  %v189 = vunpack.c.l.b16 %v40
  %v190 = vunpack.c.l.b16 %v41
  %v191 = vunpack.c.l.b16 %v42
  %v192 = vunpack.c.l.b16 %v43
  %v193 = vunpack.c.l.b16 %v44
  %v194 = vunpack.c.l.b16 %v45
  %v195 = vunpack.c.l.b16 %v46
  %v196 = vunpack.c.l.b16 %v47
  %v197 = vunpack.c.l.b16 %v48
  %v198 = vunpack.c.l.b16 %v49
  %v199 = vunpack.c.l.b16 %v50
  %v200 = vunpack.c.l.b16 %v51
  %v201 = vunpack.c.l.b16 %v52
  %v202 = vunpack.c.l.b16 %v53
  %v203 = vunpack.c.l.b16 %v54
  %v204 = vunpack.c.l.b16 %v55
  %v205 = vunpack.c.l.b16 %v56
  %v206 = vunpack.c.l.b16 %v57
  %v207 = vunpack.c.l.b16 %v58
  %v208 = vunpack.c.l.b16 %v59
  %v209 = vunpack.c.l.b16 %v60
  %v210 = vunpack.c.l.b16 %v61
  %v211 = vunpack.c.l.b16 %v62
  %v212 = vunpack.c.l.b16 %v63
  %v213 = vunpack.c.l.b16 %v64
  %v214 = vunpack.c.l.b16 %v65
  %v215 = vunpack.c.l.b16 %v66
  %v216 = vunpack.c.l.b16 %v67
  %v217 = vunpack.c.l.b16 %v68
  %v218 = vunpack.c.l.b16 %v69
  %v219 = vunpack.c.l.b16 %v70
  %v220 = vunpack.c.l.b16 %v71
  %v221 = vunpack.c.l.b16 %v72
  %v222 = vunpack.c.l.b16 %v73
  %v223 = vunpack.c.l.b16 %v74
  %v224 = vunpack.c.l.b16 %v75
  %v225 = vunpack.c.l.b16 %v76
  %v226 = vunpack.c.l.b16 %v77
  %v227 = vunpack.c.l.b16 %v78
  %v228 = vunpack.c.l.b16 %v79
  %v229 = vunpack.c.l.b16 %v80
  %v230 = vpack.c.b16 %v167, %v166
  %v231 = vpack.c.b16 %v169, %v168
  %v232 = vpack.c.b16 %v171, %v170
  %v233 = vpack.c.b16 %v173, %v172
  %v234 = vpack.c.b16 %v175, %v174
  %v235 = vpack.c.b16 %v177, %v176
  %v236 = vpack.c.b16 %v179, %v178
  %v237 = vpack.c.b16 %v181, %v180
  %v238 = vpack.c.b16 %v183, %v182
  %v239 = vpack.c.b16 %v185, %v184
  %v240 = vpack.c.b16 %v187, %v186
  %v241 = vpack.c.b16 %v189, %v188
  %v242 = vpack.c.b16 %v191, %v190
  %v243 = vpack.c.b16 %v193, %v192
  %v244 = vpack.c.b16 %v195, %v194
  %v245 = vpack.c.b16 %v197, %v196
  %v246 = vpack.c.b16 %v199, %v198
  %v247 = vpack.c.b16 %v201, %v200
  %v248 = vpack.c.b16 %v203, %v202
  %v249 = vpack.c.b16 %v205, %v204
  %v250 = vpack.c.b16 %v207, %v206
  %v251 = vpack.c.b16 %v209, %v208
  %v252 = vpack.c.b16 %v211, %v210
  %v253 = vpack.c.b16 %v213, %v212
  %v254 = vpack.c.b16 %v215, %v214
  %v255 = vpack.c.b16 %v217, %v216
  %v256 = vpack.c.b16 %v219, %v218
  %v257 = vpack.c.b16 %v221, %v220
  %v258 = vpack.c.b16 %v223, %v222
  %v259 = vpack.c.b16 %v225, %v224
  %v260 = vpack.c.b16 %v227, %v226
  %v261 = vpack.c.b16 %v229, %v228
  %294 = vmatprep.subr.bf16.mxu0 0
  %295 = vmatpush1.bf16.msra.mxu0 %v230
  %296 = vmatprep.subr.bf16.mxu0 0
  %297 = vmatpush1.bf16.msra.mxu0 %v231
  %298 = vmatprep.subr.bf16.mxu0 0
  %299 = vmatpush1.bf16.msra.mxu0 %v232
  %300 = vmatprep.subr.bf16.mxu0 0
  %301 = vmatpush1.bf16.msra.mxu0 %v233
  %302 = vmatprep.subr.bf16.mxu0 0
  %303 = vmatpush1.bf16.msra.mxu0 %v234
  %304 = vmatprep.subr.bf16.mxu0 0
  %305 = vmatpush1.bf16.msra.mxu0 %v235
  %306 = vmatprep.subr.bf16.mxu0 0
  %307 = vmatpush1.bf16.msra.mxu0 %v236
  %308 = vmatprep.subr.bf16.mxu0 0
  %309 = vmatpush1.bf16.msra.mxu0 %v237
  %310 = vmatprep.subr.bf16.mxu0 0
  %311 = vmatpush1.bf16.msra.mxu0 %v238
  %312 = vmatprep.subr.bf16.mxu0 0
  %313 = vmatpush1.bf16.msra.mxu0 %v239
  %314 = vmatprep.subr.bf16.mxu0 0
  %315 = vmatpush1.bf16.msra.mxu0 %v240
  %316 = vmatprep.subr.bf16.mxu0 0
  %317 = vmatpush1.bf16.msra.mxu0 %v241
  %318 = vmatprep.subr.bf16.mxu0 0
  %319 = vmatpush1.bf16.msra.mxu0 %v242
  %320 = vmatprep.subr.bf16.mxu0 0
  %321 = vmatpush1.bf16.msra.mxu0 %v243
  %322 = vmatprep.subr.bf16.mxu0 0
  %323 = vmatpush1.bf16.msra.mxu0 %v244
  %324 = vmatprep.subr.bf16.mxu0 0
  %325 = vmatpush1.bf16.msra.mxu0 %v245
  %326 = vmatprep.mubr.bf16.mxu0 %v95
  %327 = vmatmul.mubr.bf16.gmra.mrb[0].mxu0 %v94
  %v328 = vpop.f32.mrb[0].mxu0
  %v329 = vadd.f32 %v86, %v328
  %v330 = vpop.f32.mrb[0].mxu0
  %v331 = vpop.f32.mrb[0].mxu0
  %v332 = vpop.f32.mrb[0].mxu0
  %333 = vdwg.mxu0
  %334 = vmatprep.subr.bf16.mxu0 0
  %335 = vmatpush1.bf16.msra.mxu0 %v246
  %336 = vmatprep.subr.bf16.mxu0 0
  %337 = vmatpush1.bf16.msra.mxu0 %v247
  %338 = vmatprep.subr.bf16.mxu0 0
  %339 = vmatpush1.bf16.msra.mxu0 %v248
  %340 = vmatprep.subr.bf16.mxu0 0
  %341 = vmatpush1.bf16.msra.mxu0 %v249
  %342 = vmatprep.subr.bf16.mxu0 0
  %343 = vmatpush1.bf16.msra.mxu0 %v250
  %344 = vmatprep.subr.bf16.mxu0 0
  %345 = vmatpush1.bf16.msra.mxu0 %v251
  %346 = vmatprep.subr.bf16.mxu0 0
  %347 = vmatpush1.bf16.msra.mxu0 %v252
  %348 = vmatprep.subr.bf16.mxu0 0
  %349 = vmatpush1.bf16.msra.mxu0 %v253
  %350 = vmatprep.subr.bf16.mxu0 0
  %351 = vmatpush1.bf16.msra.mxu0 %v254
  %352 = vmatprep.subr.bf16.mxu0 0
  %353 = vmatpush1.bf16.msra.mxu0 %v255
  %354 = vmatprep.subr.bf16.mxu0 0
  %355 = vmatpush1.bf16.msra.mxu0 %v256
  %356 = vmatprep.subr.bf16.mxu0 0
  %357 = vmatpush1.bf16.msra.mxu0 %v257
  %358 = vmatprep.subr.bf16.mxu0 0
  %359 = vmatpush1.bf16.msra.mxu0 %v258
  %360 = vmatprep.subr.bf16.mxu0 0
  %361 = vmatpush1.bf16.msra.mxu0 %v259
  %362 = vmatprep.subr.bf16.mxu0 0
  %363 = vmatpush1.bf16.msra.mxu0 %v260
  %364 = vmatprep.subr.bf16.mxu0 0
  %365 = vmatpush1.bf16.msra.mxu0 %v261
  %366 = vmatprep.mubr.bf16.mxu0 %v97
  %367 = vmatmul.mubr.bf16.gmra.mrb[0].mxu0 %v96
  %v368 = vpop.f32.mrb[0].mxu0
  %v369 = vadd.f32 %v329, %v368
  %v370 = vpop.f32.mrb[0].mxu0
  %v371 = vpop.f32.mrb[0].mxu0
  %v372 = vpop.f32.mrb[0].mxu0
  %373 = vdwg.mxu0
  %v374 = vpack.c.bf16 %v369, %v369
  %375 = vst [vmem:[%s3] sm:$0xf] %v374
  // Predicated region
  $region14: #{deepspeech2_forward.10} parent=0 // pred_check
    _
  $region15: #{deepspeech2_forward.10} parent=0 // pred_check_branch
    %377 = sbr.rel (0) target = $region17
  $region16: #{deepspeech2_forward.10} parent=0 // pred_region
    _
  $region17: #{deepspeech2_forward.10} parent=0 // pred_fallthru
    _
  // Predicated region
  $region18: #{deepspeech2_forward.10} parent=0 // pred_check
    _
  $region19: #{deepspeech2_forward.10} parent=0 // pred_check_branch
    %379 = sbr.rel (0) target = $region21
  $region20: #{deepspeech2_forward.10} parent=0 // pred_region
    _
  $region21: #{deepspeech2_forward.10} parent=0 // pred_fallthru
    _

// kernel: deepspeech2_forward.15
$region0: #{deepspeech2_forward.15}
  #allocation0 [shape = 'u32[]', space=smem, size = 0x4, offset = 0x4, fixed_abs, tag = 'smem constant byte address 0x4 - core index']
  #allocation1 [shape = 'u32[144,128]{1,0:T(1,128)}', space=vmem, size = 0x12000, scoped, tag = 'internal scratch']
  %s0 = inlined_call_operand.vmem [shape: bf16[32,128], index: 0, kind: input, shape index: {}]
  %s1 = inlined_call_operand.vmem [shape: bf16[128,128], index: 1, kind: input, shape index: {}]
  %s2 = inlined_call_operand.vmem [shape: f32[1,128], index: 2, kind: input, shape index: {}]
  %s3 = inlined_call_operand.vmem [shape: f32[32,128], index: 3, kind: output, shape index: {}]
  %s4 = sld [smem:[#allocation0]]
  $region22: #{deepspeech2_forward.15} parent=0
    _
  %s6 = ssub.s32 1, %s4
  %s7 = scalar_select 0, %s6, %s4
  // Predicated region
  $region2: #{deepspeech2_forward.15} parent=0 // pred_check
    _
  $region3: #{deepspeech2_forward.15} parent=0 // pred_check_branch
    %9 = sbr.rel (0) target = $region5
  $region4: #{deepspeech2_forward.15} parent=0 // pred_region
    _
  $region5: #{deepspeech2_forward.15} parent=0 // pred_fallthru
    _
  // Predicated region
  $region6: #{deepspeech2_forward.15} parent=0 // pred_check
    _
  $region7: #{deepspeech2_forward.15} parent=0 // pred_check_branch
    %11 = sbr.rel (0) target = $region9
  $region8: #{deepspeech2_forward.15} parent=0 // pred_region
    _
  $region9: #{deepspeech2_forward.15} parent=0 // pred_fallthru
    _
  // Predicated region
  $region10: #{deepspeech2_forward.15} parent=0 // pred_check
    _
  $region11: #{deepspeech2_forward.15} parent=0 // pred_check_branch
    %13 = sbr.rel (0) target = $region13
  $region12: #{deepspeech2_forward.15} parent=0 // pred_region
    _
  $region13: #{deepspeech2_forward.15} parent=0 // pred_fallthru
    _
  %v15 = vld [vmem:[%s0] sm:$0xf]
  %v16 = vld [vmem:[%s0 + $0x4] sm:$0xf]
  %v17 = vld [vmem:[%s0 + $0x8] sm:$0xf]
  %v18 = vld [vmem:[%s0 + $0xc] sm:$0xf]
  %v19 = vld [vmem:[%s1] sm:$0xf]
  %v20 = vld [vmem:[%s1 + $0x4] sm:$0xf]
  %v21 = vld [vmem:[%s1 + $0x8] sm:$0xf]
  %v22 = vld [vmem:[%s1 + $0xc] sm:$0xf]
  %v23 = vld [vmem:[%s1 + $0x10] sm:$0xf]
  %v24 = vld [vmem:[%s1 + $0x14] sm:$0xf]
  %v25 = vld [vmem:[%s1 + $0x18] sm:$0xf]
  %v26 = vld [vmem:[%s1 + $0x1c] sm:$0xf]
  %v27 = vld [vmem:[%s1 + $0x20] sm:$0xf]
  %v28 = vld [vmem:[%s1 + $0x24] sm:$0xf]
  %v29 = vld [vmem:[%s1 + $0x28] sm:$0xf]
  %v30 = vld [vmem:[%s1 + $0x2c] sm:$0xf]
  %v31 = vld [vmem:[%s1 + $0x30] sm:$0xf]
  %v32 = vld [vmem:[%s1 + $0x34] sm:$0xf]
  %v33 = vld [vmem:[%s1 + $0x38] sm:$0xf]
  %v34 = vld [vmem:[%s1 + $0x3c] sm:$0xf]
  %v35 = vld [vmem:[%s2] sm:$0x1]
  %v37 = vlaneseq
  %v38 = vshrl.u32 %v37, 7
  %v39 = vsub.s32 0, %v38
  %v40 = vrot.slane %v35, %v39
  %v46 = vunpack.c.l.b16 %v15
  %v47 = vunpack.c.l.b16 %v16
  %v48 = vunpack.c.l.b16 %v17
  %v49 = vunpack.c.l.b16 %v18
  %v50 = vpack.c.b16 %v47, %v46
  %v51 = vpack.c.b16 %v49, %v48
  %v70 = vunpack.c.l.b16 %v19
  %v71 = vunpack.c.l.b16 %v20
  %v72 = vunpack.c.l.b16 %v21
  %v73 = vunpack.c.l.b16 %v22
  %v74 = vunpack.c.l.b16 %v23
  %v75 = vunpack.c.l.b16 %v24
  %v76 = vunpack.c.l.b16 %v25
  %v77 = vunpack.c.l.b16 %v26
  %v78 = vunpack.c.l.b16 %v27
  %v79 = vunpack.c.l.b16 %v28
  %v80 = vunpack.c.l.b16 %v29
  %v81 = vunpack.c.l.b16 %v30
  %v82 = vunpack.c.l.b16 %v31
  %v83 = vunpack.c.l.b16 %v32
  %v84 = vunpack.c.l.b16 %v33
  %v85 = vunpack.c.l.b16 %v34
  %v86 = vpack.c.b16 %v71, %v70
  %v87 = vpack.c.b16 %v73, %v72
  %v88 = vpack.c.b16 %v75, %v74
  %v89 = vpack.c.b16 %v77, %v76
  %v90 = vpack.c.b16 %v79, %v78
  %v91 = vpack.c.b16 %v81, %v80
  %v92 = vpack.c.b16 %v83, %v82
  %v93 = vpack.c.b16 %v85, %v84
  %102 = vmatprep.subr.bf16.mxu0 0
  %103 = vmatpush1.bf16.msra.mxu0 %v86
  %104 = vmatprep.subr.bf16.mxu0 0
  %105 = vmatpush1.bf16.msra.mxu0 %v87
  %106 = vmatprep.subr.bf16.mxu0 0
  %107 = vmatpush1.bf16.msra.mxu0 %v88
  %108 = vmatprep.subr.bf16.mxu0 0
  %109 = vmatpush1.bf16.msra.mxu0 %v89
  %110 = vmatprep.subr.bf16.mxu0 0
  %111 = vmatpush1.bf16.msra.mxu0 %v90
  %112 = vmatprep.subr.bf16.mxu0 0
  %113 = vmatpush1.bf16.msra.mxu0 %v91
  %114 = vmatprep.subr.bf16.mxu0 0
  %115 = vmatpush1.bf16.msra.mxu0 %v92
  %116 = vmatprep.subr.bf16.mxu0 0
  %117 = vmatpush1.bf16.msra.mxu0 %v93
  %118 = vmatprep.subr.bf16.mxu0 0
  %119 = vmatpush1.bf16.msra.mxu0 0
  %120 = vmatprep.subr.bf16.mxu0 0
  %121 = vmatpush1.bf16.msra.mxu0 0
  %122 = vmatprep.subr.bf16.mxu0 0
  %123 = vmatpush1.bf16.msra.mxu0 0
  %124 = vmatprep.subr.bf16.mxu0 0
  %125 = vmatpush1.bf16.msra.mxu0 0
  %126 = vmatprep.subr.bf16.mxu0 0
  %127 = vmatpush1.bf16.msra.mxu0 0
  %128 = vmatprep.subr.bf16.mxu0 0
  %129 = vmatpush1.bf16.msra.mxu0 0
  %130 = vmatprep.subr.bf16.mxu0 0
  %131 = vmatpush1.bf16.msra.mxu0 0
  %132 = vmatprep.subr.bf16.mxu0 0
  %133 = vmatpush1.bf16.msra.mxu0 0
  %134 = vmatprep.mubr.bf16.mxu0 0
  %135 = vmatmul.mubr.bf16.gmra.mrb[0].mxu0 %v50
  %v136 = vpop.f32.mrb[0].mxu0
  %v137 = vadd.f32 %v40, %v136
  %v138 = vpop.f32.mrb[0].mxu0
  %v139 = vpop.f32.mrb[0].mxu0
  %v140 = vadd.f32 %v40, %v139
  %v141 = vpop.f32.mrb[0].mxu0
  %142 = vmatprep.mubr.bf16.mxu0 0
  %143 = vmatmul.mubr.bf16.gmra.mrb[0].mxu0 %v51
  %v144 = vpop.f32.mrb[0].mxu0
  %v145 = vadd.f32 %v40, %v144
  %v146 = vpop.f32.mrb[0].mxu0
  %v147 = vpop.f32.mrb[0].mxu0
  %v148 = vadd.f32 %v40, %v147
  %v149 = vpop.f32.mrb[0].mxu0
  %150 = vdwg.mxu0
  %151 = vst [vmem:[%s3] sm:$0xff] %v137
  %152 = vst [vmem:[%s3 + $0x8] sm:$0xff] %v140
  %153 = vst [vmem:[%s3 + $0x10] sm:$0xff] %v145
  %154 = vst [vmem:[%s3 + $0x18] sm:$0xff] %v148
  // Predicated region
  $region14: #{deepspeech2_forward.15} parent=0 // pred_check
    _
  $region15: #{deepspeech2_forward.15} parent=0 // pred_check_branch
    %156 = sbr.rel (0) target = $region17
  $region16: #{deepspeech2_forward.15} parent=0 // pred_region
    _
  $region17: #{deepspeech2_forward.15} parent=0 // pred_fallthru
    _
  // Predicated region
  $region18: #{deepspeech2_forward.15} parent=0 // pred_check
    _
  $region19: #{deepspeech2_forward.15} parent=0 // pred_check_branch
    %158 = sbr.rel (0) target = $region21
  $region20: #{deepspeech2_forward.15} parent=0 // pred_region
    _
  $region21: #{deepspeech2_forward.15} parent=0 // pred_fallthru
    _

// kernel: deepspeech2_forward.12
$region0: #{deepspeech2_forward.12}
  #allocation0 [shape = 'u32[]', space=smem, size = 0x4, offset = 0x4, fixed_abs, tag = 'smem constant byte address 0x4 - core index']
  #allocation1 [shape = 'u32[144,128]{1,0:T(1,128)}', space=vmem, size = 0x12000, scoped, tag = 'internal scratch']
  #allocation2 [shape = 'f32[8,128]{1,0:T(8,128)}', space=vmem, size = 0x1000, scoped, tag = 'scratch operand']
  %s0 = inlined_call_operand.vmem [shape: bf16[4,8,384], index: 0, kind: input, shape index: {}]
  %s1 = inlined_call_operand.vmem [shape: f32[4,8,1], index: 1, kind: input, shape index: {}]
  %s2 = inlined_call_operand.vmem [shape: bf16[128,384], index: 2, kind: input, shape index: {}]
  %s3 = inlined_call_operand.vmem [shape: f32[1,384], index: 3, kind: input, shape index: {}]
  %s4 = inlined_call_operand.vmem [shape: bf16[4,8,128], index: 4, kind: output, shape index: {}]
  %s5 = sld [smem:[#allocation0]]
  $region30: #{deepspeech2_forward.12} parent=0
    _
  %s7 = ssub.s32 1, %s5
  %s8 = scalar_select 0, %s7, %s5
  // Predicated region
  $region2: #{deepspeech2_forward.12} parent=0 // pred_check
    _
  $region3: #{deepspeech2_forward.12} parent=0 // pred_check_branch
    %10 = sbr.rel (0) target = $region5
  $region4: #{deepspeech2_forward.12} parent=0 // pred_region
    _
  $region5: #{deepspeech2_forward.12} parent=0 // pred_fallthru
    _
  // Predicated region
  $region6: #{deepspeech2_forward.12} parent=0 // pred_check
    _
  $region7: #{deepspeech2_forward.12} parent=0 // pred_check_branch
    %12 = sbr.rel (0) target = $region9
  $region8: #{deepspeech2_forward.12} parent=0 // pred_region
    _
  $region9: #{deepspeech2_forward.12} parent=0 // pred_fallthru
    _
  // Predicated region
  $region10: #{deepspeech2_forward.12} parent=0 // pred_check
    _
  $region11: #{deepspeech2_forward.12} parent=0 // pred_check_branch
    %14 = sbr.rel (0) target = $region13
  $region12: #{deepspeech2_forward.12} parent=0 // pred_region
    _
  $region13: #{deepspeech2_forward.12} parent=0 // pred_fallthru
    _
  // Predicated region
  $region14: #{deepspeech2_forward.12} parent=0 // pred_check
    _
  $region15: #{deepspeech2_forward.12} parent=0 // pred_check_branch
    %16 = sbr.rel (0) target = $region17
  $region16: #{deepspeech2_forward.12} parent=0 // pred_region
    _
  $region17: #{deepspeech2_forward.12} parent=0 // pred_fallthru
    _
  %p18 = scmp.eq.s32.totalorder 0, 0
  // Predicated region
  $region18: #{deepspeech2_forward.12} parent=0 // pred_check
    %p19 = pneg %p18
  $region19: #{deepspeech2_forward.12} parent=0 // pred_check_branch
    %21 = sbr.rel (%p19) target = $region21
  $region20: #{deepspeech2_forward.12} parent=0 // pred_region
    %22 = vst [vmem:[#allocation2] sm:$0xff] 0.0
  $region21: #{deepspeech2_forward.12} parent=0 // pred_fallthru
    _
  %v23 = vld [vmem:[#allocation2] sm:$0xff]
  %v24 = vld [vmem:[%s0] sm:$0xff]
  %v25 = vld [vmem:[%s0 + $0x8] sm:$0xf]
  %v26 = vld [vmem:[%s1] sm:$0xff]
  %v27 = vpack.c.bf16 %v23, %v23
  %v28 = vld [vmem:[%s2] sm:$0xff]
  %v29 = vld [vmem:[%s2 + $0x8] sm:$0xf]
  %v30 = vld [vmem:[%s2 + $0xc] sm:$0xff]
  %v31 = vld [vmem:[%s2 + $0x14] sm:$0xf]
  %v32 = vld [vmem:[%s2 + $0x18] sm:$0xff]
  %v33 = vld [vmem:[%s2 + $0x20] sm:$0xf]
  %v34 = vld [vmem:[%s2 + $0x24] sm:$0xff]
  %v35 = vld [vmem:[%s2 + $0x2c] sm:$0xf]
  %v36 = vld [vmem:[%s2 + $0x30] sm:$0xff]
  %v37 = vld [vmem:[%s2 + $0x38] sm:$0xf]
  %v38 = vld [vmem:[%s2 + $0x3c] sm:$0xff]
  %v39 = vld [vmem:[%s2 + $0x44] sm:$0xf]
  %v40 = vld [vmem:[%s2 + $0x48] sm:$0xff]
  %v41 = vld [vmem:[%s2 + $0x50] sm:$0xf]
  %v42 = vld [vmem:[%s2 + $0x54] sm:$0xff]
  %v43 = vld [vmem:[%s2 + $0x5c] sm:$0xf]
  %v44 = vld [vmem:[%s2 + $0x60] sm:$0xff]
  %v45 = vld [vmem:[%s2 + $0x68] sm:$0xf]
  %v46 = vld [vmem:[%s2 + $0x6c] sm:$0xff]
  %v47 = vld [vmem:[%s2 + $0x74] sm:$0xf]
  %v48 = vld [vmem:[%s2 + $0x78] sm:$0xff]
  %v49 = vld [vmem:[%s2 + $0x80] sm:$0xf]
  %v50 = vld [vmem:[%s2 + $0x84] sm:$0xff]
  %v51 = vld [vmem:[%s2 + $0x8c] sm:$0xf]
  %v52 = vld [vmem:[%s2 + $0x90] sm:$0xff]
  %v53 = vld [vmem:[%s2 + $0x98] sm:$0xf]
  %v54 = vld [vmem:[%s2 + $0x9c] sm:$0xff]
  %v55 = vld [vmem:[%s2 + $0xa4] sm:$0xf]
  %v56 = vld [vmem:[%s2 + $0xa8] sm:$0xff]
  %v57 = vld [vmem:[%s2 + $0xb0] sm:$0xf]
  %v58 = vld [vmem:[%s2 + $0xb4] sm:$0xff]
  %v59 = vld [vmem:[%s2 + $0xbc] sm:$0xf]
  %v60 = vld [vmem:[%s3] sm:$0x7]
  %v62 = vlaneseq
  %v63 = vshrl.u32 %v62, 7
  %v64 = vsub.s32 0, %v63
  %v65 = vrot.slane %v60, %v64
  %v66 = vlaneseq
  %v67 = vshrl.u32 %v66, 7
  %v68 = vsub.s32 1, %v67
  %v69 = vrot.slane %v60, %v68
  %v70 = vlaneseq
  %v71 = vshrl.u32 %v70, 7
  %v72 = vsub.s32 2, %v71
  %v73 = vrot.slane %v60, %v72
  %v109 = vunpack.c.l.b16 %v28
  %v110 = vunpack.c.h.b16 %v28
  %v111 = vunpack.c.l.b16 %v29
  %v112 = vunpack.c.l.b16 %v30
  %v113 = vunpack.c.h.b16 %v30
  %v114 = vunpack.c.l.b16 %v31
  %v115 = vunpack.c.l.b16 %v32
  %v116 = vunpack.c.h.b16 %v32
  %v117 = vunpack.c.l.b16 %v33
  %v118 = vunpack.c.l.b16 %v34
  %v119 = vunpack.c.h.b16 %v34
  %v120 = vunpack.c.l.b16 %v35
  %v121 = vunpack.c.l.b16 %v36
  %v122 = vunpack.c.h.b16 %v36
  %v123 = vunpack.c.l.b16 %v37
  %v124 = vunpack.c.l.b16 %v38
  %v125 = vunpack.c.h.b16 %v38
  %v126 = vunpack.c.l.b16 %v39
  %v127 = vunpack.c.l.b16 %v40
  %v128 = vunpack.c.h.b16 %v40
  %v129 = vunpack.c.l.b16 %v41
  %v130 = vunpack.c.l.b16 %v42
  %v131 = vunpack.c.h.b16 %v42
  %v132 = vunpack.c.l.b16 %v43
  %v133 = vunpack.c.l.b16 %v44
  %v134 = vunpack.c.h.b16 %v44
  %v135 = vunpack.c.l.b16 %v45
  %v136 = vunpack.c.l.b16 %v46
  %v137 = vunpack.c.h.b16 %v46
  %v138 = vunpack.c.l.b16 %v47
  %v139 = vunpack.c.l.b16 %v48
  %v140 = vunpack.c.h.b16 %v48
  %v141 = vunpack.c.l.b16 %v49
  %v142 = vunpack.c.l.b16 %v50
  %v143 = vunpack.c.h.b16 %v50
  %v144 = vunpack.c.l.b16 %v51
  %v145 = vunpack.c.l.b16 %v52
  %v146 = vunpack.c.h.b16 %v52
  %v147 = vunpack.c.l.b16 %v53
  %v148 = vunpack.c.l.b16 %v54
  %v149 = vunpack.c.h.b16 %v54
  %v150 = vunpack.c.l.b16 %v55
  %v151 = vunpack.c.l.b16 %v56
  %v152 = vunpack.c.h.b16 %v56
  %v153 = vunpack.c.l.b16 %v57
  %v154 = vunpack.c.l.b16 %v58
  %v155 = vunpack.c.h.b16 %v58
  %v156 = vunpack.c.l.b16 %v59
  %v157 = vpack.c.b16 %v112, %v109
  %v158 = vpack.c.b16 %v113, %v110
  %v159 = vpack.c.b16 %v114, %v111
  %v160 = vpack.c.b16 %v118, %v115
  %v161 = vpack.c.b16 %v119, %v116
  %v162 = vpack.c.b16 %v120, %v117
  %v163 = vpack.c.b16 %v124, %v121
  %v164 = vpack.c.b16 %v125, %v122
  %v165 = vpack.c.b16 %v126, %v123
  %v166 = vpack.c.b16 %v130, %v127
  %v167 = vpack.c.b16 %v131, %v128
  %v168 = vpack.c.b16 %v132, %v129
  %v169 = vpack.c.b16 %v136, %v133
  %v170 = vpack.c.b16 %v137, %v134
  %v171 = vpack.c.b16 %v138, %v135
  %v172 = vpack.c.b16 %v142, %v139
  %v173 = vpack.c.b16 %v143, %v140
  %v174 = vpack.c.b16 %v144, %v141
  %v175 = vpack.c.b16 %v148, %v145
  %v176 = vpack.c.b16 %v149, %v146
  %v177 = vpack.c.b16 %v150, %v147
  %v178 = vpack.c.b16 %v154, %v151
  %v179 = vpack.c.b16 %v155, %v152
  %v180 = vpack.c.b16 %v156, %v153
  %205 = vmatprep.subr.bf16.mxu0 %v158
  %206 = vmatpush1.bf16.msra.mxu0 %v157
  %207 = vmatprep.subr.bf16.mxu0 %v161
  %208 = vmatpush1.bf16.msra.mxu0 %v160
  %209 = vmatprep.subr.bf16.mxu0 %v164
  %210 = vmatpush1.bf16.msra.mxu0 %v163
  %211 = vmatprep.subr.bf16.mxu0 %v167
  %212 = vmatpush1.bf16.msra.mxu0 %v166
  %213 = vmatprep.subr.bf16.mxu0 %v170
  %214 = vmatpush1.bf16.msra.mxu0 %v169
  %215 = vmatprep.subr.bf16.mxu0 %v173
  %216 = vmatpush1.bf16.msra.mxu0 %v172
  %217 = vmatprep.subr.bf16.mxu0 %v176
  %218 = vmatpush1.bf16.msra.mxu0 %v175
  %219 = vmatprep.subr.bf16.mxu0 %v179
  %220 = vmatpush1.bf16.msra.mxu0 %v178
  %221 = vmatprep.subr.bf16.mxu0 0
  %222 = vmatpush1.bf16.msra.mxu0 0
  %223 = vmatprep.subr.bf16.mxu0 0
  %224 = vmatpush1.bf16.msra.mxu0 0
  %225 = vmatprep.subr.bf16.mxu0 0
  %226 = vmatpush1.bf16.msra.mxu0 0
  %227 = vmatprep.subr.bf16.mxu0 0
  %228 = vmatpush1.bf16.msra.mxu0 0
  %229 = vmatprep.subr.bf16.mxu0 0
  %230 = vmatpush1.bf16.msra.mxu0 0
  %231 = vmatprep.subr.bf16.mxu0 0
  %232 = vmatpush1.bf16.msra.mxu0 0
  %233 = vmatprep.subr.bf16.mxu0 0
  %234 = vmatpush1.bf16.msra.mxu0 0
  %235 = vmatprep.subr.bf16.mxu0 0
  %236 = vmatpush1.bf16.msra.mxu0 0
  %237 = vmatprep.mubr.bf16.mxu0 0
  %238 = vmatmul.mubr.bf16.gmra.mrb[0].mxu0 %v27
  %v239 = vpop.f32.mrb[0].mxu0
  %v240 = vadd.f32 %v65, %v239
  %v241 = vpop.f32.mrb[0].mxu0
  %v242 = vadd.f32 %v69, %v241
  %v243 = vpop.f32.mrb[0].mxu0
  %v244 = vpop.f32.mrb[0].mxu0
  %245 = vdwg.mxu0
  %246 = vmatprep.subr.bf16.mxu0 0
  %247 = vmatpush1.bf16.msra.mxu0 %v159
  %248 = vmatprep.subr.bf16.mxu0 0
  %249 = vmatpush1.bf16.msra.mxu0 %v162
  %250 = vmatprep.subr.bf16.mxu0 0
  %251 = vmatpush1.bf16.msra.mxu0 %v165
  %252 = vmatprep.subr.bf16.mxu0 0
  %253 = vmatpush1.bf16.msra.mxu0 %v168
  %254 = vmatprep.subr.bf16.mxu0 0
  %255 = vmatpush1.bf16.msra.mxu0 %v171
  %256 = vmatprep.subr.bf16.mxu0 0
  %257 = vmatpush1.bf16.msra.mxu0 %v174
  %258 = vmatprep.subr.bf16.mxu0 0
  %259 = vmatpush1.bf16.msra.mxu0 %v177
  %260 = vmatprep.subr.bf16.mxu0 0
  %261 = vmatpush1.bf16.msra.mxu0 %v180
  %262 = vmatprep.subr.bf16.mxu0 0
  %263 = vmatpush1.bf16.msra.mxu0 0
  %264 = vmatprep.subr.bf16.mxu0 0
  %265 = vmatpush1.bf16.msra.mxu0 0
  %266 = vmatprep.subr.bf16.mxu0 0
  %267 = vmatpush1.bf16.msra.mxu0 0
  %268 = vmatprep.subr.bf16.mxu0 0
  %269 = vmatpush1.bf16.msra.mxu0 0
  %270 = vmatprep.subr.bf16.mxu0 0
  %271 = vmatpush1.bf16.msra.mxu0 0
  %272 = vmatprep.subr.bf16.mxu0 0
  %273 = vmatpush1.bf16.msra.mxu0 0
  %274 = vmatprep.subr.bf16.mxu0 0
  %275 = vmatpush1.bf16.msra.mxu0 0
  %276 = vmatprep.subr.bf16.mxu0 0
  %277 = vmatpush1.bf16.msra.mxu0 0
  %278 = vmatprep.mubr.bf16.mxu0 0
  %279 = vmatmul.mubr.bf16.gmra.mrb[0].mxu0 %v27
  %v280 = vpop.f32.mrb[0].mxu0
  %v281 = vadd.f32 %v73, %v280
  %v282 = vpop.f32.mrb[0].mxu0
  %v283 = vpop.f32.mrb[0].mxu0
  %v284 = vpop.f32.mrb[0].mxu0
  %285 = vdwg.mxu0
  %v286 = vunpack.c.l.bf16 %v24
  %v287 = vunpack.c.h.bf16 %v24
  %v288 = vadd.f32 %v286, %v240
  %v289 = vadd.f32 %v287, %v242
  %v290 = vxor.u32 %v288, 2147483648
  %v291 = vxor.u32 %v289, 2147483648
  %v292 = vmul.f32 %v290, 1.442695
  %v293 = vpow.pop %v292
  %v294 = vmul.f32 %v291, 1.442695
  %v295 = vpow.pop %v294
  %v296 = vadd.f32 %v293, 1.0
  %v297 = vadd.f32 %v295, 1.0
  %v298 = vrcp.pop %v296
  %v299 = vmul.f32 1.0, %v298
  %v300 = vrcp.pop %v297
  %v301 = vmul.f32 1.0, %v300
  %v302 = vmul.f32 %v299, %v281
  %v303 = vunpack.c.l.bf16 %v25
  %v304 = vadd.f32 %v303, %v302
  %v305 = vtanh.pop %v304
  %v306 = vsub.f32 %v23, %v305
  %v307 = vmul.f32 %v301, %v306
  %v308 = vadd.f32 %v305, %v307
  %310 = vset.pattern.permute.xlu0 0
  %311 = vperm.xlu0 %310, %v26
  %v312 = vpop.permute.xlu0 %311
  %v314 = vmul.f32 %v312, %v308
  %v315 = vpack.c.bf16 %v314, %v314
  %316 = vst [vmem:[%s4] sm:$0xf] %v315
  %v317 = vsub.f32 %v308, %v23
  %v318 = vmul.f32 %v312, %v317
  %v319 = vadd.f32 %v23, %v318
  %s320 = scalar_lea.vmem %s0, 12
  %v321 = vld [vmem:[%s320] sm:$0xff]
  %v322 = vld [vmem:[%s320 + $0x8] sm:$0xf]
  %s323 = scalar_lea.vmem %s1, 8
  %v324 = vld [vmem:[%s323] sm:$0xff]
  %v325 = vpack.c.bf16 %v319, %v319
  %v326 = vld [vmem:[%s2] sm:$0xff]
  %v327 = vld [vmem:[%s2 + $0x8] sm:$0xf]
  %v328 = vld [vmem:[%s2 + $0xc] sm:$0xff]
  %v329 = vld [vmem:[%s2 + $0x14] sm:$0xf]
  %v330 = vld [vmem:[%s2 + $0x18] sm:$0xff]
  %v331 = vld [vmem:[%s2 + $0x20] sm:$0xf]
  %v332 = vld [vmem:[%s2 + $0x24] sm:$0xff]
  %v333 = vld [vmem:[%s2 + $0x2c] sm:$0xf]
  %v334 = vld [vmem:[%s2 + $0x30] sm:$0xff]
  %v335 = vld [vmem:[%s2 + $0x38] sm:$0xf]
  %v336 = vld [vmem:[%s2 + $0x3c] sm:$0xff]
  %v337 = vld [vmem:[%s2 + $0x44] sm:$0xf]
  %v338 = vld [vmem:[%s2 + $0x48] sm:$0xff]
  %v339 = vld [vmem:[%s2 + $0x50] sm:$0xf]
  %v340 = vld [vmem:[%s2 + $0x54] sm:$0xff]
  %v341 = vld [vmem:[%s2 + $0x5c] sm:$0xf]
  %v342 = vld [vmem:[%s2 + $0x60] sm:$0xff]
  %v343 = vld [vmem:[%s2 + $0x68] sm:$0xf]
  %v344 = vld [vmem:[%s2 + $0x6c] sm:$0xff]
  %v345 = vld [vmem:[%s2 + $0x74] sm:$0xf]
  %v346 = vld [vmem:[%s2 + $0x78] sm:$0xff]
  %v347 = vld [vmem:[%s2 + $0x80] sm:$0xf]
  %v348 = vld [vmem:[%s2 + $0x84] sm:$0xff]
  %v349 = vld [vmem:[%s2 + $0x8c] sm:$0xf]
  %v350 = vld [vmem:[%s2 + $0x90] sm:$0xff]
  %v351 = vld [vmem:[%s2 + $0x98] sm:$0xf]
  %v352 = vld [vmem:[%s2 + $0x9c] sm:$0xff]
  %v353 = vld [vmem:[%s2 + $0xa4] sm:$0xf]
  %v354 = vld [vmem:[%s2 + $0xa8] sm:$0xff]
  %v355 = vld [vmem:[%s2 + $0xb0] sm:$0xf]
  %v356 = vld [vmem:[%s2 + $0xb4] sm:$0xff]
  %v357 = vld [vmem:[%s2 + $0xbc] sm:$0xf]
  %v358 = vld [vmem:[%s3] sm:$0x7]
  %v360 = vlaneseq
  %v361 = vshrl.u32 %v360, 7
  %v362 = vsub.s32 0, %v361
  %v363 = vrot.slane %v358, %v362
  %v364 = vlaneseq
  %v365 = vshrl.u32 %v364, 7
  %v366 = vsub.s32 1, %v365
  %v367 = vrot.slane %v358, %v366
  %v368 = vlaneseq
  %v369 = vshrl.u32 %v368, 7
  %v370 = vsub.s32 2, %v369
  %v371 = vrot.slane %v358, %v370
  %v407 = vunpack.c.l.b16 %v326
  %v408 = vunpack.c.h.b16 %v326
  %v409 = vunpack.c.l.b16 %v327
  %v410 = vunpack.c.l.b16 %v328
  %v411 = vunpack.c.h.b16 %v328
  %v412 = vunpack.c.l.b16 %v329
  %v413 = vunpack.c.l.b16 %v330
  %v414 = vunpack.c.h.b16 %v330
  %v415 = vunpack.c.l.b16 %v331
  %v416 = vunpack.c.l.b16 %v332
  %v417 = vunpack.c.h.b16 %v332
  %v418 = vunpack.c.l.b16 %v333
  %v419 = vunpack.c.l.b16 %v334
  %v420 = vunpack.c.h.b16 %v334
  %v421 = vunpack.c.l.b16 %v335
  %v422 = vunpack.c.l.b16 %v336
  %v423 = vunpack.c.h.b16 %v336
  %v424 = vunpack.c.l.b16 %v337
  %v425 = vunpack.c.l.b16 %v338
  %v426 = vunpack.c.h.b16 %v338
  %v427 = vunpack.c.l.b16 %v339
  %v428 = vunpack.c.l.b16 %v340
  %v429 = vunpack.c.h.b16 %v340
  %v430 = vunpack.c.l.b16 %v341
  %v431 = vunpack.c.l.b16 %v342
  %v432 = vunpack.c.h.b16 %v342
  %v433 = vunpack.c.l.b16 %v343
  %v434 = vunpack.c.l.b16 %v344
  %v435 = vunpack.c.h.b16 %v344
  %v436 = vunpack.c.l.b16 %v345
  %v437 = vunpack.c.l.b16 %v346
  %v438 = vunpack.c.h.b16 %v346
  %v439 = vunpack.c.l.b16 %v347
  %v440 = vunpack.c.l.b16 %v348
  %v441 = vunpack.c.h.b16 %v348
  %v442 = vunpack.c.l.b16 %v349
  %v443 = vunpack.c.l.b16 %v350
  %v444 = vunpack.c.h.b16 %v350
  %v445 = vunpack.c.l.b16 %v351
  %v446 = vunpack.c.l.b16 %v352
  %v447 = vunpack.c.h.b16 %v352
  %v448 = vunpack.c.l.b16 %v353
  %v449 = vunpack.c.l.b16 %v354
  %v450 = vunpack.c.h.b16 %v354
  %v451 = vunpack.c.l.b16 %v355
  %v452 = vunpack.c.l.b16 %v356
  %v453 = vunpack.c.h.b16 %v356
  %v454 = vunpack.c.l.b16 %v357
  %v455 = vpack.c.b16 %v410, %v407
  %v456 = vpack.c.b16 %v411, %v408
  %v457 = vpack.c.b16 %v412, %v409
  %v458 = vpack.c.b16 %v416, %v413
  %v459 = vpack.c.b16 %v417, %v414
  %v460 = vpack.c.b16 %v418, %v415
  %v461 = vpack.c.b16 %v422, %v419
  %v462 = vpack.c.b16 %v423, %v420
  %v463 = vpack.c.b16 %v424, %v421
  %v464 = vpack.c.b16 %v428, %v425
  %v465 = vpack.c.b16 %v429, %v426
  %v466 = vpack.c.b16 %v430, %v427
  %v467 = vpack.c.b16 %v434, %v431
  %v468 = vpack.c.b16 %v435, %v432
  %v469 = vpack.c.b16 %v436, %v433
  %v470 = vpack.c.b16 %v440, %v437
  %v471 = vpack.c.b16 %v441, %v438
  %v472 = vpack.c.b16 %v442, %v439
  %v473 = vpack.c.b16 %v446, %v443
  %v474 = vpack.c.b16 %v447, %v444
  %v475 = vpack.c.b16 %v448, %v445
  %v476 = vpack.c.b16 %v452, %v449
  %v477 = vpack.c.b16 %v453, %v450
  %v478 = vpack.c.b16 %v454, %v451
  %503 = vmatprep.subr.bf16.mxu0 %v456
  %504 = vmatpush1.bf16.msra.mxu0 %v455
  %505 = vmatprep.subr.bf16.mxu0 %v459
  %506 = vmatpush1.bf16.msra.mxu0 %v458
  %507 = vmatprep.subr.bf16.mxu0 %v462
  %508 = vmatpush1.bf16.msra.mxu0 %v461
  %509 = vmatprep.subr.bf16.mxu0 %v465
  %510 = vmatpush1.bf16.msra.mxu0 %v464
  %511 = vmatprep.subr.bf16.mxu0 %v468
  %512 = vmatpush1.bf16.msra.mxu0 %v467
  %513 = vmatprep.subr.bf16.mxu0 %v471
  %514 = vmatpush1.bf16.msra.mxu0 %v470
  %515 = vmatprep.subr.bf16.mxu0 %v474
  %516 = vmatpush1.bf16.msra.mxu0 %v473
  %517 = vmatprep.subr.bf16.mxu0 %v477
  %518 = vmatpush1.bf16.msra.mxu0 %v476
  %519 = vmatprep.subr.bf16.mxu0 0
  %520 = vmatpush1.bf16.msra.mxu0 0
  %521 = vmatprep.subr.bf16.mxu0 0
  %522 = vmatpush1.bf16.msra.mxu0 0
  %523 = vmatprep.subr.bf16.mxu0 0
  %524 = vmatpush1.bf16.msra.mxu0 0
  %525 = vmatprep.subr.bf16.mxu0 0
  %526 = vmatpush1.bf16.msra.mxu0 0
  %527 = vmatprep.subr.bf16.mxu0 0
  %528 = vmatpush1.bf16.msra.mxu0 0
  %529 = vmatprep.subr.bf16.mxu0 0
  %530 = vmatpush1.bf16.msra.mxu0 0
  %531 = vmatprep.subr.bf16.mxu0 0
  %532 = vmatpush1.bf16.msra.mxu0 0
  %533 = vmatprep.subr.bf16.mxu0 0
  %534 = vmatpush1.bf16.msra.mxu0 0
  %535 = vmatprep.mubr.bf16.mxu0 0
  %536 = vmatmul.mubr.bf16.gmra.mrb[0].mxu0 %v325
  %v537 = vpop.f32.mrb[0].mxu0
  %v538 = vadd.f32 %v363, %v537
  %v539 = vpop.f32.mrb[0].mxu0
  %v540 = vadd.f32 %v367, %v539
  %v541 = vpop.f32.mrb[0].mxu0
  %v542 = vpop.f32.mrb[0].mxu0
  %543 = vdwg.mxu0
  %544 = vmatprep.subr.bf16.mxu0 0
  %545 = vmatpush1.bf16.msra.mxu0 %v457
  %546 = vmatprep.subr.bf16.mxu0 0
  %547 = vmatpush1.bf16.msra.mxu0 %v460
  %548 = vmatprep.subr.bf16.mxu0 0
  %549 = vmatpush1.bf16.msra.mxu0 %v463
  %550 = vmatprep.subr.bf16.mxu0 0
  %551 = vmatpush1.bf16.msra.mxu0 %v466
  %552 = vmatprep.subr.bf16.mxu0 0
  %553 = vmatpush1.bf16.msra.mxu0 %v469
  %554 = vmatprep.subr.bf16.mxu0 0
  %555 = vmatpush1.bf16.msra.mxu0 %v472
  %556 = vmatprep.subr.bf16.mxu0 0
  %557 = vmatpush1.bf16.msra.mxu0 %v475
  %558 = vmatprep.subr.bf16.mxu0 0
  %559 = vmatpush1.bf16.msra.mxu0 %v478
  %560 = vmatprep.subr.bf16.mxu0 0
  %561 = vmatpush1.bf16.msra.mxu0 0
  %562 = vmatprep.subr.bf16.mxu0 0
  %563 = vmatpush1.bf16.msra.mxu0 0
  %564 = vmatprep.subr.bf16.mxu0 0
  %565 = vmatpush1.bf16.msra.mxu0 0
  %566 = vmatprep.subr.bf16.mxu0 0
  %567 = vmatpush1.bf16.msra.mxu0 0
  %568 = vmatprep.subr.bf16.mxu0 0
  %569 = vmatpush1.bf16.msra.mxu0 0
  %570 = vmatprep.subr.bf16.mxu0 0
  %571 = vmatpush1.bf16.msra.mxu0 0
  %572 = vmatprep.subr.bf16.mxu0 0
  %573 = vmatpush1.bf16.msra.mxu0 0
  %574 = vmatprep.subr.bf16.mxu0 0
  %575 = vmatpush1.bf16.msra.mxu0 0
  %576 = vmatprep.mubr.bf16.mxu0 0
  %577 = vmatmul.mubr.bf16.gmra.mrb[0].mxu0 %v325
  %v578 = vpop.f32.mrb[0].mxu0
  %v579 = vadd.f32 %v371, %v578
  %v580 = vpop.f32.mrb[0].mxu0
  %v581 = vpop.f32.mrb[0].mxu0
  %v582 = vpop.f32.mrb[0].mxu0
  %583 = vdwg.mxu0
  %v584 = vunpack.c.l.bf16 %v321
  %v585 = vunpack.c.h.bf16 %v321
  %v586 = vadd.f32 %v584, %v538
  %v587 = vadd.f32 %v585, %v540
  %v588 = vxor.u32 %v586, 2147483648
  %v589 = vxor.u32 %v587, 2147483648
  %v590 = vmul.f32 %v588, 1.442695
  %v591 = vpow.pop %v590
  %v592 = vmul.f32 %v589, 1.442695
  %v593 = vpow.pop %v592
  %v594 = vadd.f32 %v591, 1.0
  %v595 = vadd.f32 %v593, 1.0
  %v596 = vrcp.pop %v594
  %v597 = vmul.f32 1.0, %v596
  %v598 = vrcp.pop %v595
  %v599 = vmul.f32 1.0, %v598
  %v600 = vmul.f32 %v597, %v579
  %v601 = vunpack.c.l.bf16 %v322
  %v602 = vadd.f32 %v601, %v600
  %v603 = vtanh.pop %v602
  %v604 = vsub.f32 %v319, %v603
  %v605 = vmul.f32 %v599, %v604
  %v606 = vadd.f32 %v603, %v605
  %608 = vset.pattern.permute.xlu0 0
  %609 = vperm.xlu0 %608, %v324
  %v610 = vpop.permute.xlu0 %609
  %v612 = vmul.f32 %v610, %v606
  %v613 = vpack.c.bf16 %v612, %v612
  %s614 = scalar_lea.vmem %s4, 4
  %615 = vst [vmem:[%s614] sm:$0xf] %v613
  %v616 = vsub.f32 %v606, %v319
  %v617 = vmul.f32 %v610, %v616
  %v618 = vadd.f32 %v319, %v617
  %s619 = scalar_lea.vmem %s0, 24
  %v620 = vld [vmem:[%s619] sm:$0xff]
  %v621 = vld [vmem:[%s619 + $0x8] sm:$0xf]
  %s622 = scalar_lea.vmem %s1, 16
  %v623 = vld [vmem:[%s622] sm:$0xff]
  %v624 = vpack.c.bf16 %v618, %v618
  %v625 = vld [vmem:[%s2] sm:$0xff]
  %v626 = vld [vmem:[%s2 + $0x8] sm:$0xf]
  %v627 = vld [vmem:[%s2 + $0xc] sm:$0xff]
  %v628 = vld [vmem:[%s2 + $0x14] sm:$0xf]
  %v629 = vld [vmem:[%s2 + $0x18] sm:$0xff]
  %v630 = vld [vmem:[%s2 + $0x20] sm:$0xf]
  %v631 = vld [vmem:[%s2 + $0x24] sm:$0xff]
  %v632 = vld [vmem:[%s2 + $0x2c] sm:$0xf]
  %v633 = vld [vmem:[%s2 + $0x30] sm:$0xff]
  %v634 = vld [vmem:[%s2 + $0x38] sm:$0xf]
  %v635 = vld [vmem:[%s2 + $0x3c] sm:$0xff]
  %v636 = vld [vmem:[%s2 + $0x44] sm:$0xf]
  %v637 = vld [vmem:[%s2 + $0x48] sm:$0xff]
  %v638 = vld [vmem:[%s2 + $0x50] sm:$0xf]
  %v639 = vld [vmem:[%s2 + $0x54] sm:$0xff]
  %v640 = vld [vmem:[%s2 + $0x5c] sm:$0xf]
  %v641 = vld [vmem:[%s2 + $0x60] sm:$0xff]
  %v642 = vld [vmem:[%s2 + $0x68] sm:$0xf]
  %v643 = vld [vmem:[%s2 + $0x6c] sm:$0xff]
  %v644 = vld [vmem:[%s2 + $0x74] sm:$0xf]
  %v645 = vld [vmem:[%s2 + $0x78] sm:$0xff]
  %v646 = vld [vmem:[%s2 + $0x80] sm:$0xf]
  %v647 = vld [vmem:[%s2 + $0x84] sm:$0xff]
  %v648 = vld [vmem:[%s2 + $0x8c] sm:$0xf]
  %v649 = vld [vmem:[%s2 + $0x90] sm:$0xff]
  %v650 = vld [vmem:[%s2 + $0x98] sm:$0xf]
  %v651 = vld [vmem:[%s2 + $0x9c] sm:$0xff]
  %v652 = vld [vmem:[%s2 + $0xa4] sm:$0xf]
  %v653 = vld [vmem:[%s2 + $0xa8] sm:$0xff]
  %v654 = vld [vmem:[%s2 + $0xb0] sm:$0xf]
  %v655 = vld [vmem:[%s2 + $0xb4] sm:$0xff]
  %v656 = vld [vmem:[%s2 + $0xbc] sm:$0xf]
  %v657 = vld [vmem:[%s3] sm:$0x7]
  %v659 = vlaneseq
  %v660 = vshrl.u32 %v659, 7
  %v661 = vsub.s32 0, %v660
  %v662 = vrot.slane %v657, %v661
  %v663 = vlaneseq
  %v664 = vshrl.u32 %v663, 7
  %v665 = vsub.s32 1, %v664
  %v666 = vrot.slane %v657, %v665
  %v667 = vlaneseq
  %v668 = vshrl.u32 %v667, 7
  %v669 = vsub.s32 2, %v668
  %v670 = vrot.slane %v657, %v669
  %v706 = vunpack.c.l.b16 %v625
  %v707 = vunpack.c.h.b16 %v625
  %v708 = vunpack.c.l.b16 %v626
  %v709 = vunpack.c.l.b16 %v627
  %v710 = vunpack.c.h.b16 %v627
  %v711 = vunpack.c.l.b16 %v628
  %v712 = vunpack.c.l.b16 %v629
  %v713 = vunpack.c.h.b16 %v629
  %v714 = vunpack.c.l.b16 %v630
  %v715 = vunpack.c.l.b16 %v631
  %v716 = vunpack.c.h.b16 %v631
  %v717 = vunpack.c.l.b16 %v632
  %v718 = vunpack.c.l.b16 %v633
  %v719 = vunpack.c.h.b16 %v633
  %v720 = vunpack.c.l.b16 %v634
  %v721 = vunpack.c.l.b16 %v635
  %v722 = vunpack.c.h.b16 %v635
  %v723 = vunpack.c.l.b16 %v636
  %v724 = vunpack.c.l.b16 %v637
  %v725 = vunpack.c.h.b16 %v637
  %v726 = vunpack.c.l.b16 %v638
  %v727 = vunpack.c.l.b16 %v639
  %v728 = vunpack.c.h.b16 %v639
  %v729 = vunpack.c.l.b16 %v640
  %v730 = vunpack.c.l.b16 %v641
  %v731 = vunpack.c.h.b16 %v641
  %v732 = vunpack.c.l.b16 %v642
  %v733 = vunpack.c.l.b16 %v643
  %v734 = vunpack.c.h.b16 %v643
  %v735 = vunpack.c.l.b16 %v644
  %v736 = vunpack.c.l.b16 %v645
  %v737 = vunpack.c.h.b16 %v645
  %v738 = vunpack.c.l.b16 %v646
  %v739 = vunpack.c.l.b16 %v647
  %v740 = vunpack.c.h.b16 %v647
  %v741 = vunpack.c.l.b16 %v648
  %v742 = vunpack.c.l.b16 %v649
  %v743 = vunpack.c.h.b16 %v649
  %v744 = vunpack.c.l.b16 %v650
  %v745 = vunpack.c.l.b16 %v651
  %v746 = vunpack.c.h.b16 %v651
  %v747 = vunpack.c.l.b16 %v652
  %v748 = vunpack.c.l.b16 %v653
  %v749 = vunpack.c.h.b16 %v653
  %v750 = vunpack.c.l.b16 %v654
  %v751 = vunpack.c.l.b16 %v655
  %v752 = vunpack.c.h.b16 %v655
  %v753 = vunpack.c.l.b16 %v656
  %v754 = vpack.c.b16 %v709, %v706
  %v755 = vpack.c.b16 %v710, %v707
  %v756 = vpack.c.b16 %v711, %v708
  %v757 = vpack.c.b16 %v715, %v712
  %v758 = vpack.c.b16 %v716, %v713
  %v759 = vpack.c.b16 %v717, %v714
  %v760 = vpack.c.b16 %v721, %v718
  %v761 = vpack.c.b16 %v722, %v719
  %v762 = vpack.c.b16 %v723, %v720
  %v763 = vpack.c.b16 %v727, %v724
  %v764 = vpack.c.b16 %v728, %v725
  %v765 = vpack.c.b16 %v729, %v726
  %v766 = vpack.c.b16 %v733, %v730
  %v767 = vpack.c.b16 %v734, %v731
  %v768 = vpack.c.b16 %v735, %v732
  %v769 = vpack.c.b16 %v739, %v736
  %v770 = vpack.c.b16 %v740, %v737
  %v771 = vpack.c.b16 %v741, %v738
  %v772 = vpack.c.b16 %v745, %v742
  %v773 = vpack.c.b16 %v746, %v743
  %v774 = vpack.c.b16 %v747, %v744
  %v775 = vpack.c.b16 %v751, %v748
  %v776 = vpack.c.b16 %v752, %v749
  %v777 = vpack.c.b16 %v753, %v750
  %802 = vmatprep.subr.bf16.mxu0 %v755
  %803 = vmatpush1.bf16.msra.mxu0 %v754
  %804 = vmatprep.subr.bf16.mxu0 %v758
  %805 = vmatpush1.bf16.msra.mxu0 %v757
  %806 = vmatprep.subr.bf16.mxu0 %v761
  %807 = vmatpush1.bf16.msra.mxu0 %v760
  %808 = vmatprep.subr.bf16.mxu0 %v764
  %809 = vmatpush1.bf16.msra.mxu0 %v763
  %810 = vmatprep.subr.bf16.mxu0 %v767
  %811 = vmatpush1.bf16.msra.mxu0 %v766
  %812 = vmatprep.subr.bf16.mxu0 %v770
  %813 = vmatpush1.bf16.msra.mxu0 %v769
  %814 = vmatprep.subr.bf16.mxu0 %v773
  %815 = vmatpush1.bf16.msra.mxu0 %v772
  %816 = vmatprep.subr.bf16.mxu0 %v776
  %817 = vmatpush1.bf16.msra.mxu0 %v775
  %818 = vmatprep.subr.bf16.mxu0 0
  %819 = vmatpush1.bf16.msra.mxu0 0
  %820 = vmatprep.subr.bf16.mxu0 0
  %821 = vmatpush1.bf16.msra.mxu0 0
  %822 = vmatprep.subr.bf16.mxu0 0
  %823 = vmatpush1.bf16.msra.mxu0 0
  %824 = vmatprep.subr.bf16.mxu0 0
  %825 = vmatpush1.bf16.msra.mxu0 0
  %826 = vmatprep.subr.bf16.mxu0 0
  %827 = vmatpush1.bf16.msra.mxu0 0
  %828 = vmatprep.subr.bf16.mxu0 0
  %829 = vmatpush1.bf16.msra.mxu0 0
  %830 = vmatprep.subr.bf16.mxu0 0
  %831 = vmatpush1.bf16.msra.mxu0 0
  %832 = vmatprep.subr.bf16.mxu0 0
  %833 = vmatpush1.bf16.msra.mxu0 0
  %834 = vmatprep.mubr.bf16.mxu0 0
  %835 = vmatmul.mubr.bf16.gmra.mrb[0].mxu0 %v624
  %v836 = vpop.f32.mrb[0].mxu0
  %v837 = vadd.f32 %v662, %v836
  %v838 = vpop.f32.mrb[0].mxu0
  %v839 = vadd.f32 %v666, %v838
  %v840 = vpop.f32.mrb[0].mxu0
  %v841 = vpop.f32.mrb[0].mxu0
  %842 = vdwg.mxu0
  %843 = vmatprep.subr.bf16.mxu0 0
  %844 = vmatpush1.bf16.msra.mxu0 %v756
  %845 = vmatprep.subr.bf16.mxu0 0
  %846 = vmatpush1.bf16.msra.mxu0 %v759
  %847 = vmatprep.subr.bf16.mxu0 0
  %848 = vmatpush1.bf16.msra.mxu0 %v762
  %849 = vmatprep.subr.bf16.mxu0 0
  %850 = vmatpush1.bf16.msra.mxu0 %v765
  %851 = vmatprep.subr.bf16.mxu0 0
  %852 = vmatpush1.bf16.msra.mxu0 %v768
  %853 = vmatprep.subr.bf16.mxu0 0
  %854 = vmatpush1.bf16.msra.mxu0 %v771
  %855 = vmatprep.subr.bf16.mxu0 0
  %856 = vmatpush1.bf16.msra.mxu0 %v774
  %857 = vmatprep.subr.bf16.mxu0 0
  %858 = vmatpush1.bf16.msra.mxu0 %v777
  %859 = vmatprep.subr.bf16.mxu0 0
  %860 = vmatpush1.bf16.msra.mxu0 0
  %861 = vmatprep.subr.bf16.mxu0 0
  %862 = vmatpush1.bf16.msra.mxu0 0
  %863 = vmatprep.subr.bf16.mxu0 0
  %864 = vmatpush1.bf16.msra.mxu0 0
  %865 = vmatprep.subr.bf16.mxu0 0
  %866 = vmatpush1.bf16.msra.mxu0 0
  %867 = vmatprep.subr.bf16.mxu0 0
  %868 = vmatpush1.bf16.msra.mxu0 0
  %869 = vmatprep.subr.bf16.mxu0 0
  %870 = vmatpush1.bf16.msra.mxu0 0
  %871 = vmatprep.subr.bf16.mxu0 0
  %872 = vmatpush1.bf16.msra.mxu0 0
  %873 = vmatprep.subr.bf16.mxu0 0
  %874 = vmatpush1.bf16.msra.mxu0 0
  %875 = vmatprep.mubr.bf16.mxu0 0
  %876 = vmatmul.mubr.bf16.gmra.mrb[0].mxu0 %v624
  %v877 = vpop.f32.mrb[0].mxu0
  %v878 = vadd.f32 %v670, %v877
  %v879 = vpop.f32.mrb[0].mxu0
  %v880 = vpop.f32.mrb[0].mxu0
  %v881 = vpop.f32.mrb[0].mxu0
  %882 = vdwg.mxu0
  %v883 = vunpack.c.l.bf16 %v620
  %v884 = vunpack.c.h.bf16 %v620
  %v885 = vadd.f32 %v883, %v837
  %v886 = vadd.f32 %v884, %v839
  %v887 = vxor.u32 %v885, 2147483648
  %v888 = vxor.u32 %v886, 2147483648
  %v889 = vmul.f32 %v887, 1.442695
  %v890 = vpow.pop %v889
  %v891 = vmul.f32 %v888, 1.442695
  %v892 = vpow.pop %v891
  %v893 = vadd.f32 %v890, 1.0
  %v894 = vadd.f32 %v892, 1.0
  %v895 = vrcp.pop %v893
  %v896 = vmul.f32 1.0, %v895
  %v897 = vrcp.pop %v894
  %v898 = vmul.f32 1.0, %v897
  %v899 = vmul.f32 %v896, %v878
  %v900 = vunpack.c.l.bf16 %v621
  %v901 = vadd.f32 %v900, %v899
  %v902 = vtanh.pop %v901
  %v903 = vsub.f32 %v618, %v902
  %v904 = vmul.f32 %v898, %v903
  %v905 = vadd.f32 %v902, %v904
  %907 = vset.pattern.permute.xlu0 0
  %908 = vperm.xlu0 %907, %v623
  %v909 = vpop.permute.xlu0 %908
  %v911 = vmul.f32 %v909, %v905
  %v912 = vpack.c.bf16 %v911, %v911
  %s913 = scalar_lea.vmem %s4, 8
  %914 = vst [vmem:[%s913] sm:$0xf] %v912
  %v915 = vsub.f32 %v905, %v618
  %v916 = vmul.f32 %v909, %v915
  %v917 = vadd.f32 %v618, %v916
  %s918 = scalar_lea.vmem %s0, 36
  %v919 = vld [vmem:[%s918] sm:$0xff]
  %v920 = vld [vmem:[%s918 + $0x8] sm:$0xf]
  %s921 = scalar_lea.vmem %s1, 24
  %v922 = vld [vmem:[%s921] sm:$0xff]
  %v923 = vpack.c.bf16 %v917, %v917
  %v924 = vld [vmem:[%s2] sm:$0xff]
  %v925 = vld [vmem:[%s2 + $0x8] sm:$0xf]
  %v926 = vld [vmem:[%s2 + $0xc] sm:$0xff]
  %v927 = vld [vmem:[%s2 + $0x14] sm:$0xf]
  %v928 = vld [vmem:[%s2 + $0x18] sm:$0xff]
  %v929 = vld [vmem:[%s2 + $0x20] sm:$0xf]
  %v930 = vld [vmem:[%s2 + $0x24] sm:$0xff]
  %v931 = vld [vmem:[%s2 + $0x2c] sm:$0xf]
  %v932 = vld [vmem:[%s2 + $0x30] sm:$0xff]
  %v933 = vld [vmem:[%s2 + $0x38] sm:$0xf]
  %v934 = vld [vmem:[%s2 + $0x3c] sm:$0xff]
  %v935 = vld [vmem:[%s2 + $0x44] sm:$0xf]
  %v936 = vld [vmem:[%s2 + $0x48] sm:$0xff]
  %v937 = vld [vmem:[%s2 + $0x50] sm:$0xf]
  %v938 = vld [vmem:[%s2 + $0x54] sm:$0xff]
  %v939 = vld [vmem:[%s2 + $0x5c] sm:$0xf]
  %v940 = vld [vmem:[%s2 + $0x60] sm:$0xff]
  %v941 = vld [vmem:[%s2 + $0x68] sm:$0xf]
  %v942 = vld [vmem:[%s2 + $0x6c] sm:$0xff]
  %v943 = vld [vmem:[%s2 + $0x74] sm:$0xf]
  %v944 = vld [vmem:[%s2 + $0x78] sm:$0xff]
  %v945 = vld [vmem:[%s2 + $0x80] sm:$0xf]
  %v946 = vld [vmem:[%s2 + $0x84] sm:$0xff]
  %v947 = vld [vmem:[%s2 + $0x8c] sm:$0xf]
  %v948 = vld [vmem:[%s2 + $0x90] sm:$0xff]
  %v949 = vld [vmem:[%s2 + $0x98] sm:$0xf]
  %v950 = vld [vmem:[%s2 + $0x9c] sm:$0xff]
  %v951 = vld [vmem:[%s2 + $0xa4] sm:$0xf]
  %v952 = vld [vmem:[%s2 + $0xa8] sm:$0xff]
  %v953 = vld [vmem:[%s2 + $0xb0] sm:$0xf]
  %v954 = vld [vmem:[%s2 + $0xb4] sm:$0xff]
  %v955 = vld [vmem:[%s2 + $0xbc] sm:$0xf]
  %v956 = vld [vmem:[%s3] sm:$0x7]
  %v958 = vlaneseq
  %v959 = vshrl.u32 %v958, 7
  %v960 = vsub.s32 0, %v959
  %v961 = vrot.slane %v956, %v960
  %v962 = vlaneseq
  %v963 = vshrl.u32 %v962, 7
  %v964 = vsub.s32 1, %v963
  %v965 = vrot.slane %v956, %v964
  %v966 = vlaneseq
  %v967 = vshrl.u32 %v966, 7
  %v968 = vsub.s32 2, %v967
  %v969 = vrot.slane %v956, %v968
  %v1005 = vunpack.c.l.b16 %v924
  %v1006 = vunpack.c.h.b16 %v924
  %v1007 = vunpack.c.l.b16 %v925
  %v1008 = vunpack.c.l.b16 %v926
  %v1009 = vunpack.c.h.b16 %v926
  %v1010 = vunpack.c.l.b16 %v927
  %v1011 = vunpack.c.l.b16 %v928
  %v1012 = vunpack.c.h.b16 %v928
  %v1013 = vunpack.c.l.b16 %v929
  %v1014 = vunpack.c.l.b16 %v930
  %v1015 = vunpack.c.h.b16 %v930
  %v1016 = vunpack.c.l.b16 %v931
  %v1017 = vunpack.c.l.b16 %v932
  %v1018 = vunpack.c.h.b16 %v932
  %v1019 = vunpack.c.l.b16 %v933
  %v1020 = vunpack.c.l.b16 %v934
  %v1021 = vunpack.c.h.b16 %v934
  %v1022 = vunpack.c.l.b16 %v935
  %v1023 = vunpack.c.l.b16 %v936
  %v1024 = vunpack.c.h.b16 %v936
  %v1025 = vunpack.c.l.b16 %v937
  %v1026 = vunpack.c.l.b16 %v938
  %v1027 = vunpack.c.h.b16 %v938
  %v1028 = vunpack.c.l.b16 %v939
  %v1029 = vunpack.c.l.b16 %v940
  %v1030 = vunpack.c.h.b16 %v940
  %v1031 = vunpack.c.l.b16 %v941
  %v1032 = vunpack.c.l.b16 %v942
  %v1033 = vunpack.c.h.b16 %v942
  %v1034 = vunpack.c.l.b16 %v943
  %v1035 = vunpack.c.l.b16 %v944
  %v1036 = vunpack.c.h.b16 %v944
  %v1037 = vunpack.c.l.b16 %v945
  %v1038 = vunpack.c.l.b16 %v946
  %v1039 = vunpack.c.h.b16 %v946
  %v1040 = vunpack.c.l.b16 %v947
  %v1041 = vunpack.c.l.b16 %v948
  %v1042 = vunpack.c.h.b16 %v948
  %v1043 = vunpack.c.l.b16 %v949
  %v1044 = vunpack.c.l.b16 %v950
  %v1045 = vunpack.c.h.b16 %v950
  %v1046 = vunpack.c.l.b16 %v951
  %v1047 = vunpack.c.l.b16 %v952
  %v1048 = vunpack.c.h.b16 %v952
  %v1049 = vunpack.c.l.b16 %v953
  %v1050 = vunpack.c.l.b16 %v954
  %v1051 = vunpack.c.h.b16 %v954
  %v1052 = vunpack.c.l.b16 %v955
  %v1053 = vpack.c.b16 %v1008, %v1005
  %v1054 = vpack.c.b16 %v1009, %v1006
  %v1055 = vpack.c.b16 %v1010, %v1007
  %v1056 = vpack.c.b16 %v1014, %v1011
  %v1057 = vpack.c.b16 %v1015, %v1012
  %v1058 = vpack.c.b16 %v1016, %v1013
  %v1059 = vpack.c.b16 %v1020, %v1017
  %v1060 = vpack.c.b16 %v1021, %v1018
  %v1061 = vpack.c.b16 %v1022, %v1019
  %v1062 = vpack.c.b16 %v1026, %v1023
  %v1063 = vpack.c.b16 %v1027, %v1024
  %v1064 = vpack.c.b16 %v1028, %v1025
  %v1065 = vpack.c.b16 %v1032, %v1029
  %v1066 = vpack.c.b16 %v1033, %v1030
  %v1067 = vpack.c.b16 %v1034, %v1031
  %v1068 = vpack.c.b16 %v1038, %v1035
  %v1069 = vpack.c.b16 %v1039, %v1036
  %v1070 = vpack.c.b16 %v1040, %v1037
  %v1071 = vpack.c.b16 %v1044, %v1041
  %v1072 = vpack.c.b16 %v1045, %v1042
  %v1073 = vpack.c.b16 %v1046, %v1043
  %v1074 = vpack.c.b16 %v1050, %v1047
  %v1075 = vpack.c.b16 %v1051, %v1048
  %v1076 = vpack.c.b16 %v1052, %v1049
  %1101 = vmatprep.subr.bf16.mxu0 %v1054
  %1102 = vmatpush1.bf16.msra.mxu0 %v1053
  %1103 = vmatprep.subr.bf16.mxu0 %v1057
  %1104 = vmatpush1.bf16.msra.mxu0 %v1056
  %1105 = vmatprep.subr.bf16.mxu0 %v1060
  %1106 = vmatpush1.bf16.msra.mxu0 %v1059
  %1107 = vmatprep.subr.bf16.mxu0 %v1063
  %1108 = vmatpush1.bf16.msra.mxu0 %v1062
  %1109 = vmatprep.subr.bf16.mxu0 %v1066
  %1110 = vmatpush1.bf16.msra.mxu0 %v1065
  %1111 = vmatprep.subr.bf16.mxu0 %v1069
  %1112 = vmatpush1.bf16.msra.mxu0 %v1068
  %1113 = vmatprep.subr.bf16.mxu0 %v1072
  %1114 = vmatpush1.bf16.msra.mxu0 %v1071
  %1115 = vmatprep.subr.bf16.mxu0 %v1075
  %1116 = vmatpush1.bf16.msra.mxu0 %v1074
  %1117 = vmatprep.subr.bf16.mxu0 0
  %1118 = vmatpush1.bf16.msra.mxu0 0
  %1119 = vmatprep.subr.bf16.mxu0 0
  %1120 = vmatpush1.bf16.msra.mxu0 0
  %1121 = vmatprep.subr.bf16.mxu0 0
  %1122 = vmatpush1.bf16.msra.mxu0 0
  %1123 = vmatprep.subr.bf16.mxu0 0
  %1124 = vmatpush1.bf16.msra.mxu0 0
  %1125 = vmatprep.subr.bf16.mxu0 0
  %1126 = vmatpush1.bf16.msra.mxu0 0
  %1127 = vmatprep.subr.bf16.mxu0 0
  %1128 = vmatpush1.bf16.msra.mxu0 0
  %1129 = vmatprep.subr.bf16.mxu0 0
  %1130 = vmatpush1.bf16.msra.mxu0 0
  %1131 = vmatprep.subr.bf16.mxu0 0
  %1132 = vmatpush1.bf16.msra.mxu0 0
  %1133 = vmatprep.mubr.bf16.mxu0 0
  %1134 = vmatmul.mubr.bf16.gmra.mrb[0].mxu0 %v923
  %v1135 = vpop.f32.mrb[0].mxu0
  %v1136 = vadd.f32 %v961, %v1135
  %v1137 = vpop.f32.mrb[0].mxu0
  %v1138 = vadd.f32 %v965, %v1137
  %v1139 = vpop.f32.mrb[0].mxu0
  %v1140 = vpop.f32.mrb[0].mxu0
  %1141 = vdwg.mxu0
  %1142 = vmatprep.subr.bf16.mxu0 0
  %1143 = vmatpush1.bf16.msra.mxu0 %v1055
  %1144 = vmatprep.subr.bf16.mxu0 0
  %1145 = vmatpush1.bf16.msra.mxu0 %v1058
  %1146 = vmatprep.subr.bf16.mxu0 0
  %1147 = vmatpush1.bf16.msra.mxu0 %v1061
  %1148 = vmatprep.subr.bf16.mxu0 0
  %1149 = vmatpush1.bf16.msra.mxu0 %v1064
  %1150 = vmatprep.subr.bf16.mxu0 0
  %1151 = vmatpush1.bf16.msra.mxu0 %v1067
  %1152 = vmatprep.subr.bf16.mxu0 0
  %1153 = vmatpush1.bf16.msra.mxu0 %v1070
  %1154 = vmatprep.subr.bf16.mxu0 0
  %1155 = vmatpush1.bf16.msra.mxu0 %v1073
  %1156 = vmatprep.subr.bf16.mxu0 0
  %1157 = vmatpush1.bf16.msra.mxu0 %v1076
  %1158 = vmatprep.subr.bf16.mxu0 0
  %1159 = vmatpush1.bf16.msra.mxu0 0
  %1160 = vmatprep.subr.bf16.mxu0 0
  %1161 = vmatpush1.bf16.msra.mxu0 0
  %1162 = vmatprep.subr.bf16.mxu0 0
  %1163 = vmatpush1.bf16.msra.mxu0 0
  %1164 = vmatprep.subr.bf16.mxu0 0
  %1165 = vmatpush1.bf16.msra.mxu0 0
  %1166 = vmatprep.subr.bf16.mxu0 0
  %1167 = vmatpush1.bf16.msra.mxu0 0
  %1168 = vmatprep.subr.bf16.mxu0 0
  %1169 = vmatpush1.bf16.msra.mxu0 0
  %1170 = vmatprep.subr.bf16.mxu0 0
  %1171 = vmatpush1.bf16.msra.mxu0 0
  %1172 = vmatprep.subr.bf16.mxu0 0
  %1173 = vmatpush1.bf16.msra.mxu0 0
  %1174 = vmatprep.mubr.bf16.mxu0 0
  %1175 = vmatmul.mubr.bf16.gmra.mrb[0].mxu0 %v923
  %v1176 = vpop.f32.mrb[0].mxu0
  %v1177 = vadd.f32 %v969, %v1176
  %v1178 = vpop.f32.mrb[0].mxu0
  %v1179 = vpop.f32.mrb[0].mxu0
  %v1180 = vpop.f32.mrb[0].mxu0
  %1181 = vdwg.mxu0
  %v1182 = vunpack.c.l.bf16 %v919
  %v1183 = vunpack.c.h.bf16 %v919
  %v1184 = vadd.f32 %v1182, %v1136
  %v1185 = vadd.f32 %v1183, %v1138
  %v1186 = vxor.u32 %v1184, 2147483648
  %v1187 = vxor.u32 %v1185, 2147483648
  %v1188 = vmul.f32 %v1186, 1.442695
  %v1189 = vpow.pop %v1188
  %v1190 = vmul.f32 %v1187, 1.442695
  %v1191 = vpow.pop %v1190
  %v1192 = vadd.f32 %v1189, 1.0
  %v1193 = vadd.f32 %v1191, 1.0
  %v1194 = vrcp.pop %v1192
  %v1195 = vmul.f32 1.0, %v1194
  %v1196 = vrcp.pop %v1193
  %v1197 = vmul.f32 1.0, %v1196
  %v1198 = vmul.f32 %v1195, %v1177
  %v1199 = vunpack.c.l.bf16 %v920
  %v1200 = vadd.f32 %v1199, %v1198
  %v1201 = vtanh.pop %v1200
  %v1202 = vsub.f32 %v917, %v1201
  %v1203 = vmul.f32 %v1197, %v1202
  %v1204 = vadd.f32 %v1201, %v1203
  %1206 = vset.pattern.permute.xlu0 0
  %1207 = vperm.xlu0 %1206, %v922
  %v1208 = vpop.permute.xlu0 %1207
  %v1210 = vmul.f32 %v1208, %v1204
  %v1211 = vpack.c.bf16 %v1210, %v1210
  %s1212 = scalar_lea.vmem %s4, 12
  %1213 = vst [vmem:[%s1212] sm:$0xf] %v1211
  %v1214 = vsub.f32 %v1204, %v917
  %v1215 = vmul.f32 %v1208, %v1214
  %v1216 = vadd.f32 %v917, %v1215
  %1217 = vst [vmem:[#allocation2] sm:$0xff] %v1216
  // Predicated region
  $region22: #{deepspeech2_forward.12} parent=0 // pred_check
    _
  $region23: #{deepspeech2_forward.12} parent=0 // pred_check_branch
    %1219 = sbr.rel (0) target = $region25
  $region24: #{deepspeech2_forward.12} parent=0 // pred_region
    _
  $region25: #{deepspeech2_forward.12} parent=0 // pred_fallthru
    _
  // Predicated region
  $region26: #{deepspeech2_forward.12} parent=0 // pred_check
    _
  $region27: #{deepspeech2_forward.12} parent=0 // pred_check_branch
    %1221 = sbr.rel (0) target = $region29
  $region28: #{deepspeech2_forward.12} parent=0 // pred_region
    _
  $region29: #{deepspeech2_forward.12} parent=0 // pred_fallthru
    _

</llo_original>
